<compile_context>
chip_gen: v6e
topology: v6e:2x2x1
jax: 0.10.0
libtpu: 0.0.40
codegen_flags: <defaults>
</compile_context>

<pallas_src>
import jax
import jax.numpy as jnp
from jax.experimental import pallas as pl
from jax.experimental.pallas import tpu as pltpu

LANES = 128


def _round_up(n, m):
    return ((n + m - 1) // m) * m


# ---------------------------------------------------------------------------
# Fused forward kernel: whole InceptionModel for a (B, L, Cin) batch tile.
# ---------------------------------------------------------------------------

def _make_forward_kernel(cfgs, lin_cfg, B, L):
    """cfgs / lin_cfg hold static (trace-time) offsets into the weight slab."""

    def conv1d_same(x, w2d, K, cin, cout):
        # x: (B, L, cin) f32; w2d: (K*cin, cout), rows tap-major / cin-minor.
        if K == 1:
            y = jnp.dot(x.reshape(B * L, cin), w2d,
                        preferred_element_type=jnp.float32)
            return y.reshape(B, L, cout)
        left = (K - 1) // 2
        right = (K - 1) - left          # extra zero on the right for even K
        parts = []
        if left:
            parts.append(jnp.zeros((B, left, cin), jnp.float32))
        parts.append(x)
        if right:
            parts.append(jnp.zeros((B, right, cin), jnp.float32))
        xp = jnp.concatenate(parts, axis=1)                     # (B, L+K-1, cin)
        # im2col: one MXU matmul per conv with M = B*L.
        cols = jnp.concatenate([xp[:, t:t + L, :] for t in range(K)], axis=2)
        y = jnp.dot(cols.reshape(B * L, K * cin), w2d,
                    preferred_element_type=jnp.float32)
        return y.reshape(B, L, cout)

    def kernel(x_ref, w_ref, o_ref):
        x = x_ref[...]                                          # (B, L, Cin)
        for cfg in cfgs:
            org = x
            org_cin = cfg['in_ch']
            for (off, K, cin, cout) in cfg['convs']:
                w2d = w_ref[off:off + K * cin, :cout]           # static slice
                x = conv1d_same(x, w2d, K, cin, cout)
            # NOTE: main-path batch_norm/relu are never applied in forward().
            if cfg['residual'] is not None:
                w_off, b_off, cout = cfg['residual']
                w_res = w_ref[w_off:w_off + org_cin, :cout]     # BN folded in
                b_res = w_ref[b_off:b_off + 1, :cout]
                r = jnp.dot(org.reshape(B * L, org_cin), w_res,
                            preferred_element_type=jnp.float32) + b_res
                x = x + jnp.maximum(r, 0.0).reshape(B, L, cout)  # conv->BN->ReLU, add
        lw_off, c_last = lin_cfg['w_off'], lin_cfg['c_last']
        lb_off = lin_cfg['b_off']
        lw = w_ref[lw_off:lw_off + c_last, :]                   # (C_last, 128) lane-dense
        lb = w_ref[lb_off:lb_off + 1, :]                        # (1, 128)
        pooled = jnp.mean(x, axis=1)                            # (B, C_last)
        o_ref[...] = jnp.dot(pooled, lw,
                             preferred_element_type=jnp.float32) + lb

    return kernel


# ---------------------------------------------------------------------------
# Wrapper
# ---------------------------------------------------------------------------

def inception_forward(x_ncl, params, batch_block=8):
    """x_ncl: (N, C, L) float32 (PyTorch Conv1d layout). Returns (N, latent)."""
    x = jnp.transpose(x_ncl, (0, 2, 1)).astype(jnp.float32)     # -> (N, L, Cin)
    N, L, Cin = x.shape
    latent = params['latent_dim']
    slab = params['weight_slab']                                # (R, 128) f32
    cfgs, lin_cfg = params['cfgs'], params['linear']

    # Batch rows per grid step (biggest lever: M = B*L per matmul).
    # On v7x pick B so the grid length is >= 2 / even when N allows it.
    B = min(batch_block, N)
    G = -(-N // B)
    N_pad = G * B
    if N_pad != N:
        x = jnp.concatenate(
            [x, jnp.zeros((N_pad - N, L, Cin), x.dtype)], axis=0)

    kernel = _make_forward_kernel(cfgs, lin_cfg, B, L)
    R = slab.shape[0]

    # Advisory cost estimate so XLA schedules around this small custom call.
    flops_per_sample = 0
    for cfg in cfgs:
        for (_, K, cin, cout) in cfg['convs']:
            flops_per_sample += 2 * L * K * cin * cout
        if cfg['residual'] is not None:
            flops_per_sample += 2 * L * cfg['in_ch'] * cfg['residual'][2]
    flops_per_sample += 2 * lin_cfg['c_last'] * LANES
    bytes_accessed = 4 * (N_pad * L * Cin + R * LANES + N_pad * LANES)

    out = pl.pallas_call(
        kernel,
        out_shape=jax.ShapeDtypeStruct((N_pad, LANES), jnp.float32),
        grid=(G,),
        in_specs=[
            pl.BlockSpec((B, L, Cin), lambda i: (i, 0, 0)),
            pl.BlockSpec((R, LANES), lambda i: (0, 0)),         # one weight slab, DMA'd once
        ],
        out_specs=pl.BlockSpec((B, LANES), lambda i: (i, 0)),   # lane-dense store
        compiler_params=pltpu.CompilerParams(
            dimension_semantics=("parallel",),                  # 2 TCs on v7x
            vmem_limit_bytes=32 * 1024 * 1024),
        cost_estimate=pl.CostEstimate(
            flops=int(N_pad * flops_per_sample),
            transcendentals=0,
            bytes_accessed=int(bytes_accessed)),
    )(x, slab)
    return out[:N, :latent]


# ---------------------------------------------------------------------------
# Parameter initialization (deterministic, mirrors the PyTorch __init__ shapes)
# ---------------------------------------------------------------------------

def _expand_to_blocks(value, num_blocks):
    if isinstance(value, list):
        assert len(value) == num_blocks
        return value
    return [value] * num_blocks


def init_inception_params(key, num_blocks, in_channels, out_channels,
                          bottleneck_channels, kernel_sizes,
                          use_residuals='default', latent_dim=32):
    channels = [in_channels] + _expand_to_blocks(out_channels, num_blocks)
    bottleneck_channels = _expand_to_blocks(bottleneck_channels, num_blocks)
    kernel_sizes = _expand_to_blocks(kernel_sizes, num_blocks)
    if use_residuals == 'default':
        use_residuals = [i % 3 == 2 for i in range(num_blocks)]
    use_residuals = _expand_to_blocks(use_residuals, num_blocks)

    def nrm(k, shape, scale=0.1):
        return scale * jax.random.normal(k, shape, dtype=jnp.float32)

    # All weights packed into one (rows, 128) slab; 8-row aligned sub-slabs.
    slab_parts = []
    offset = [0]

    def push(w2d):
        rows, cols = w2d.shape
        assert cols <= LANES, "channel/latent width must be <= 128 for slab packing"
        rows_pad = _round_up(max(rows, 1), 8)
        slab_parts.append(jnp.pad(w2d, ((0, rows_pad - rows), (0, LANES - cols))))
        off = offset[0]
        offset[0] += rows_pad
        return off

    cfgs = []      # static per-block structure (trace-time constants)
    for i in range(num_blocks):
        in_ch, out_ch = channels[i], channels[i + 1]
        bn_ch, ks = bottleneck_channels[i], kernel_sizes[i]
        key, k0, k1, k2, k3, k4, k5, k6, k7, k8 = jax.random.split(key, 10)

        use_bottleneck = bn_ch > 0
        ksz = [ks // (2 ** j) for j in range(3)]
        start = bn_ch if use_bottleneck else in_ch
        conv_cins = [start, out_ch, out_ch]

        w_bn = nrm(k0, (in_ch, bn_ch)) if use_bottleneck else None

        convs = []
        for j, kk in enumerate((k1, k2, k3)):
            K, cin = ksz[j], conv_cins[j]
            w = nrm(kk, (K, cin, out_ch))          # tap-major, cin-minor rows
            if j == 0 and use_bottleneck:
                # Exact fold of the (bias-free) 1x1 bottleneck into every tap:
                # folded[k, i, o] = sum_b w_bn[i, b] * w[k, b, o]
                w = jnp.einsum('ib,kbo->kio', w_bn, w)
                cin = in_ch
            off = push(w.reshape(K * cin, out_ch))
            convs.append((off, K, cin, out_ch))

        residual = None
        if bool(use_residuals[i]):
            w_res = nrm(k4, (in_ch, out_ch))
            gamma = 1.0 + nrm(k5, (out_ch,))
            beta = nrm(k6, (out_ch,))
            mean = nrm(k7, (out_ch,))
            var = 0.5 + jnp.abs(nrm(k8, (out_ch,)))
            # Eval-mode BatchNorm folded into the 1x1 residual conv.
            scale = gamma * jax.lax.rsqrt(var + 1e-5)
            w_off = push(w_res * scale[None, :])
            b_off = push((beta - mean * scale).reshape(1, out_ch))
            residual = (w_off, b_off, out_ch)

        # (The module's unused main-path BatchNorm/ReLU params are omitted.)
        cfgs.append(dict(in_ch=in_ch, convs=tuple(convs), residual=residual))

    key, kw, kb = jax.random.split(key, 3)
    c_last = channels[-1]
    lin_w_off = push(nrm(kw, (c_last, latent_dim)))   # padded to 128 lanes
    lin_b_off = push(nrm(kb, (1, latent_dim)))
    linear = dict(w_off=lin_w_off, b_off=lin_b_off, c_last=c_last)

    slab = jnp.concatenate(slab_parts, axis=0)        # (R, 128) f32
    return dict(cfgs=tuple(cfgs), weight_slab=slab, linear=linear,
                latent_dim=latent_dim)


# ---------------------------------------------------------------------------
# Demo
# ---------------------------------------------------------------------------

if __name__ == "__main__":
    key = jax.random.PRNGKey(0)
    k_param, k_x = jax.random.split(key)

    num_blocks = 3
    in_channels = 4
    out_channels = 16
    bottleneck_channels = 8
    kernel_sizes = 9          # -> per-block conv kernel sizes [9, 4, 2]
    latent_dim = 32
    N, L = 2, 64

    params = init_inception_params(
        k_param, num_blocks, in_channels, out_channels,
        bottleneck_channels, kernel_sizes,
        use_residuals='default', latent_dim=latent_dim)

    x = jax.random.normal(k_x, (N, in_channels, L), dtype=jnp.float32)

    fwd = jax.jit(lambda inp: inception_forward(inp, params))
    y = jax.block_until_ready(fwd(x))

    assert y.shape == (N, latent_dim), y.shape
    assert bool(jnp.all(jnp.isfinite(y)))
    print("KERNEL_OK")
</pallas_src>

<mosaic_0001>
module attributes {stable_mosaic.version = 11 : i64} {
  func.func @kernel(%arg0: i32, %arg1: memref<2x64x4xf32, #tpu.memory_space<vmem>>, %arg2: memref<664x128xf32, #tpu.memory_space<vmem>>, %arg3: memref<2x128xf32, #tpu.memory_space<vmem>>) attributes {dimension_semantics = [#tpu.dimension_semantics<parallel>], iteration_bounds = array<i64: 1>, scalar_prefetch = 0 : i64, scratch_operands = 0 : i64, tpu.core_type = #tpu.core_type<tc>, window_params = [{transform_indices = @transform_0, window_bounds = array<i64: 2, 64, 4>}, {pipeline_mode = #tpu.pipeline_mode<synchronous>, transform_indices = @transform_1, window_bounds = array<i64: 664, 128>}, {transform_indices = @transform_2, window_bounds = array<i64: 2, 128>}]} {
    %c0 = arith.constant 0 : index
    %c0_0 = arith.constant 0 : index
    %c0_1 = arith.constant 0 : index
    %0 = vector.load %arg1[%c0, %c0_0, %c0_1] : memref<2x64x4xf32, #tpu.memory_space<vmem>>, vector<2x64x4xf32>
    %c0_2 = arith.constant 0 : index
    %c0_3 = arith.constant 0 : index
    %1 = vector.load %arg2[%c0_2, %c0_3] : memref<664x128xf32, #tpu.memory_space<vmem>>, vector<36x16xf32>
    %cst = arith.constant 0.000000e+00 : f32
    %2 = vector.broadcast %cst : f32 to vector<2x4x4xf32>
    %cst_4 = arith.constant 0.000000e+00 : f32
    %3 = vector.broadcast %cst_4 : f32 to vector<2x4x4xf32>
    %4 = tpu.concatenate %2, %0, %3 in 1 : vector<2x4x4xf32>, vector<2x64x4xf32>, vector<2x4x4xf32> -> vector<2x72x4xf32>
    %5 = vector.extract_strided_slice %4 {offsets = [0, 0, 0], sizes = [2, 64, 4], strides = [1, 1, 1]} : vector<2x72x4xf32> to vector<2x64x4xf32>
    %6 = vector.extract_strided_slice %4 {offsets = [0, 1, 0], sizes = [2, 64, 4], strides = [1, 1, 1]} : vector<2x72x4xf32> to vector<2x64x4xf32>
    %7 = vector.extract_strided_slice %4 {offsets = [0, 2, 0], sizes = [2, 64, 4], strides = [1, 1, 1]} : vector<2x72x4xf32> to vector<2x64x4xf32>
    %8 = vector.extract_strided_slice %4 {offsets = [0, 3, 0], sizes = [2, 64, 4], strides = [1, 1, 1]} : vector<2x72x4xf32> to vector<2x64x4xf32>
    %9 = vector.extract_strided_slice %4 {offsets = [0, 4, 0], sizes = [2, 64, 4], strides = [1, 1, 1]} : vector<2x72x4xf32> to vector<2x64x4xf32>
    %10 = vector.extract_strided_slice %4 {offsets = [0, 5, 0], sizes = [2, 64, 4], strides = [1, 1, 1]} : vector<2x72x4xf32> to vector<2x64x4xf32>
    %11 = vector.extract_strided_slice %4 {offsets = [0, 6, 0], sizes = [2, 64, 4], strides = [1, 1, 1]} : vector<2x72x4xf32> to vector<2x64x4xf32>
    %12 = vector.extract_strided_slice %4 {offsets = [0, 7, 0], sizes = [2, 64, 4], strides = [1, 1, 1]} : vector<2x72x4xf32> to vector<2x64x4xf32>
    %13 = vector.extract_strided_slice %4 {offsets = [0, 8, 0], sizes = [2, 64, 4], strides = [1, 1, 1]} : vector<2x72x4xf32> to vector<2x64x4xf32>
    %14 = tpu.concatenate %5, %6, %7, %8, %9, %10, %11, %12, %13 in 2 : vector<2x64x4xf32>, vector<2x64x4xf32>, vector<2x64x4xf32>, vector<2x64x4xf32>, vector<2x64x4xf32>, vector<2x64x4xf32>, vector<2x64x4xf32>, vector<2x64x4xf32>, vector<2x64x4xf32> -> vector<2x64x36xf32>
    %15 = vector.shape_cast %14 : vector<2x64x36xf32> to vector<128x36xf32>
    %cst_5 = arith.constant dense<0.000000e+00> : vector<128x16xf32>
    %16 = tpu.matmul %15, %1, %cst_5 {dimension_numbers = #tpu.dot_dimension_numbers<[1], [0], [0], [1], [0, 0, 1, 1], [], []>} : vector<128x36xf32>, vector<36x16xf32>, vector<128x16xf32> -> vector<128x16xf32>
    %17 = vector.shape_cast %16 : vector<128x16xf32> to vector<2x64x16xf32>
    %c40 = arith.constant 40 : index
    %c0_6 = arith.constant 0 : index
    %18 = vector.load %arg2[%c40, %c0_6] : memref<664x128xf32, #tpu.memory_space<vmem>>, vector<64x16xf32>
    %cst_7 = arith.constant 0.000000e+00 : f32
    %19 = vector.broadcast %cst_7 : f32 to vector<2x1x16xf32>
    %cst_8 = arith.constant 0.000000e+00 : f32
    %20 = vector.broadcast %cst_8 : f32 to vector<2x2x16xf32>
    %21 = tpu.concatenate %19, %17, %20 in 1 : vector<2x1x16xf32>, vector<2x64x16xf32>, vector<2x2x16xf32> -> vector<2x67x16xf32>
    %22 = vector.extract_strided_slice %21 {offsets = [0, 0, 0], sizes = [2, 64, 16], strides = [1, 1, 1]} : vector<2x67x16xf32> to vector<2x64x16xf32>
    %23 = vector.extract_strided_slice %21 {offsets = [0, 1, 0], sizes = [2, 64, 16], strides = [1, 1, 1]} : vector<2x67x16xf32> to vector<2x64x16xf32>
    %24 = vector.extract_strided_slice %21 {offsets = [0, 2, 0], sizes = [2, 64, 16], strides = [1, 1, 1]} : vector<2x67x16xf32> to vector<2x64x16xf32>
    %25 = vector.extract_strided_slice %21 {offsets = [0, 3, 0], sizes = [2, 64, 16], strides = [1, 1, 1]} : vector<2x67x16xf32> to vector<2x64x16xf32>
    %26 = tpu.concatenate %22, %23, %24, %25 in 2 : vector<2x64x16xf32>, vector<2x64x16xf32>, vector<2x64x16xf32>, vector<2x64x16xf32> -> vector<2x64x64xf32>
    %27 = vector.shape_cast %26 : vector<2x64x64xf32> to vector<128x64xf32>
    %cst_9 = arith.constant dense<0.000000e+00> : vector<128x16xf32>
    %28 = tpu.matmul %27, %18, %cst_9 {dimension_numbers = #tpu.dot_dimension_numbers<[1], [0], [0], [1], [0, 0, 1, 1], [], []>} : vector<128x64xf32>, vector<64x16xf32>, vector<128x16xf32> -> vector<128x16xf32>
    %29 = vector.shape_cast %28 : vector<128x16xf32> to vector<2x64x16xf32>
    %c104 = arith.constant 104 : index
    %c0_10 = arith.constant 0 : index
    %30 = vector.load %arg2[%c104, %c0_10] : memref<664x128xf32, #tpu.memory_space<vmem>>, vector<32x16xf32>
    %cst_11 = arith.constant 0.000000e+00 : f32
    %31 = vector.broadcast %cst_11 : f32 to vector<2x1x16xf32>
    %32 = tpu.concatenate %29, %31 in 1 : vector<2x64x16xf32>, vector<2x1x16xf32> -> vector<2x65x16xf32>
    %33 = vector.extract_strided_slice %32 {offsets = [0, 0, 0], sizes = [2, 64, 16], strides = [1, 1, 1]} : vector<2x65x16xf32> to vector<2x64x16xf32>
    %34 = vector.extract_strided_slice %32 {offsets = [0, 1, 0], sizes = [2, 64, 16], strides = [1, 1, 1]} : vector<2x65x16xf32> to vector<2x64x16xf32>
    %35 = tpu.concatenate %33, %34 in 2 : vector<2x64x16xf32>, vector<2x64x16xf32> -> vector<2x64x32xf32>
    %36 = vector.shape_cast %35 : vector<2x64x32xf32> to vector<128x32xf32>
    %cst_12 = arith.constant dense<0.000000e+00> : vector<128x16xf32>
    %37 = tpu.matmul %36, %30, %cst_12 {dimension_numbers = #tpu.dot_dimension_numbers<[1], [0], [0], [1], [0, 0, 1, 1], [], []>} : vector<128x32xf32>, vector<32x16xf32>, vector<128x16xf32> -> vector<128x16xf32>
    %38 = vector.shape_cast %37 : vector<128x16xf32> to vector<2x64x16xf32>
    %c136 = arith.constant 136 : index
    %c0_13 = arith.constant 0 : index
    %39 = vector.load %arg2[%c136, %c0_13] : memref<664x128xf32, #tpu.memory_space<vmem>>, vector<144x16xf32>
    %cst_14 = arith.constant 0.000000e+00 : f32
    %40 = vector.broadcast %cst_14 : f32 to vector<2x4x16xf32>
    %cst_15 = arith.constant 0.000000e+00 : f32
    %41 = vector.broadcast %cst_15 : f32 to vector<2x4x16xf32>
    %42 = tpu.concatenate %40, %38, %41 in 1 : vector<2x4x16xf32>, vector<2x64x16xf32>, vector<2x4x16xf32> -> vector<2x72x16xf32>
    %43 = vector.extract_strided_slice %42 {offsets = [0, 0, 0], sizes = [2, 64, 16], strides = [1, 1, 1]} : vector<2x72x16xf32> to vector<2x64x16xf32>
    %44 = vector.extract_strided_slice %42 {offsets = [0, 1, 0], sizes = [2, 64, 16], strides = [1, 1, 1]} : vector<2x72x16xf32> to vector<2x64x16xf32>
    %45 = vector.extract_strided_slice %42 {offsets = [0, 2, 0], sizes = [2, 64, 16], strides = [1, 1, 1]} : vector<2x72x16xf32> to vector<2x64x16xf32>
    %46 = vector.extract_strided_slice %42 {offsets = [0, 3, 0], sizes = [2, 64, 16], strides = [1, 1, 1]} : vector<2x72x16xf32> to vector<2x64x16xf32>
    %47 = vector.extract_strided_slice %42 {offsets = [0, 4, 0], sizes = [2, 64, 16], strides = [1, 1, 1]} : vector<2x72x16xf32> to vector<2x64x16xf32>
    %48 = vector.extract_strided_slice %42 {offsets = [0, 5, 0], sizes = [2, 64, 16], strides = [1, 1, 1]} : vector<2x72x16xf32> to vector<2x64x16xf32>
    %49 = vector.extract_strided_slice %42 {offsets = [0, 6, 0], sizes = [2, 64, 16], strides = [1, 1, 1]} : vector<2x72x16xf32> to vector<2x64x16xf32>
    %50 = vector.extract_strided_slice %42 {offsets = [0, 7, 0], sizes = [2, 64, 16], strides = [1, 1, 1]} : vector<2x72x16xf32> to vector<2x64x16xf32>
    %51 = vector.extract_strided_slice %42 {offsets = [0, 8, 0], sizes = [2, 64, 16], strides = [1, 1, 1]} : vector<2x72x16xf32> to vector<2x64x16xf32>
    %52 = tpu.concatenate %43, %44, %45, %46, %47, %48, %49, %50, %51 in 2 : vector<2x64x16xf32>, vector<2x64x16xf32>, vector<2x64x16xf32>, vector<2x64x16xf32>, vector<2x64x16xf32>, vector<2x64x16xf32>, vector<2x64x16xf32>, vector<2x64x16xf32>, vector<2x64x16xf32> -> vector<2x64x144xf32>
    %53 = vector.shape_cast %52 : vector<2x64x144xf32> to vector<128x144xf32>
    %cst_16 = arith.constant dense<0.000000e+00> : vector<128x16xf32>
    %54 = tpu.matmul %53, %39, %cst_16 {dimension_numbers = #tpu.dot_dimension_numbers<[1], [0], [0], [1], [0, 0, 1, 1], [], []>} : vector<128x144xf32>, vector<144x16xf32>, vector<128x16xf32> -> vector<128x16xf32>
    %55 = vector.shape_cast %54 : vector<128x16xf32> to vector<2x64x16xf32>
    %c280 = arith.constant 280 : index
    %c0_17 = arith.constant 0 : index
    %56 = vector.load %arg2[%c280, %c0_17] : memref<664x128xf32, #tpu.memory_space<vmem>>, vector<64x16xf32>
    %cst_18 = arith.constant 0.000000e+00 : f32
    %57 = vector.broadcast %cst_18 : f32 to vector<2x1x16xf32>
    %cst_19 = arith.constant 0.000000e+00 : f32
    %58 = vector.broadcast %cst_19 : f32 to vector<2x2x16xf32>
    %59 = tpu.concatenate %57, %55, %58 in 1 : vector<2x1x16xf32>, vector<2x64x16xf32>, vector<2x2x16xf32> -> vector<2x67x16xf32>
    %60 = vector.extract_strided_slice %59 {offsets = [0, 0, 0], sizes = [2, 64, 16], strides = [1, 1, 1]} : vector<2x67x16xf32> to vector<2x64x16xf32>
    %61 = vector.extract_strided_slice %59 {offsets = [0, 1, 0], sizes = [2, 64, 16], strides = [1, 1, 1]} : vector<2x67x16xf32> to vector<2x64x16xf32>
    %62 = vector.extract_strided_slice %59 {offsets = [0, 2, 0], sizes = [2, 64, 16], strides = [1, 1, 1]} : vector<2x67x16xf32> to vector<2x64x16xf32>
    %63 = vector.extract_strided_slice %59 {offsets = [0, 3, 0], sizes = [2, 64, 16], strides = [1, 1, 1]} : vector<2x67x16xf32> to vector<2x64x16xf32>
    %64 = tpu.concatenate %60, %61, %62, %63 in 2 : vector<2x64x16xf32>, vector<2x64x16xf32>, vector<2x64x16xf32>, vector<2x64x16xf32> -> vector<2x64x64xf32>
    %65 = vector.shape_cast %64 : vector<2x64x64xf32> to vector<128x64xf32>
    %cst_20 = arith.constant dense<0.000000e+00> : vector<128x16xf32>
    %66 = tpu.matmul %65, %56, %cst_20 {dimension_numbers = #tpu.dot_dimension_numbers<[1], [0], [0], [1], [0, 0, 1, 1], [], []>} : vector<128x64xf32>, vector<64x16xf32>, vector<128x16xf32> -> vector<128x16xf32>
    %67 = vector.shape_cast %66 : vector<128x16xf32> to vector<2x64x16xf32>
    %c344 = arith.constant 344 : index
    %c0_21 = arith.constant 0 : index
    %68 = vector.load %arg2[%c344, %c0_21] : memref<664x128xf32, #tpu.memory_space<vmem>>, vector<32x16xf32>
    %cst_22 = arith.constant 0.000000e+00 : f32
    %69 = vector.broadcast %cst_22 : f32 to vector<2x1x16xf32>
    %70 = tpu.concatenate %67, %69 in 1 : vector<2x64x16xf32>, vector<2x1x16xf32> -> vector<2x65x16xf32>
    %71 = vector.extract_strided_slice %70 {offsets = [0, 0, 0], sizes = [2, 64, 16], strides = [1, 1, 1]} : vector<2x65x16xf32> to vector<2x64x16xf32>
    %72 = vector.extract_strided_slice %70 {offsets = [0, 1, 0], sizes = [2, 64, 16], strides = [1, 1, 1]} : vector<2x65x16xf32> to vector<2x64x16xf32>
    %73 = tpu.concatenate %71, %72 in 2 : vector<2x64x16xf32>, vector<2x64x16xf32> -> vector<2x64x32xf32>
    %74 = vector.shape_cast %73 : vector<2x64x32xf32> to vector<128x32xf32>
    %cst_23 = arith.constant dense<0.000000e+00> : vector<128x16xf32>
    %75 = tpu.matmul %74, %68, %cst_23 {dimension_numbers = #tpu.dot_dimension_numbers<[1], [0], [0], [1], [0, 0, 1, 1], [], []>} : vector<128x32xf32>, vector<32x16xf32>, vector<128x16xf32> -> vector<128x16xf32>
    %76 = vector.shape_cast %75 : vector<128x16xf32> to vector<2x64x16xf32>
    %c376 = arith.constant 376 : index
    %c0_24 = arith.constant 0 : index
    %77 = vector.load %arg2[%c376, %c0_24] : memref<664x128xf32, #tpu.memory_space<vmem>>, vector<144x16xf32>
    %cst_25 = arith.constant 0.000000e+00 : f32
    %78 = vector.broadcast %cst_25 : f32 to vector<2x4x16xf32>
    %cst_26 = arith.constant 0.000000e+00 : f32
    %79 = vector.broadcast %cst_26 : f32 to vector<2x4x16xf32>
    %80 = tpu.concatenate %78, %76, %79 in 1 : vector<2x4x16xf32>, vector<2x64x16xf32>, vector<2x4x16xf32> -> vector<2x72x16xf32>
    %81 = vector.extract_strided_slice %80 {offsets = [0, 0, 0], sizes = [2, 64, 16], strides = [1, 1, 1]} : vector<2x72x16xf32> to vector<2x64x16xf32>
    %82 = vector.extract_strided_slice %80 {offsets = [0, 1, 0], sizes = [2, 64, 16], strides = [1, 1, 1]} : vector<2x72x16xf32> to vector<2x64x16xf32>
    %83 = vector.extract_strided_slice %80 {offsets = [0, 2, 0], sizes = [2, 64, 16], strides = [1, 1, 1]} : vector<2x72x16xf32> to vector<2x64x16xf32>
    %84 = vector.extract_strided_slice %80 {offsets = [0, 3, 0], sizes = [2, 64, 16], strides = [1, 1, 1]} : vector<2x72x16xf32> to vector<2x64x16xf32>
    %85 = vector.extract_strided_slice %80 {offsets = [0, 4, 0], sizes = [2, 64, 16], strides = [1, 1, 1]} : vector<2x72x16xf32> to vector<2x64x16xf32>
    %86 = vector.extract_strided_slice %80 {offsets = [0, 5, 0], sizes = [2, 64, 16], strides = [1, 1, 1]} : vector<2x72x16xf32> to vector<2x64x16xf32>
    %87 = vector.extract_strided_slice %80 {offsets = [0, 6, 0], sizes = [2, 64, 16], strides = [1, 1, 1]} : vector<2x72x16xf32> to vector<2x64x16xf32>
    %88 = vector.extract_strided_slice %80 {offsets = [0, 7, 0], sizes = [2, 64, 16], strides = [1, 1, 1]} : vector<2x72x16xf32> to vector<2x64x16xf32>
    %89 = vector.extract_strided_slice %80 {offsets = [0, 8, 0], sizes = [2, 64, 16], strides = [1, 1, 1]} : vector<2x72x16xf32> to vector<2x64x16xf32>
    %90 = tpu.concatenate %81, %82, %83, %84, %85, %86, %87, %88, %89 in 2 : vector<2x64x16xf32>, vector<2x64x16xf32>, vector<2x64x16xf32>, vector<2x64x16xf32>, vector<2x64x16xf32>, vector<2x64x16xf32>, vector<2x64x16xf32>, vector<2x64x16xf32>, vector<2x64x16xf32> -> vector<2x64x144xf32>
    %91 = vector.shape_cast %90 : vector<2x64x144xf32> to vector<128x144xf32>
    %cst_27 = arith.constant dense<0.000000e+00> : vector<128x16xf32>
    %92 = tpu.matmul %91, %77, %cst_27 {dimension_numbers = #tpu.dot_dimension_numbers<[1], [0], [0], [1], [0, 0, 1, 1], [], []>} : vector<128x144xf32>, vector<144x16xf32>, vector<128x16xf32> -> vector<128x16xf32>
    %93 = vector.shape_cast %92 : vector<128x16xf32> to vector<2x64x16xf32>
    %c520 = arith.constant 520 : index
    %c0_28 = arith.constant 0 : index
    %94 = vector.load %arg2[%c520, %c0_28] : memref<664x128xf32, #tpu.memory_space<vmem>>, vector<64x16xf32>
    %cst_29 = arith.constant 0.000000e+00 : f32
    %95 = vector.broadcast %cst_29 : f32 to vector<2x1x16xf32>
    %cst_30 = arith.constant 0.000000e+00 : f32
    %96 = vector.broadcast %cst_30 : f32 to vector<2x2x16xf32>
    %97 = tpu.concatenate %95, %93, %96 in 1 : vector<2x1x16xf32>, vector<2x64x16xf32>, vector<2x2x16xf32> -> vector<2x67x16xf32>
    %98 = vector.extract_strided_slice %97 {offsets = [0, 0, 0], sizes = [2, 64, 16], strides = [1, 1, 1]} : vector<2x67x16xf32> to vector<2x64x16xf32>
    %99 = vector.extract_strided_slice %97 {offsets = [0, 1, 0], sizes = [2, 64, 16], strides = [1, 1, 1]} : vector<2x67x16xf32> to vector<2x64x16xf32>
    %100 = vector.extract_strided_slice %97 {offsets = [0, 2, 0], sizes = [2, 64, 16], strides = [1, 1, 1]} : vector<2x67x16xf32> to vector<2x64x16xf32>
    %101 = vector.extract_strided_slice %97 {offsets = [0, 3, 0], sizes = [2, 64, 16], strides = [1, 1, 1]} : vector<2x67x16xf32> to vector<2x64x16xf32>
    %102 = tpu.concatenate %98, %99, %100, %101 in 2 : vector<2x64x16xf32>, vector<2x64x16xf32>, vector<2x64x16xf32>, vector<2x64x16xf32> -> vector<2x64x64xf32>
    %103 = vector.shape_cast %102 : vector<2x64x64xf32> to vector<128x64xf32>
    %cst_31 = arith.constant dense<0.000000e+00> : vector<128x16xf32>
    %104 = tpu.matmul %103, %94, %cst_31 {dimension_numbers = #tpu.dot_dimension_numbers<[1], [0], [0], [1], [0, 0, 1, 1], [], []>} : vector<128x64xf32>, vector<64x16xf32>, vector<128x16xf32> -> vector<128x16xf32>
    %105 = vector.shape_cast %104 : vector<128x16xf32> to vector<2x64x16xf32>
    %c584 = arith.constant 584 : index
    %c0_32 = arith.constant 0 : index
    %106 = vector.load %arg2[%c584, %c0_32] : memref<664x128xf32, #tpu.memory_space<vmem>>, vector<32x16xf32>
    %cst_33 = arith.constant 0.000000e+00 : f32
    %107 = vector.broadcast %cst_33 : f32 to vector<2x1x16xf32>
    %108 = tpu.concatenate %105, %107 in 1 : vector<2x64x16xf32>, vector<2x1x16xf32> -> vector<2x65x16xf32>
    %109 = vector.extract_strided_slice %108 {offsets = [0, 0, 0], sizes = [2, 64, 16], strides = [1, 1, 1]} : vector<2x65x16xf32> to vector<2x64x16xf32>
    %110 = vector.extract_strided_slice %108 {offsets = [0, 1, 0], sizes = [2, 64, 16], strides = [1, 1, 1]} : vector<2x65x16xf32> to vector<2x64x16xf32>
    %111 = tpu.concatenate %109, %110 in 2 : vector<2x64x16xf32>, vector<2x64x16xf32> -> vector<2x64x32xf32>
    %112 = vector.shape_cast %111 : vector<2x64x32xf32> to vector<128x32xf32>
    %cst_34 = arith.constant dense<0.000000e+00> : vector<128x16xf32>
    %113 = tpu.matmul %112, %106, %cst_34 {dimension_numbers = #tpu.dot_dimension_numbers<[1], [0], [0], [1], [0, 0, 1, 1], [], []>} : vector<128x32xf32>, vector<32x16xf32>, vector<128x16xf32> -> vector<128x16xf32>
    %114 = vector.shape_cast %113 : vector<128x16xf32> to vector<2x64x16xf32>
    %c616 = arith.constant 616 : index
    %c0_35 = arith.constant 0 : index
    %115 = vector.load %arg2[%c616, %c0_35] : memref<664x128xf32, #tpu.memory_space<vmem>>, vector<16x16xf32>
    %c632 = arith.constant 632 : index
    %c0_36 = arith.constant 0 : index
    %116 = vector.load %arg2[%c632, %c0_36] : memref<664x128xf32, #tpu.memory_space<vmem>>, vector<1x16xf32>
    %117 = vector.shape_cast %76 : vector<2x64x16xf32> to vector<128x16xf32>
    %cst_37 = arith.constant dense<0.000000e+00> : vector<128x16xf32>
    %118 = tpu.matmul %117, %115, %cst_37 {dimension_numbers = #tpu.dot_dimension_numbers<[1], [0], [0], [1], [0, 0, 1, 1], [], []>} : vector<128x16xf32>, vector<16x16xf32>, vector<128x16xf32> -> vector<128x16xf32>
    %119 = vector.broadcast %116 : vector<1x16xf32> to vector<128x16xf32>
    %120 = arith.addf %118, %119 : vector<128x16xf32>
    %cst_38 = arith.constant 0.000000e+00 : f32
    %121 = vector.broadcast %cst_38 : f32 to vector<128x16xf32>
    %122 = arith.maximumf %120, %121 : vector<128x16xf32>
    %123 = vector.shape_cast %122 : vector<128x16xf32> to vector<2x64x16xf32>
    %124 = arith.addf %114, %123 : vector<2x64x16xf32>
    %c640 = arith.constant 640 : index
    %c0_39 = arith.constant 0 : index
    %125 = vector.load %arg2[%c640, %c0_39] : memref<664x128xf32, #tpu.memory_space<vmem>>, vector<16x128xf32>
    %c656 = arith.constant 656 : index
    %c0_40 = arith.constant 0 : index
    %126 = vector.load %arg2[%c656, %c0_40] : memref<664x128xf32, #tpu.memory_space<vmem>>, vector<1x128xf32>
    %cst_41 = arith.constant dense<0.000000e+00> : vector<2x16xf32>
    %127 = vector.multi_reduction <add>, %124, %cst_41 [1] : vector<2x64x16xf32> to vector<2x16xf32>
    %cst_42 = arith.constant 6.400000e+01 : f32
    %128 = vector.broadcast %cst_42 : f32 to vector<2x16xf32>
    %129 = arith.divf %127, %128 : vector<2x16xf32>
    %cst_43 = arith.constant dense<0.000000e+00> : vector<2x128xf32>
    %130 = tpu.matmul %129, %125, %cst_43 {dimension_numbers = #tpu.dot_dimension_numbers<[1], [0], [0], [1], [0, 0, 1, 1], [], []>} : vector<2x16xf32>, vector<16x128xf32>, vector<2x128xf32> -> vector<2x128xf32>
    %131 = vector.broadcast %126 : vector<1x128xf32> to vector<2x128xf32>
    %132 = arith.addf %130, %131 : vector<2x128xf32>
    %c0_44 = arith.constant 0 : index
    %c0_45 = arith.constant 0 : index
    %133 = vector.load %arg3[%c0_44, %c0_45] : memref<2x128xf32, #tpu.memory_space<vmem>>, vector<2x128xf32>
    tpu.vector_store %arg3[%c0_44, %c0_45], %132 {strides = array<i32>} : memref<2x128xf32, #tpu.memory_space<vmem>>, vector<2x128xf32>,
    return
  }
  func.func @transform_0(%arg0: i32) -> (i32, i32, i32) {
    %c0_i32 = arith.constant 0 : i32
    %c0_i32_0 = arith.constant 0 : i32
    %c0_i32_1 = arith.constant 0 : i32
    return %arg0, %c0_i32, %c0_i32_0 : i32, i32, i32
  }
  func.func @transform_1(%arg0: i32) -> (i32, i32) {
    %c0_i32 = arith.constant 0 : i32
    %c0_i32_0 = arith.constant 0 : i32
    %c0_i32_1 = arith.constant 0 : i32
    return %c0_i32, %c0_i32_0 : i32, i32
  }
  func.func @transform_2(%arg0: i32) -> (i32, i32) {
    %c0_i32 = arith.constant 0 : i32
    %c0_i32_0 = arith.constant 0 : i32
    return %arg0, %c0_i32 : i32, i32
  }
}

</mosaic_0001>

<llo_original>
// kernel: _lambda_.1
$region0: #{_lambda_.1}
  #allocation0 [shape = 'u32[]', space=smem, size = 0x4, offset = 0x4, fixed_abs, tag = 'smem constant byte address 0x4 - core index']
  #allocation1 [shape = 'u32[144,128]{1,0:T(1,128)}', space=vmem, size = 0x12000, scoped, tag = 'internal scratch']
  %s0 = inlined_call_operand.vmem [shape: f32[2,64,4], index: 0, kind: input, shape index: {}]
  %s1 = inlined_call_operand.hbm [shape: f32[664,128], index: 1, kind: input, shape index: {}]
  %s2 = inlined_call_operand.hbm [shape: f32[2,128], index: 2, kind: output, shape index: {}]
  %s3 = sld [smem:[#allocation0]]
  $region22: #{_lambda_.1} parent=0
    _
  %s5 = ssub.s32 1, %s3
  %s6 = scalar_select 0, %s5, %s3
  $region1: #{_lambda_.1} parent=0
    #allocation2 [shape = 'u8[339968]{0}', space=vmem, size = 0x53000, scoped, tag = 'input window, operand 1, single buffered']
    #allocation3 [shape = 's32[1]{0}', space=sflag, size = 0x4, scoped, tag = 'scoped memory for _lambda_.1']
    #allocation4 [shape = 's32[1]{0}', space=sflag, size = 0x4, scoped, tag = 'scoped memory for _lambda_.1']
    #allocation5 [shape = 'u8[1024]{0}', space=vmem, size = 0x400, scoped, tag = 'output window, operand 0, single buffered']
    %7 = vsyncpa [#allocation3], 0
    %8 = vsyncpa [#allocation4], 0
    // Predicated region
    $region2: #{_lambda_.1} parent=1 // pred_check
      _
    $region3: #{_lambda_.1} parent=1 // pred_check_branch
      %10 = sbr.rel (0) target = $region5
    $region4: #{_lambda_.1} parent=1 // pred_region
      _
    $region5: #{_lambda_.1} parent=1 // pred_fallthru
      _
    // Predicated region
    $region6: #{_lambda_.1} parent=1 // pred_check
      _
    $region7: #{_lambda_.1} parent=1 // pred_check_branch
      %12 = sbr.rel (0) target = $region9
    $region8: #{_lambda_.1} parent=1 // pred_region
      %s14 = ssub.s32 10624, 10624
      %15 = vsyncadd [#allocation3], %s14
      %s16 = sshll.u32 [#allocation2], 4
      %s17 = int_to_ptr.vmem [resolvable:$true] %s16
      %22 = dma.hbm_to_vmem [thread:$0]  %s1, 10624, %s17, [#allocation3], 128, 128, 8
    $region9: #{_lambda_.1} parent=1 // pred_fallthru
      _
    // Predicated region
    $region10: #{_lambda_.1} parent=1 // pred_check
      _
    $region11: #{_lambda_.1} parent=1 // pred_check_branch
      %24 = sbr.rel (0) target = $region13
    $region12: #{_lambda_.1} parent=1 // pred_region
      %25 = dma.done [#allocation3], 10624
    $region13: #{_lambda_.1} parent=1 // pred_fallthru
      _
    %v26 = vld [vmem:[%s0] sm:$0xff]
    %v27 = vld [vmem:[%s0 + $0x8] sm:$0xff]
    %v28 = vld [vmem:[%s0 + $0x10] sm:$0xff]
    %v29 = vld [vmem:[%s0 + $0x18] sm:$0xff]
    %v30 = vld [vmem:[%s0 + $0x20] sm:$0xff]
    %v31 = vld [vmem:[%s0 + $0x28] sm:$0xff]
    %v32 = vld [vmem:[%s0 + $0x30] sm:$0xff]
    %v33 = vld [vmem:[%s0 + $0x38] sm:$0xff]
    %v34 = vld [vmem:[%s0 + $0x40] sm:$0xff]
    %v35 = vld [vmem:[%s0 + $0x48] sm:$0xff]
    %v36 = vld [vmem:[%s0 + $0x50] sm:$0xff]
    %v37 = vld [vmem:[%s0 + $0x58] sm:$0xff]
    %v38 = vld [vmem:[%s0 + $0x60] sm:$0xff]
    %v39 = vld [vmem:[%s0 + $0x68] sm:$0xff]
    %v40 = vld [vmem:[%s0 + $0x70] sm:$0xff]
    %v41 = vld [vmem:[%s0 + $0x78] sm:$0xff]
    %v42 = vld [vmem:[#allocation2] sm:$0xff]
    %v43 = vld [vmem:[#allocation2 + $0x8] sm:$0xff]
    %v44 = vld [vmem:[#allocation2 + $0x10] sm:$0xff]
    %v45 = vld [vmem:[#allocation2 + $0x18] sm:$0xff]
    %v46 = vld [vmem:[#allocation2 + $0x20] sm:$0xf]
    %vm63 = vcmask 1043456
    %v64 = vrot.slane %v26, 4
    %v65 = vrot.slane %v27, 4
    %v66 = vsel %vm63, %v64, %v65
    %v67 = vrot.slane %v28, 4
    %v68 = vsel %vm63, %v65, %v67
    %v69 = vrot.slane %v29, 4
    %v70 = vsel %vm63, %v67, %v69
    %v71 = vrot.slane %v30, 4
    %v72 = vsel %vm63, %v69, %v71
    %v73 = vrot.slane %v31, 4
    %v74 = vsel %vm63, %v71, %v73
    %v75 = vrot.slane %v32, 4
    %v76 = vsel %vm63, %v73, %v75
    %v77 = vrot.slane %v33, 4
    %v78 = vsel %vm63, %v75, %v77
    %v79 = vrot.slane %v34, 4
    %v80 = vrot.slane %v35, 4
    %v81 = vsel %vm63, %v79, %v80
    %v82 = vrot.slane %v36, 4
    %v83 = vsel %vm63, %v80, %v82
    %v84 = vrot.slane %v37, 4
    %v85 = vsel %vm63, %v82, %v84
    %v86 = vrot.slane %v38, 4
    %v87 = vsel %vm63, %v84, %v86
    %v88 = vrot.slane %v39, 4
    %v89 = vsel %vm63, %v86, %v88
    %v90 = vrot.slane %v40, 4
    %v91 = vsel %vm63, %v88, %v90
    %v92 = vrot.slane %v41, 4
    %v93 = vsel %vm63, %v90, %v92
    %v112 = vsel %vm63, 0.0, %v64
    %v113 = vsel %vm63, 0.0, %v79
    %v114 = vsel %vm63, %v77, 0.0
    %v115 = vsel %vm63, %v92, 0.0
    %vm120 = vcmask 1046528
    %v121 = vrot.slane %v112, 1
    %v122 = vrot.slane %v66, 1
    %v123 = vsel %vm120, %v121, %v122
    %v124 = vrot.slane %v68, 1
    %v125 = vsel %vm120, %v122, %v124
    %v126 = vrot.slane %v70, 1
    %v127 = vsel %vm120, %v124, %v126
    %v128 = vrot.slane %v72, 1
    %v129 = vsel %vm120, %v126, %v128
    %v130 = vrot.slane %v74, 1
    %v131 = vsel %vm120, %v128, %v130
    %v132 = vrot.slane %v76, 1
    %v133 = vsel %vm120, %v130, %v132
    %v134 = vrot.slane %v78, 1
    %v135 = vsel %vm120, %v132, %v134
    %v136 = vrot.slane %v114, 1
    %v137 = vsel %vm120, %v134, %v136
    %v138 = vrot.slane %v113, 1
    %v139 = vrot.slane %v81, 1
    %v140 = vsel %vm120, %v138, %v139
    %v141 = vrot.slane %v83, 1
    %v142 = vsel %vm120, %v139, %v141
    %v143 = vrot.slane %v85, 1
    %v144 = vsel %vm120, %v141, %v143
    %v145 = vrot.slane %v87, 1
    %v146 = vsel %vm120, %v143, %v145
    %v147 = vrot.slane %v89, 1
    %v148 = vsel %vm120, %v145, %v147
    %v149 = vrot.slane %v91, 1
    %v150 = vsel %vm120, %v147, %v149
    %v151 = vrot.slane %v93, 1
    %v152 = vsel %vm120, %v149, %v151
    %v153 = vrot.slane %v115, 1
    %v154 = vsel %vm120, %v151, %v153
    %155 = vrot.lane.b32.xlu0 %v123, 4
    %v156 = vpop.permute.xlu0 %155
    %157 = vrot.lane.b32.xlu0 %v125, 4
    %v158 = vpop.permute.xlu0 %157
    %159 = vrot.lane.b32.xlu0 %v127, 4
    %v160 = vpop.permute.xlu0 %159
    %161 = vrot.lane.b32.xlu0 %v129, 4
    %v162 = vpop.permute.xlu0 %161
    %163 = vrot.lane.b32.xlu0 %v131, 4
    %v164 = vpop.permute.xlu0 %163
    %165 = vrot.lane.b32.xlu0 %v133, 4
    %v166 = vpop.permute.xlu0 %165
    %167 = vrot.lane.b32.xlu0 %v135, 4
    %v168 = vpop.permute.xlu0 %167
    %169 = vrot.lane.b32.xlu0 %v137, 4
    %v170 = vpop.permute.xlu0 %169
    %171 = vrot.lane.b32.xlu0 %v140, 4
    %v172 = vpop.permute.xlu0 %171
    %173 = vrot.lane.b32.xlu0 %v142, 4
    %v174 = vpop.permute.xlu0 %173
    %175 = vrot.lane.b32.xlu0 %v144, 4
    %v176 = vpop.permute.xlu0 %175
    %177 = vrot.lane.b32.xlu0 %v146, 4
    %v178 = vpop.permute.xlu0 %177
    %179 = vrot.lane.b32.xlu0 %v148, 4
    %v180 = vpop.permute.xlu0 %179
    %181 = vrot.lane.b32.xlu0 %v150, 4
    %v182 = vpop.permute.xlu0 %181
    %183 = vrot.lane.b32.xlu0 %v152, 4
    %v184 = vpop.permute.xlu0 %183
    %185 = vrot.lane.b32.xlu0 %v154, 4
    %v186 = vpop.permute.xlu0 %185
    %vm203 = vcmask 1045504
    %v204 = vrot.slane %v112, 2
    %v205 = vrot.slane %v66, 2
    %v206 = vsel %vm203, %v204, %v205
    %v207 = vrot.slane %v68, 2
    %v208 = vsel %vm203, %v205, %v207
    %v209 = vrot.slane %v70, 2
    %v210 = vsel %vm203, %v207, %v209
    %v211 = vrot.slane %v72, 2
    %v212 = vsel %vm203, %v209, %v211
    %v213 = vrot.slane %v74, 2
    %v214 = vsel %vm203, %v211, %v213
    %v215 = vrot.slane %v76, 2
    %v216 = vsel %vm203, %v213, %v215
    %v217 = vrot.slane %v78, 2
    %v218 = vsel %vm203, %v215, %v217
    %v219 = vrot.slane %v114, 2
    %v220 = vsel %vm203, %v217, %v219
    %v221 = vrot.slane %v113, 2
    %v222 = vrot.slane %v81, 2
    %v223 = vsel %vm203, %v221, %v222
    %v224 = vrot.slane %v83, 2
    %v225 = vsel %vm203, %v222, %v224
    %v226 = vrot.slane %v85, 2
    %v227 = vsel %vm203, %v224, %v226
    %v228 = vrot.slane %v87, 2
    %v229 = vsel %vm203, %v226, %v228
    %v230 = vrot.slane %v89, 2
    %v231 = vsel %vm203, %v228, %v230
    %v232 = vrot.slane %v91, 2
    %v233 = vsel %vm203, %v230, %v232
    %v234 = vrot.slane %v93, 2
    %v235 = vsel %vm203, %v232, %v234
    %v236 = vrot.slane %v115, 2
    %v237 = vsel %vm203, %v234, %v236
    %238 = vrot.lane.b32.xlu0 %v206, 8
    %v239 = vpop.permute.xlu0 %238
    %240 = vrot.lane.b32.xlu0 %v208, 8
    %v241 = vpop.permute.xlu0 %240
    %242 = vrot.lane.b32.xlu0 %v210, 8
    %v243 = vpop.permute.xlu0 %242
    %244 = vrot.lane.b32.xlu0 %v212, 8
    %v245 = vpop.permute.xlu0 %244
    %246 = vrot.lane.b32.xlu0 %v214, 8
    %v247 = vpop.permute.xlu0 %246
    %248 = vrot.lane.b32.xlu0 %v216, 8
    %v249 = vpop.permute.xlu0 %248
    %250 = vrot.lane.b32.xlu0 %v218, 8
    %v251 = vpop.permute.xlu0 %250
    %252 = vrot.lane.b32.xlu0 %v220, 8
    %v253 = vpop.permute.xlu0 %252
    %254 = vrot.lane.b32.xlu0 %v223, 8
    %v255 = vpop.permute.xlu0 %254
    %256 = vrot.lane.b32.xlu0 %v225, 8
    %v257 = vpop.permute.xlu0 %256
    %258 = vrot.lane.b32.xlu0 %v227, 8
    %v259 = vpop.permute.xlu0 %258
    %260 = vrot.lane.b32.xlu0 %v229, 8
    %v261 = vpop.permute.xlu0 %260
    %262 = vrot.lane.b32.xlu0 %v231, 8
    %v263 = vpop.permute.xlu0 %262
    %264 = vrot.lane.b32.xlu0 %v233, 8
    %v265 = vpop.permute.xlu0 %264
    %266 = vrot.lane.b32.xlu0 %v235, 8
    %v267 = vpop.permute.xlu0 %266
    %268 = vrot.lane.b32.xlu0 %v237, 8
    %v269 = vpop.permute.xlu0 %268
    %vm286 = vcmask 1044480
    %v287 = vrot.slane %v112, 3
    %v288 = vrot.slane %v66, 3
    %v289 = vsel %vm286, %v287, %v288
    %v290 = vrot.slane %v68, 3
    %v291 = vsel %vm286, %v288, %v290
    %v292 = vrot.slane %v70, 3
    %v293 = vsel %vm286, %v290, %v292
    %v294 = vrot.slane %v72, 3
    %v295 = vsel %vm286, %v292, %v294
    %v296 = vrot.slane %v74, 3
    %v297 = vsel %vm286, %v294, %v296
    %v298 = vrot.slane %v76, 3
    %v299 = vsel %vm286, %v296, %v298
    %v300 = vrot.slane %v78, 3
    %v301 = vsel %vm286, %v298, %v300
    %v302 = vrot.slane %v114, 3
    %v303 = vsel %vm286, %v300, %v302
    %v304 = vrot.slane %v113, 3
    %v305 = vrot.slane %v81, 3
    %v306 = vsel %vm286, %v304, %v305
    %v307 = vrot.slane %v83, 3
    %v308 = vsel %vm286, %v305, %v307
    %v309 = vrot.slane %v85, 3
    %v310 = vsel %vm286, %v307, %v309
    %v311 = vrot.slane %v87, 3
    %v312 = vsel %vm286, %v309, %v311
    %v313 = vrot.slane %v89, 3
    %v314 = vsel %vm286, %v311, %v313
    %v315 = vrot.slane %v91, 3
    %v316 = vsel %vm286, %v313, %v315
    %v317 = vrot.slane %v93, 3
    %v318 = vsel %vm286, %v315, %v317
    %v319 = vrot.slane %v115, 3
    %v320 = vsel %vm286, %v317, %v319
    %321 = vrot.lane.b32.xlu0 %v289, 12
    %v322 = vpop.permute.xlu0 %321
    %323 = vrot.lane.b32.xlu0 %v291, 12
    %v324 = vpop.permute.xlu0 %323
    %325 = vrot.lane.b32.xlu0 %v293, 12
    %v326 = vpop.permute.xlu0 %325
    %327 = vrot.lane.b32.xlu0 %v295, 12
    %v328 = vpop.permute.xlu0 %327
    %329 = vrot.lane.b32.xlu0 %v297, 12
    %v330 = vpop.permute.xlu0 %329
    %331 = vrot.lane.b32.xlu0 %v299, 12
    %v332 = vpop.permute.xlu0 %331
    %333 = vrot.lane.b32.xlu0 %v301, 12
    %v334 = vpop.permute.xlu0 %333
    %335 = vrot.lane.b32.xlu0 %v303, 12
    %v336 = vpop.permute.xlu0 %335
    %337 = vrot.lane.b32.xlu0 %v306, 12
    %v338 = vpop.permute.xlu0 %337
    %339 = vrot.lane.b32.xlu0 %v308, 12
    %v340 = vpop.permute.xlu0 %339
    %341 = vrot.lane.b32.xlu0 %v310, 12
    %v342 = vpop.permute.xlu0 %341
    %343 = vrot.lane.b32.xlu0 %v312, 12
    %v344 = vpop.permute.xlu0 %343
    %345 = vrot.lane.b32.xlu0 %v314, 12
    %v346 = vpop.permute.xlu0 %345
    %347 = vrot.lane.b32.xlu0 %v316, 12
    %v348 = vpop.permute.xlu0 %347
    %349 = vrot.lane.b32.xlu0 %v318, 12
    %v350 = vpop.permute.xlu0 %349
    %351 = vrot.lane.b32.xlu0 %v320, 12
    %v352 = vpop.permute.xlu0 %351
    %v369 = vrot.slane %v112, 4
    %v370 = vrot.slane %v66, 4
    %v371 = vsel %vm63, %v369, %v370
    %v372 = vrot.slane %v68, 4
    %v373 = vsel %vm63, %v370, %v372
    %v374 = vrot.slane %v70, 4
    %v375 = vsel %vm63, %v372, %v374
    %v376 = vrot.slane %v72, 4
    %v377 = vsel %vm63, %v374, %v376
    %v378 = vrot.slane %v74, 4
    %v379 = vsel %vm63, %v376, %v378
    %v380 = vrot.slane %v76, 4
    %v381 = vsel %vm63, %v378, %v380
    %v382 = vrot.slane %v78, 4
    %v383 = vsel %vm63, %v380, %v382
    %v384 = vrot.slane %v114, 4
    %v385 = vsel %vm63, %v382, %v384
    %v386 = vrot.slane %v113, 4
    %v387 = vrot.slane %v81, 4
    %v388 = vsel %vm63, %v386, %v387
    %v389 = vrot.slane %v83, 4
    %v390 = vsel %vm63, %v387, %v389
    %v391 = vrot.slane %v85, 4
    %v392 = vsel %vm63, %v389, %v391
    %v393 = vrot.slane %v87, 4
    %v394 = vsel %vm63, %v391, %v393
    %v395 = vrot.slane %v89, 4
    %v396 = vsel %vm63, %v393, %v395
    %v397 = vrot.slane %v91, 4
    %v398 = vsel %vm63, %v395, %v397
    %v399 = vrot.slane %v93, 4
    %v400 = vsel %vm63, %v397, %v399
    %v401 = vrot.slane %v115, 4
    %v402 = vsel %vm63, %v399, %v401
    %403 = vrot.lane.b32.xlu0 %v371, 16
    %v404 = vpop.permute.xlu0 %403
    %405 = vrot.lane.b32.xlu0 %v373, 16
    %v406 = vpop.permute.xlu0 %405
    %407 = vrot.lane.b32.xlu0 %v375, 16
    %v408 = vpop.permute.xlu0 %407
    %409 = vrot.lane.b32.xlu0 %v377, 16
    %v410 = vpop.permute.xlu0 %409
    %411 = vrot.lane.b32.xlu0 %v379, 16
    %v412 = vpop.permute.xlu0 %411
    %413 = vrot.lane.b32.xlu0 %v381, 16
    %v414 = vpop.permute.xlu0 %413
    %415 = vrot.lane.b32.xlu0 %v383, 16
    %v416 = vpop.permute.xlu0 %415
    %417 = vrot.lane.b32.xlu0 %v385, 16
    %v418 = vpop.permute.xlu0 %417
    %419 = vrot.lane.b32.xlu0 %v388, 16
    %v420 = vpop.permute.xlu0 %419
    %421 = vrot.lane.b32.xlu0 %v390, 16
    %v422 = vpop.permute.xlu0 %421
    %423 = vrot.lane.b32.xlu0 %v392, 16
    %v424 = vpop.permute.xlu0 %423
    %425 = vrot.lane.b32.xlu0 %v394, 16
    %v426 = vpop.permute.xlu0 %425
    %427 = vrot.lane.b32.xlu0 %v396, 16
    %v428 = vpop.permute.xlu0 %427
    %429 = vrot.lane.b32.xlu0 %v398, 16
    %v430 = vpop.permute.xlu0 %429
    %431 = vrot.lane.b32.xlu0 %v400, 16
    %v432 = vpop.permute.xlu0 %431
    %433 = vrot.lane.b32.xlu0 %v402, 16
    %v434 = vpop.permute.xlu0 %433
    %vm451 = vcmask 1042432
    %v452 = vrot.slane %v112, 5
    %v453 = vrot.slane %v66, 5
    %v454 = vsel %vm451, %v452, %v453
    %v455 = vrot.slane %v68, 5
    %v456 = vsel %vm451, %v453, %v455
    %v457 = vrot.slane %v70, 5
    %v458 = vsel %vm451, %v455, %v457
    %v459 = vrot.slane %v72, 5
    %v460 = vsel %vm451, %v457, %v459
    %v461 = vrot.slane %v74, 5
    %v462 = vsel %vm451, %v459, %v461
    %v463 = vrot.slane %v76, 5
    %v464 = vsel %vm451, %v461, %v463
    %v465 = vrot.slane %v78, 5
    %v466 = vsel %vm451, %v463, %v465
    %v467 = vrot.slane %v114, 5
    %v468 = vsel %vm451, %v465, %v467
    %v469 = vrot.slane %v113, 5
    %v470 = vrot.slane %v81, 5
    %v471 = vsel %vm451, %v469, %v470
    %v472 = vrot.slane %v83, 5
    %v473 = vsel %vm451, %v470, %v472
    %v474 = vrot.slane %v85, 5
    %v475 = vsel %vm451, %v472, %v474
    %v476 = vrot.slane %v87, 5
    %v477 = vsel %vm451, %v474, %v476
    %v478 = vrot.slane %v89, 5
    %v479 = vsel %vm451, %v476, %v478
    %v480 = vrot.slane %v91, 5
    %v481 = vsel %vm451, %v478, %v480
    %v482 = vrot.slane %v93, 5
    %v483 = vsel %vm451, %v480, %v482
    %v484 = vrot.slane %v115, 5
    %v485 = vsel %vm451, %v482, %v484
    %486 = vrot.lane.b32.xlu0 %v454, 20
    %v487 = vpop.permute.xlu0 %486
    %488 = vrot.lane.b32.xlu0 %v456, 20
    %v489 = vpop.permute.xlu0 %488
    %490 = vrot.lane.b32.xlu0 %v458, 20
    %v491 = vpop.permute.xlu0 %490
    %492 = vrot.lane.b32.xlu0 %v460, 20
    %v493 = vpop.permute.xlu0 %492
    %494 = vrot.lane.b32.xlu0 %v462, 20
    %v495 = vpop.permute.xlu0 %494
    %496 = vrot.lane.b32.xlu0 %v464, 20
    %v497 = vpop.permute.xlu0 %496
    %498 = vrot.lane.b32.xlu0 %v466, 20
    %v499 = vpop.permute.xlu0 %498
    %500 = vrot.lane.b32.xlu0 %v468, 20
    %v501 = vpop.permute.xlu0 %500
    %502 = vrot.lane.b32.xlu0 %v471, 20
    %v503 = vpop.permute.xlu0 %502
    %504 = vrot.lane.b32.xlu0 %v473, 20
    %v505 = vpop.permute.xlu0 %504
    %506 = vrot.lane.b32.xlu0 %v475, 20
    %v507 = vpop.permute.xlu0 %506
    %508 = vrot.lane.b32.xlu0 %v477, 20
    %v509 = vpop.permute.xlu0 %508
    %510 = vrot.lane.b32.xlu0 %v479, 20
    %v511 = vpop.permute.xlu0 %510
    %512 = vrot.lane.b32.xlu0 %v481, 20
    %v513 = vpop.permute.xlu0 %512
    %514 = vrot.lane.b32.xlu0 %v483, 20
    %v515 = vpop.permute.xlu0 %514
    %516 = vrot.lane.b32.xlu0 %v485, 20
    %v517 = vpop.permute.xlu0 %516
    %vm534 = vcmask 1041408
    %v535 = vrot.slane %v112, 6
    %v536 = vrot.slane %v66, 6
    %v537 = vsel %vm534, %v535, %v536
    %v538 = vrot.slane %v68, 6
    %v539 = vsel %vm534, %v536, %v538
    %v540 = vrot.slane %v70, 6
    %v541 = vsel %vm534, %v538, %v540
    %v542 = vrot.slane %v72, 6
    %v543 = vsel %vm534, %v540, %v542
    %v544 = vrot.slane %v74, 6
    %v545 = vsel %vm534, %v542, %v544
    %v546 = vrot.slane %v76, 6
    %v547 = vsel %vm534, %v544, %v546
    %v548 = vrot.slane %v78, 6
    %v549 = vsel %vm534, %v546, %v548
    %v550 = vrot.slane %v114, 6
    %v551 = vsel %vm534, %v548, %v550
    %v552 = vrot.slane %v113, 6
    %v553 = vrot.slane %v81, 6
    %v554 = vsel %vm534, %v552, %v553
    %v555 = vrot.slane %v83, 6
    %v556 = vsel %vm534, %v553, %v555
    %v557 = vrot.slane %v85, 6
    %v558 = vsel %vm534, %v555, %v557
    %v559 = vrot.slane %v87, 6
    %v560 = vsel %vm534, %v557, %v559
    %v561 = vrot.slane %v89, 6
    %v562 = vsel %vm534, %v559, %v561
    %v563 = vrot.slane %v91, 6
    %v564 = vsel %vm534, %v561, %v563
    %v565 = vrot.slane %v93, 6
    %v566 = vsel %vm534, %v563, %v565
    %v567 = vrot.slane %v115, 6
    %v568 = vsel %vm534, %v565, %v567
    %569 = vrot.lane.b32.xlu0 %v537, 24
    %v570 = vpop.permute.xlu0 %569
    %571 = vrot.lane.b32.xlu0 %v539, 24
    %v572 = vpop.permute.xlu0 %571
    %573 = vrot.lane.b32.xlu0 %v541, 24
    %v574 = vpop.permute.xlu0 %573
    %575 = vrot.lane.b32.xlu0 %v543, 24
    %v576 = vpop.permute.xlu0 %575
    %577 = vrot.lane.b32.xlu0 %v545, 24
    %v578 = vpop.permute.xlu0 %577
    %579 = vrot.lane.b32.xlu0 %v547, 24
    %v580 = vpop.permute.xlu0 %579
    %581 = vrot.lane.b32.xlu0 %v549, 24
    %v582 = vpop.permute.xlu0 %581
    %583 = vrot.lane.b32.xlu0 %v551, 24
    %v584 = vpop.permute.xlu0 %583
    %585 = vrot.lane.b32.xlu0 %v554, 24
    %v586 = vpop.permute.xlu0 %585
    %587 = vrot.lane.b32.xlu0 %v556, 24
    %v588 = vpop.permute.xlu0 %587
    %589 = vrot.lane.b32.xlu0 %v558, 24
    %v590 = vpop.permute.xlu0 %589
    %591 = vrot.lane.b32.xlu0 %v560, 24
    %v592 = vpop.permute.xlu0 %591
    %593 = vrot.lane.b32.xlu0 %v562, 24
    %v594 = vpop.permute.xlu0 %593
    %595 = vrot.lane.b32.xlu0 %v564, 24
    %v596 = vpop.permute.xlu0 %595
    %597 = vrot.lane.b32.xlu0 %v566, 24
    %v598 = vpop.permute.xlu0 %597
    %599 = vrot.lane.b32.xlu0 %v568, 24
    %v600 = vpop.permute.xlu0 %599
    %vm617 = vcmask 1040384
    %v618 = vrot.slane %v112, 7
    %v619 = vrot.slane %v66, 7
    %v620 = vsel %vm617, %v618, %v619
    %v621 = vrot.slane %v68, 7
    %v622 = vsel %vm617, %v619, %v621
    %v623 = vrot.slane %v70, 7
    %v624 = vsel %vm617, %v621, %v623
    %v625 = vrot.slane %v72, 7
    %v626 = vsel %vm617, %v623, %v625
    %v627 = vrot.slane %v74, 7
    %v628 = vsel %vm617, %v625, %v627
    %v629 = vrot.slane %v76, 7
    %v630 = vsel %vm617, %v627, %v629
    %v631 = vrot.slane %v78, 7
    %v632 = vsel %vm617, %v629, %v631
    %v633 = vrot.slane %v114, 7
    %v634 = vsel %vm617, %v631, %v633
    %v635 = vrot.slane %v113, 7
    %v636 = vrot.slane %v81, 7
    %v637 = vsel %vm617, %v635, %v636
    %v638 = vrot.slane %v83, 7
    %v639 = vsel %vm617, %v636, %v638
    %v640 = vrot.slane %v85, 7
    %v641 = vsel %vm617, %v638, %v640
    %v642 = vrot.slane %v87, 7
    %v643 = vsel %vm617, %v640, %v642
    %v644 = vrot.slane %v89, 7
    %v645 = vsel %vm617, %v642, %v644
    %v646 = vrot.slane %v91, 7
    %v647 = vsel %vm617, %v644, %v646
    %v648 = vrot.slane %v93, 7
    %v649 = vsel %vm617, %v646, %v648
    %v650 = vrot.slane %v115, 7
    %v651 = vsel %vm617, %v648, %v650
    %652 = vrot.lane.b32.xlu0 %v620, 28
    %v653 = vpop.permute.xlu0 %652
    %654 = vrot.lane.b32.xlu0 %v622, 28
    %v655 = vpop.permute.xlu0 %654
    %656 = vrot.lane.b32.xlu0 %v624, 28
    %v657 = vpop.permute.xlu0 %656
    %658 = vrot.lane.b32.xlu0 %v626, 28
    %v659 = vpop.permute.xlu0 %658
    %660 = vrot.lane.b32.xlu0 %v628, 28
    %v661 = vpop.permute.xlu0 %660
    %662 = vrot.lane.b32.xlu0 %v630, 28
    %v663 = vpop.permute.xlu0 %662
    %664 = vrot.lane.b32.xlu0 %v632, 28
    %v665 = vpop.permute.xlu0 %664
    %666 = vrot.lane.b32.xlu0 %v634, 28
    %v667 = vpop.permute.xlu0 %666
    %668 = vrot.lane.b32.xlu0 %v637, 28
    %v669 = vpop.permute.xlu0 %668
    %670 = vrot.lane.b32.xlu0 %v639, 28
    %v671 = vpop.permute.xlu0 %670
    %672 = vrot.lane.b32.xlu0 %v641, 28
    %v673 = vpop.permute.xlu0 %672
    %674 = vrot.lane.b32.xlu0 %v643, 28
    %v675 = vpop.permute.xlu0 %674
    %676 = vrot.lane.b32.xlu0 %v645, 28
    %v677 = vpop.permute.xlu0 %676
    %678 = vrot.lane.b32.xlu0 %v647, 28
    %v679 = vpop.permute.xlu0 %678
    %680 = vrot.lane.b32.xlu0 %v649, 28
    %v681 = vpop.permute.xlu0 %680
    %682 = vrot.lane.b32.xlu0 %v651, 28
    %v683 = vpop.permute.xlu0 %682
    %700 = vrot.lane.b32.xlu0 %v66, 32
    %v701 = vpop.permute.xlu0 %700
    %702 = vrot.lane.b32.xlu0 %v68, 32
    %v703 = vpop.permute.xlu0 %702
    %704 = vrot.lane.b32.xlu0 %v70, 32
    %v705 = vpop.permute.xlu0 %704
    %706 = vrot.lane.b32.xlu0 %v72, 32
    %v707 = vpop.permute.xlu0 %706
    %708 = vrot.lane.b32.xlu0 %v74, 32
    %v709 = vpop.permute.xlu0 %708
    %710 = vrot.lane.b32.xlu0 %v76, 32
    %v711 = vpop.permute.xlu0 %710
    %712 = vrot.lane.b32.xlu0 %v78, 32
    %v713 = vpop.permute.xlu0 %712
    %714 = vrot.lane.b32.xlu0 %v114, 32
    %v715 = vpop.permute.xlu0 %714
    %716 = vrot.lane.b32.xlu0 %v81, 32
    %v717 = vpop.permute.xlu0 %716
    %718 = vrot.lane.b32.xlu0 %v83, 32
    %v719 = vpop.permute.xlu0 %718
    %720 = vrot.lane.b32.xlu0 %v85, 32
    %v721 = vpop.permute.xlu0 %720
    %722 = vrot.lane.b32.xlu0 %v87, 32
    %v723 = vpop.permute.xlu0 %722
    %724 = vrot.lane.b32.xlu0 %v89, 32
    %v725 = vpop.permute.xlu0 %724
    %726 = vrot.lane.b32.xlu0 %v91, 32
    %v727 = vpop.permute.xlu0 %726
    %728 = vrot.lane.b32.xlu0 %v93, 32
    %v729 = vpop.permute.xlu0 %728
    %730 = vrot.lane.b32.xlu0 %v115, 32
    %v731 = vpop.permute.xlu0 %730
    %vm748 = vcmask 31744
    %v749 = vsel %vm748, %v112, %v156
    %v750 = vsel %vm748, %v66, %v158
    %v751 = vsel %vm748, %v68, %v160
    %v752 = vsel %vm748, %v70, %v162
    %v753 = vsel %vm748, %v72, %v164
    %v754 = vsel %vm748, %v74, %v166
    %v755 = vsel %vm748, %v76, %v168
    %v756 = vsel %vm748, %v78, %v170
    %v757 = vsel %vm748, %v113, %v172
    %v758 = vsel %vm748, %v81, %v174
    %v759 = vsel %vm748, %v83, %v176
    %v760 = vsel %vm748, %v85, %v178
    %v761 = vsel %vm748, %v87, %v180
    %v762 = vsel %vm748, %v89, %v182
    %v763 = vsel %vm748, %v91, %v184
    %v764 = vsel %vm748, %v93, %v186
    %vm765 = vcmask 64512
    %v766 = vsel %vm765, %v749, %v239
    %v767 = vsel %vm765, %v750, %v241
    %v768 = vsel %vm765, %v751, %v243
    %v769 = vsel %vm765, %v752, %v245
    %v770 = vsel %vm765, %v753, %v247
    %v771 = vsel %vm765, %v754, %v249
    %v772 = vsel %vm765, %v755, %v251
    %v773 = vsel %vm765, %v756, %v253
    %v774 = vsel %vm765, %v757, %v255
    %v775 = vsel %vm765, %v758, %v257
    %v776 = vsel %vm765, %v759, %v259
    %v777 = vsel %vm765, %v760, %v261
    %v778 = vsel %vm765, %v761, %v263
    %v779 = vsel %vm765, %v762, %v265
    %v780 = vsel %vm765, %v763, %v267
    %v781 = vsel %vm765, %v764, %v269
    %vm782 = vcmask 97280
    %v783 = vsel %vm782, %v766, %v322
    %v784 = vsel %vm782, %v767, %v324
    %v785 = vsel %vm782, %v768, %v326
    %v786 = vsel %vm782, %v769, %v328
    %v787 = vsel %vm782, %v770, %v330
    %v788 = vsel %vm782, %v771, %v332
    %v789 = vsel %vm782, %v772, %v334
    %v790 = vsel %vm782, %v773, %v336
    %v791 = vsel %vm782, %v774, %v338
    %v792 = vsel %vm782, %v775, %v340
    %v793 = vsel %vm782, %v776, %v342
    %v794 = vsel %vm782, %v777, %v344
    %v795 = vsel %vm782, %v778, %v346
    %v796 = vsel %vm782, %v779, %v348
    %v797 = vsel %vm782, %v780, %v350
    %v798 = vsel %vm782, %v781, %v352
    %vm799 = vcmask 130048
    %v800 = vsel %vm799, %v783, %v404
    %v801 = vsel %vm799, %v784, %v406
    %v802 = vsel %vm799, %v785, %v408
    %v803 = vsel %vm799, %v786, %v410
    %v804 = vsel %vm799, %v787, %v412
    %v805 = vsel %vm799, %v788, %v414
    %v806 = vsel %vm799, %v789, %v416
    %v807 = vsel %vm799, %v790, %v418
    %v808 = vsel %vm799, %v791, %v420
    %v809 = vsel %vm799, %v792, %v422
    %v810 = vsel %vm799, %v793, %v424
    %v811 = vsel %vm799, %v794, %v426
    %v812 = vsel %vm799, %v795, %v428
    %v813 = vsel %vm799, %v796, %v430
    %v814 = vsel %vm799, %v797, %v432
    %v815 = vsel %vm799, %v798, %v434
    %vm816 = vcmask 162816
    %v817 = vsel %vm816, %v800, %v487
    %v818 = vsel %vm816, %v801, %v489
    %v819 = vsel %vm816, %v802, %v491
    %v820 = vsel %vm816, %v803, %v493
    %v821 = vsel %vm816, %v804, %v495
    %v822 = vsel %vm816, %v805, %v497
    %v823 = vsel %vm816, %v806, %v499
    %v824 = vsel %vm816, %v807, %v501
    %v825 = vsel %vm816, %v808, %v503
    %v826 = vsel %vm816, %v809, %v505
    %v827 = vsel %vm816, %v810, %v507
    %v828 = vsel %vm816, %v811, %v509
    %v829 = vsel %vm816, %v812, %v511
    %v830 = vsel %vm816, %v813, %v513
    %v831 = vsel %vm816, %v814, %v515
    %v832 = vsel %vm816, %v815, %v517
    %vm833 = vcmask 195584
    %v834 = vsel %vm833, %v817, %v570
    %v835 = vsel %vm833, %v818, %v572
    %v836 = vsel %vm833, %v819, %v574
    %v837 = vsel %vm833, %v820, %v576
    %v838 = vsel %vm833, %v821, %v578
    %v839 = vsel %vm833, %v822, %v580
    %v840 = vsel %vm833, %v823, %v582
    %v841 = vsel %vm833, %v824, %v584
    %v842 = vsel %vm833, %v825, %v586
    %v843 = vsel %vm833, %v826, %v588
    %v844 = vsel %vm833, %v827, %v590
    %v845 = vsel %vm833, %v828, %v592
    %v846 = vsel %vm833, %v829, %v594
    %v847 = vsel %vm833, %v830, %v596
    %v848 = vsel %vm833, %v831, %v598
    %v849 = vsel %vm833, %v832, %v600
    %vm850 = vcmask 228352
    %v851 = vsel %vm850, %v834, %v653
    %v852 = vsel %vm850, %v835, %v655
    %v853 = vsel %vm850, %v836, %v657
    %v854 = vsel %vm850, %v837, %v659
    %v855 = vsel %vm850, %v838, %v661
    %v856 = vsel %vm850, %v839, %v663
    %v857 = vsel %vm850, %v840, %v665
    %v858 = vsel %vm850, %v841, %v667
    %v859 = vsel %vm850, %v842, %v669
    %v860 = vsel %vm850, %v843, %v671
    %v861 = vsel %vm850, %v844, %v673
    %v862 = vsel %vm850, %v845, %v675
    %v863 = vsel %vm850, %v846, %v677
    %v864 = vsel %vm850, %v847, %v679
    %v865 = vsel %vm850, %v848, %v681
    %v866 = vsel %vm850, %v849, %v683
    %vm867 = vcmask 261120
    %v868 = vsel %vm867, %v851, %v701
    %v869 = vsel %vm867, %v852, %v703
    %v870 = vsel %vm867, %v853, %v705
    %v871 = vsel %vm867, %v854, %v707
    %v872 = vsel %vm867, %v855, %v709
    %v873 = vsel %vm867, %v856, %v711
    %v874 = vsel %vm867, %v857, %v713
    %v875 = vsel %vm867, %v858, %v715
    %v876 = vsel %vm867, %v859, %v717
    %v877 = vsel %vm867, %v860, %v719
    %v878 = vsel %vm867, %v861, %v721
    %v879 = vsel %vm867, %v862, %v723
    %v880 = vsel %vm867, %v863, %v725
    %v881 = vsel %vm867, %v864, %v727
    %v882 = vsel %vm867, %v865, %v729
    %v883 = vsel %vm867, %v866, %v731
    %vm884 = vcmask 293888
    %v886 = vsel %vm884, %v868, 0
    %v889 = vsel %vm884, %v869, 0
    %v892 = vsel %vm884, %v870, 0
    %v895 = vsel %vm884, %v871, 0
    %v898 = vsel %vm884, %v872, 0
    %v901 = vsel %vm884, %v873, 0
    %v904 = vsel %vm884, %v874, 0
    %v907 = vsel %vm884, %v875, 0
    %v910 = vsel %vm884, %v876, 0
    %v913 = vsel %vm884, %v877, 0
    %v916 = vsel %vm884, %v878, 0
    %v919 = vsel %vm884, %v879, 0
    %v922 = vsel %vm884, %v880, 0
    %v925 = vsel %vm884, %v881, 0
    %v928 = vsel %vm884, %v882, 0
    %v931 = vsel %vm884, %v883, 0
    %v934 = vsel %vm63, %v46, 0
    %936 = vmatprep.subr.mxu0 0.0
    %937 = vmatpush1.msra.mxu0 0.0
    %938 = vmatprep.subr.mxu0 0.0
    %939 = vmatpush1.msra.mxu0 0.0
    %940 = vmatprep.subr.mxu0 0.0
    %941 = vmatpush1.msra.mxu0 0.0
    %942 = vmatprep.subr.mxu0 0.0
    %943 = vmatpush1.msra.mxu0 0.0
    %944 = vmatprep.subr.mxu0 0.0
    %945 = vmatpush1.msra.mxu0 0.0
    %946 = vmatprep.subr.mxu0 0.0
    %947 = vmatpush1.msra.mxu0 0.0
    %948 = vmatprep.subr.mxu0 0.0
    %949 = vmatpush1.msra.mxu0 0.0
    %950 = vmatprep.subr.mxu0 0.0
    %951 = vmatpush1.msra.mxu0 0.0
    %952 = vmatprep.subr.mxu0 0.0
    %953 = vmatpush1.msra.mxu0 0.0
    %954 = vmatprep.subr.mxu0 0.0
    %955 = vmatpush1.msra.mxu0 0.0
    %956 = vmatprep.subr.mxu0 0.0
    %957 = vmatpush1.msra.mxu0 0.0
    %958 = vmatprep.subr.mxu0 0.0
    %959 = vmatpush1.msra.mxu0 %v934
    %960 = vmatprep.subr.mxu0 0.0
    %961 = vmatpush1.msra.mxu0 %v45
    %962 = vmatprep.subr.mxu0 0.0
    %963 = vmatpush1.msra.mxu0 %v44
    %964 = vmatprep.subr.mxu0 0.0
    %965 = vmatpush1.msra.mxu0 %v43
    %966 = vmatprep.subr.mxu0 0.0
    %967 = vmatpush1.msra.mxu0 %v42
    %968 = vmatprep.subr.mxu0 0.0
    %969 = vmatpush2.msra.mxu0 0.0
    %970 = vmatprep.subr.mxu0 0.0
    %971 = vmatpush2.msra.mxu0 0.0
    %972 = vmatprep.subr.mxu0 0.0
    %973 = vmatpush2.msra.mxu0 0.0
    %974 = vmatprep.subr.mxu0 0.0
    %975 = vmatpush2.msra.mxu0 0.0
    %976 = vmatprep.subr.mxu0 0.0
    %977 = vmatpush2.msra.mxu0 0.0
    %978 = vmatprep.subr.mxu0 0.0
    %979 = vmatpush2.msra.mxu0 0.0
    %980 = vmatprep.subr.mxu0 0.0
    %981 = vmatpush2.msra.mxu0 0.0
    %982 = vmatprep.subr.mxu0 0.0
    %983 = vmatpush2.msra.mxu0 0.0
    %984 = vmatprep.subr.mxu0 0.0
    %985 = vmatpush2.msra.mxu0 0.0
    %986 = vmatprep.subr.mxu0 0.0
    %987 = vmatpush2.msra.mxu0 0.0
    %988 = vmatprep.subr.mxu0 0.0
    %989 = vmatpush2.msra.mxu0 0.0
    %990 = vmatprep.subr.mxu0 0.0
    %991 = vmatpush2.msra.mxu0 0.0
    %992 = vmatprep.subr.mxu0 0.0
    %993 = vmatpush2.msra.mxu0 0.0
    %994 = vmatprep.subr.mxu0 0.0
    %995 = vmatpush2.msra.mxu0 0.0
    %996 = vmatprep.subr.mxu0 0.0
    %997 = vmatpush2.msra.mxu0 0.0
    %998 = vmatprep.subr.mxu0 0.0
    %999 = vmatpush2.msra.mxu0 0.0
    %1000 = vmatprep.mubr.f32.mxu0 0.0
    %1001 = vmatmul.mubr.f32.gmra.mxu0 %v886
    %v1002 = vpop.f32.mrf.mxu0
    %v1003 = vadd.f32 0.0, %v1002
    %v1004 = vpop.f32.mrf.mxu0
    %1005 = vmatprep.mubr.f32.mxu0 0.0
    %1006 = vmatmul.mubr.f32.gmra.mxu0 %v889
    %v1007 = vpop.f32.mrf.mxu0
    %v1008 = vadd.f32 0.0, %v1007
    %v1009 = vpop.f32.mrf.mxu0
    %1010 = vmatprep.mubr.f32.mxu0 0.0
    %1011 = vmatmul.mubr.f32.gmra.mxu0 %v892
    %v1012 = vpop.f32.mrf.mxu0
    %v1013 = vadd.f32 0.0, %v1012
    %v1014 = vpop.f32.mrf.mxu0
    %1015 = vmatprep.mubr.f32.mxu0 0.0
    %1016 = vmatmul.mubr.f32.gmra.mxu0 %v895
    %v1017 = vpop.f32.mrf.mxu0
    %v1018 = vadd.f32 0.0, %v1017
    %v1019 = vpop.f32.mrf.mxu0
    %1020 = vmatprep.mubr.f32.mxu0 0.0
    %1021 = vmatmul.mubr.f32.gmra.mxu0 %v898
    %v1022 = vpop.f32.mrf.mxu0
    %v1023 = vadd.f32 0.0, %v1022
    %v1024 = vpop.f32.mrf.mxu0
    %1025 = vmatprep.mubr.f32.mxu0 0.0
    %1026 = vmatmul.mubr.f32.gmra.mxu0 %v901
    %v1027 = vpop.f32.mrf.mxu0
    %v1028 = vadd.f32 0.0, %v1027
    %v1029 = vpop.f32.mrf.mxu0
    %1030 = vmatprep.mubr.f32.mxu0 0.0
    %1031 = vmatmul.mubr.f32.gmra.mxu0 %v904
    %v1032 = vpop.f32.mrf.mxu0
    %v1033 = vadd.f32 0.0, %v1032
    %v1034 = vpop.f32.mrf.mxu0
    %1035 = vmatprep.mubr.f32.mxu0 0.0
    %1036 = vmatmul.mubr.f32.gmra.mxu0 %v907
    %v1037 = vpop.f32.mrf.mxu0
    %v1038 = vadd.f32 0.0, %v1037
    %v1039 = vpop.f32.mrf.mxu0
    %1040 = vmatprep.mubr.f32.mxu0 0.0
    %1041 = vmatmul.mubr.f32.gmra.mxu0 %v910
    %v1042 = vpop.f32.mrf.mxu0
    %v1043 = vadd.f32 0.0, %v1042
    %v1044 = vpop.f32.mrf.mxu0
    %1045 = vmatprep.mubr.f32.mxu0 0.0
    %1046 = vmatmul.mubr.f32.gmra.mxu0 %v913
    %v1047 = vpop.f32.mrf.mxu0
    %v1048 = vadd.f32 0.0, %v1047
    %v1049 = vpop.f32.mrf.mxu0
    %1050 = vmatprep.mubr.f32.mxu0 0.0
    %1051 = vmatmul.mubr.f32.gmra.mxu0 %v916
    %v1052 = vpop.f32.mrf.mxu0
    %v1053 = vadd.f32 0.0, %v1052
    %v1054 = vpop.f32.mrf.mxu0
    %1055 = vmatprep.mubr.f32.mxu0 0.0
    %1056 = vmatmul.mubr.f32.gmra.mxu0 %v919
    %v1057 = vpop.f32.mrf.mxu0
    %v1058 = vadd.f32 0.0, %v1057
    %v1059 = vpop.f32.mrf.mxu0
    %1060 = vmatprep.mubr.f32.mxu0 0.0
    %1061 = vmatmul.mubr.f32.gmra.mxu0 %v922
    %v1062 = vpop.f32.mrf.mxu0
    %v1063 = vadd.f32 0.0, %v1062
    %v1064 = vpop.f32.mrf.mxu0
    %1065 = vmatprep.mubr.f32.mxu0 0.0
    %1066 = vmatmul.mubr.f32.gmra.mxu0 %v925
    %v1067 = vpop.f32.mrf.mxu0
    %v1068 = vadd.f32 0.0, %v1067
    %v1069 = vpop.f32.mrf.mxu0
    %1070 = vmatprep.mubr.f32.mxu0 0.0
    %1071 = vmatmul.mubr.f32.gmra.mxu0 %v928
    %v1072 = vpop.f32.mrf.mxu0
    %v1073 = vadd.f32 0.0, %v1072
    %v1074 = vpop.f32.mrf.mxu0
    %1075 = vmatprep.mubr.f32.mxu0 0.0
    %1076 = vmatmul.mubr.f32.gmra.mxu0 %v931
    %v1077 = vpop.f32.mrf.mxu0
    %v1078 = vadd.f32 0.0, %v1077
    %v1079 = vpop.f32.mrf.mxu0
    %1080 = vdwg.mxu0
    %v1081 = vld [vmem:[#allocation2 + $0x28] sm:$0xff]
    %v1082 = vld [vmem:[#allocation2 + $0x30] sm:$0xff]
    %v1083 = vld [vmem:[#allocation2 + $0x38] sm:$0xff]
    %v1084 = vld [vmem:[#allocation2 + $0x40] sm:$0xff]
    %v1085 = vld [vmem:[#allocation2 + $0x48] sm:$0xff]
    %v1086 = vld [vmem:[#allocation2 + $0x50] sm:$0xff]
    %v1087 = vld [vmem:[#allocation2 + $0x58] sm:$0xff]
    %v1088 = vld [vmem:[#allocation2 + $0x60] sm:$0xff]
    %v1105 = vrot.slane %v1003, 7
    %v1106 = vrot.slane %v1008, 7
    %v1107 = vsel %vm617, %v1105, %v1106
    %v1108 = vrot.slane %v1013, 7
    %v1109 = vsel %vm617, %v1106, %v1108
    %v1110 = vrot.slane %v1018, 7
    %v1111 = vsel %vm617, %v1108, %v1110
    %v1112 = vrot.slane %v1023, 7
    %v1113 = vsel %vm617, %v1110, %v1112
    %v1114 = vrot.slane %v1028, 7
    %v1115 = vsel %vm617, %v1112, %v1114
    %v1116 = vrot.slane %v1033, 7
    %v1117 = vsel %vm617, %v1114, %v1116
    %v1118 = vrot.slane %v1038, 7
    %v1119 = vsel %vm617, %v1116, %v1118
    %v1120 = vrot.slane %v1043, 7
    %v1121 = vrot.slane %v1048, 7
    %v1122 = vsel %vm617, %v1120, %v1121
    %v1123 = vrot.slane %v1053, 7
    %v1124 = vsel %vm617, %v1121, %v1123
    %v1125 = vrot.slane %v1058, 7
    %v1126 = vsel %vm617, %v1123, %v1125
    %v1127 = vrot.slane %v1063, 7
    %v1128 = vsel %vm617, %v1125, %v1127
    %v1129 = vrot.slane %v1068, 7
    %v1130 = vsel %vm617, %v1127, %v1129
    %v1131 = vrot.slane %v1073, 7
    %v1132 = vsel %vm617, %v1129, %v1131
    %v1133 = vrot.slane %v1078, 7
    %v1134 = vsel %vm617, %v1131, %v1133
    %v1153 = vsel %vm617, 0.0, %v1105
    %v1154 = vsel %vm617, 0.0, %v1120
    %v1155 = vsel %vm617, %v1118, 0.0
    %v1156 = vsel %vm617, %v1133, 0.0
    %v1161 = vrot.slane %v1153, 1
    %v1162 = vrot.slane %v1107, 1
    %v1163 = vsel %vm120, %v1161, %v1162
    %v1164 = vrot.slane %v1109, 1
    %v1165 = vsel %vm120, %v1162, %v1164
    %v1166 = vrot.slane %v1111, 1
    %v1167 = vsel %vm120, %v1164, %v1166
    %v1168 = vrot.slane %v1113, 1
    %v1169 = vsel %vm120, %v1166, %v1168
    %v1170 = vrot.slane %v1115, 1
    %v1171 = vsel %vm120, %v1168, %v1170
    %v1172 = vrot.slane %v1117, 1
    %v1173 = vsel %vm120, %v1170, %v1172
    %v1174 = vrot.slane %v1119, 1
    %v1175 = vsel %vm120, %v1172, %v1174
    %v1176 = vrot.slane %v1155, 1
    %v1177 = vsel %vm120, %v1174, %v1176
    %v1178 = vrot.slane %v1154, 1
    %v1179 = vrot.slane %v1122, 1
    %v1180 = vsel %vm120, %v1178, %v1179
    %v1181 = vrot.slane %v1124, 1
    %v1182 = vsel %vm120, %v1179, %v1181
    %v1183 = vrot.slane %v1126, 1
    %v1184 = vsel %vm120, %v1181, %v1183
    %v1185 = vrot.slane %v1128, 1
    %v1186 = vsel %vm120, %v1183, %v1185
    %v1187 = vrot.slane %v1130, 1
    %v1188 = vsel %vm120, %v1185, %v1187
    %v1189 = vrot.slane %v1132, 1
    %v1190 = vsel %vm120, %v1187, %v1189
    %v1191 = vrot.slane %v1134, 1
    %v1192 = vsel %vm120, %v1189, %v1191
    %v1193 = vrot.slane %v1156, 1
    %v1194 = vsel %vm120, %v1191, %v1193
    %1195 = vrot.lane.b32.xlu0 %v1163, 16
    %v1196 = vpop.permute.xlu0 %1195
    %1197 = vrot.lane.b32.xlu0 %v1165, 16
    %v1198 = vpop.permute.xlu0 %1197
    %1199 = vrot.lane.b32.xlu0 %v1167, 16
    %v1200 = vpop.permute.xlu0 %1199
    %1201 = vrot.lane.b32.xlu0 %v1169, 16
    %v1202 = vpop.permute.xlu0 %1201
    %1203 = vrot.lane.b32.xlu0 %v1171, 16
    %v1204 = vpop.permute.xlu0 %1203
    %1205 = vrot.lane.b32.xlu0 %v1173, 16
    %v1206 = vpop.permute.xlu0 %1205
    %1207 = vrot.lane.b32.xlu0 %v1175, 16
    %v1208 = vpop.permute.xlu0 %1207
    %1209 = vrot.lane.b32.xlu0 %v1177, 16
    %v1210 = vpop.permute.xlu0 %1209
    %1211 = vrot.lane.b32.xlu0 %v1180, 16
    %v1212 = vpop.permute.xlu0 %1211
    %1213 = vrot.lane.b32.xlu0 %v1182, 16
    %v1214 = vpop.permute.xlu0 %1213
    %1215 = vrot.lane.b32.xlu0 %v1184, 16
    %v1216 = vpop.permute.xlu0 %1215
    %1217 = vrot.lane.b32.xlu0 %v1186, 16
    %v1218 = vpop.permute.xlu0 %1217
    %1219 = vrot.lane.b32.xlu0 %v1188, 16
    %v1220 = vpop.permute.xlu0 %1219
    %1221 = vrot.lane.b32.xlu0 %v1190, 16
    %v1222 = vpop.permute.xlu0 %1221
    %1223 = vrot.lane.b32.xlu0 %v1192, 16
    %v1224 = vpop.permute.xlu0 %1223
    %1225 = vrot.lane.b32.xlu0 %v1194, 16
    %v1226 = vpop.permute.xlu0 %1225
    %v1243 = vrot.slane %v1153, 2
    %v1244 = vrot.slane %v1107, 2
    %v1245 = vsel %vm203, %v1243, %v1244
    %v1246 = vrot.slane %v1109, 2
    %v1247 = vsel %vm203, %v1244, %v1246
    %v1248 = vrot.slane %v1111, 2
    %v1249 = vsel %vm203, %v1246, %v1248
    %v1250 = vrot.slane %v1113, 2
    %v1251 = vsel %vm203, %v1248, %v1250
    %v1252 = vrot.slane %v1115, 2
    %v1253 = vsel %vm203, %v1250, %v1252
    %v1254 = vrot.slane %v1117, 2
    %v1255 = vsel %vm203, %v1252, %v1254
    %v1256 = vrot.slane %v1119, 2
    %v1257 = vsel %vm203, %v1254, %v1256
    %v1258 = vrot.slane %v1155, 2
    %v1259 = vsel %vm203, %v1256, %v1258
    %v1260 = vrot.slane %v1154, 2
    %v1261 = vrot.slane %v1122, 2
    %v1262 = vsel %vm203, %v1260, %v1261
    %v1263 = vrot.slane %v1124, 2
    %v1264 = vsel %vm203, %v1261, %v1263
    %v1265 = vrot.slane %v1126, 2
    %v1266 = vsel %vm203, %v1263, %v1265
    %v1267 = vrot.slane %v1128, 2
    %v1268 = vsel %vm203, %v1265, %v1267
    %v1269 = vrot.slane %v1130, 2
    %v1270 = vsel %vm203, %v1267, %v1269
    %v1271 = vrot.slane %v1132, 2
    %v1272 = vsel %vm203, %v1269, %v1271
    %v1273 = vrot.slane %v1134, 2
    %v1274 = vsel %vm203, %v1271, %v1273
    %v1275 = vrot.slane %v1156, 2
    %v1276 = vsel %vm203, %v1273, %v1275
    %1277 = vrot.lane.b32.xlu0 %v1245, 32
    %v1278 = vpop.permute.xlu0 %1277
    %1279 = vrot.lane.b32.xlu0 %v1247, 32
    %v1280 = vpop.permute.xlu0 %1279
    %1281 = vrot.lane.b32.xlu0 %v1249, 32
    %v1282 = vpop.permute.xlu0 %1281
    %1283 = vrot.lane.b32.xlu0 %v1251, 32
    %v1284 = vpop.permute.xlu0 %1283
    %1285 = vrot.lane.b32.xlu0 %v1253, 32
    %v1286 = vpop.permute.xlu0 %1285
    %1287 = vrot.lane.b32.xlu0 %v1255, 32
    %v1288 = vpop.permute.xlu0 %1287
    %1289 = vrot.lane.b32.xlu0 %v1257, 32
    %v1290 = vpop.permute.xlu0 %1289
    %1291 = vrot.lane.b32.xlu0 %v1259, 32
    %v1292 = vpop.permute.xlu0 %1291
    %1293 = vrot.lane.b32.xlu0 %v1262, 32
    %v1294 = vpop.permute.xlu0 %1293
    %1295 = vrot.lane.b32.xlu0 %v1264, 32
    %v1296 = vpop.permute.xlu0 %1295
    %1297 = vrot.lane.b32.xlu0 %v1266, 32
    %v1298 = vpop.permute.xlu0 %1297
    %1299 = vrot.lane.b32.xlu0 %v1268, 32
    %v1300 = vpop.permute.xlu0 %1299
    %1301 = vrot.lane.b32.xlu0 %v1270, 32
    %v1302 = vpop.permute.xlu0 %1301
    %1303 = vrot.lane.b32.xlu0 %v1272, 32
    %v1304 = vpop.permute.xlu0 %1303
    %1305 = vrot.lane.b32.xlu0 %v1274, 32
    %v1306 = vpop.permute.xlu0 %1305
    %1307 = vrot.lane.b32.xlu0 %v1276, 32
    %v1308 = vpop.permute.xlu0 %1307
    %v1325 = vrot.slane %v1153, 3
    %v1326 = vrot.slane %v1107, 3
    %v1327 = vsel %vm286, %v1325, %v1326
    %v1328 = vrot.slane %v1109, 3
    %v1329 = vsel %vm286, %v1326, %v1328
    %v1330 = vrot.slane %v1111, 3
    %v1331 = vsel %vm286, %v1328, %v1330
    %v1332 = vrot.slane %v1113, 3
    %v1333 = vsel %vm286, %v1330, %v1332
    %v1334 = vrot.slane %v1115, 3
    %v1335 = vsel %vm286, %v1332, %v1334
    %v1336 = vrot.slane %v1117, 3
    %v1337 = vsel %vm286, %v1334, %v1336
    %v1338 = vrot.slane %v1119, 3
    %v1339 = vsel %vm286, %v1336, %v1338
    %v1340 = vrot.slane %v1155, 3
    %v1341 = vsel %vm286, %v1338, %v1340
    %v1342 = vrot.slane %v1154, 3
    %v1343 = vrot.slane %v1122, 3
    %v1344 = vsel %vm286, %v1342, %v1343
    %v1345 = vrot.slane %v1124, 3
    %v1346 = vsel %vm286, %v1343, %v1345
    %v1347 = vrot.slane %v1126, 3
    %v1348 = vsel %vm286, %v1345, %v1347
    %v1349 = vrot.slane %v1128, 3
    %v1350 = vsel %vm286, %v1347, %v1349
    %v1351 = vrot.slane %v1130, 3
    %v1352 = vsel %vm286, %v1349, %v1351
    %v1353 = vrot.slane %v1132, 3
    %v1354 = vsel %vm286, %v1351, %v1353
    %v1355 = vrot.slane %v1134, 3
    %v1356 = vsel %vm286, %v1353, %v1355
    %v1357 = vrot.slane %v1156, 3
    %v1358 = vsel %vm286, %v1355, %v1357
    %1359 = vrot.lane.b32.xlu0 %v1327, 48
    %v1360 = vpop.permute.xlu0 %1359
    %1361 = vrot.lane.b32.xlu0 %v1329, 48
    %v1362 = vpop.permute.xlu0 %1361
    %1363 = vrot.lane.b32.xlu0 %v1331, 48
    %v1364 = vpop.permute.xlu0 %1363
    %1365 = vrot.lane.b32.xlu0 %v1333, 48
    %v1366 = vpop.permute.xlu0 %1365
    %1367 = vrot.lane.b32.xlu0 %v1335, 48
    %v1368 = vpop.permute.xlu0 %1367
    %1369 = vrot.lane.b32.xlu0 %v1337, 48
    %v1370 = vpop.permute.xlu0 %1369
    %1371 = vrot.lane.b32.xlu0 %v1339, 48
    %v1372 = vpop.permute.xlu0 %1371
    %1373 = vrot.lane.b32.xlu0 %v1341, 48
    %v1374 = vpop.permute.xlu0 %1373
    %1375 = vrot.lane.b32.xlu0 %v1344, 48
    %v1376 = vpop.permute.xlu0 %1375
    %1377 = vrot.lane.b32.xlu0 %v1346, 48
    %v1378 = vpop.permute.xlu0 %1377
    %1379 = vrot.lane.b32.xlu0 %v1348, 48
    %v1380 = vpop.permute.xlu0 %1379
    %1381 = vrot.lane.b32.xlu0 %v1350, 48
    %v1382 = vpop.permute.xlu0 %1381
    %1383 = vrot.lane.b32.xlu0 %v1352, 48
    %v1384 = vpop.permute.xlu0 %1383
    %1385 = vrot.lane.b32.xlu0 %v1354, 48
    %v1386 = vpop.permute.xlu0 %1385
    %1387 = vrot.lane.b32.xlu0 %v1356, 48
    %v1388 = vpop.permute.xlu0 %1387
    %1389 = vrot.lane.b32.xlu0 %v1358, 48
    %v1390 = vpop.permute.xlu0 %1389
    %v1407 = vsel %vm799, %v1153, %v1196
    %v1408 = vsel %vm799, %v1107, %v1198
    %v1409 = vsel %vm799, %v1109, %v1200
    %v1410 = vsel %vm799, %v1111, %v1202
    %v1411 = vsel %vm799, %v1113, %v1204
    %v1412 = vsel %vm799, %v1115, %v1206
    %v1413 = vsel %vm799, %v1117, %v1208
    %v1414 = vsel %vm799, %v1119, %v1210
    %v1415 = vsel %vm799, %v1154, %v1212
    %v1416 = vsel %vm799, %v1122, %v1214
    %v1417 = vsel %vm799, %v1124, %v1216
    %v1418 = vsel %vm799, %v1126, %v1218
    %v1419 = vsel %vm799, %v1128, %v1220
    %v1420 = vsel %vm799, %v1130, %v1222
    %v1421 = vsel %vm799, %v1132, %v1224
    %v1422 = vsel %vm799, %v1134, %v1226
    %v1423 = vsel %vm867, %v1407, %v1278
    %v1424 = vsel %vm867, %v1408, %v1280
    %v1425 = vsel %vm867, %v1409, %v1282
    %v1426 = vsel %vm867, %v1410, %v1284
    %v1427 = vsel %vm867, %v1411, %v1286
    %v1428 = vsel %vm867, %v1412, %v1288
    %v1429 = vsel %vm867, %v1413, %v1290
    %v1430 = vsel %vm867, %v1414, %v1292
    %v1431 = vsel %vm867, %v1415, %v1294
    %v1432 = vsel %vm867, %v1416, %v1296
    %v1433 = vsel %vm867, %v1417, %v1298
    %v1434 = vsel %vm867, %v1418, %v1300
    %v1435 = vsel %vm867, %v1419, %v1302
    %v1436 = vsel %vm867, %v1420, %v1304
    %v1437 = vsel %vm867, %v1421, %v1306
    %v1438 = vsel %vm867, %v1422, %v1308
    %vm1439 = vcmask 392192
    %v1440 = vsel %vm1439, %v1423, %v1360
    %v1441 = vsel %vm1439, %v1424, %v1362
    %v1442 = vsel %vm1439, %v1425, %v1364
    %v1443 = vsel %vm1439, %v1426, %v1366
    %v1444 = vsel %vm1439, %v1427, %v1368
    %v1445 = vsel %vm1439, %v1428, %v1370
    %v1446 = vsel %vm1439, %v1429, %v1372
    %v1447 = vsel %vm1439, %v1430, %v1374
    %v1448 = vsel %vm1439, %v1431, %v1376
    %v1449 = vsel %vm1439, %v1432, %v1378
    %v1450 = vsel %vm1439, %v1433, %v1380
    %v1451 = vsel %vm1439, %v1434, %v1382
    %v1452 = vsel %vm1439, %v1435, %v1384
    %v1453 = vsel %vm1439, %v1436, %v1386
    %v1454 = vsel %vm1439, %v1437, %v1388
    %v1455 = vsel %vm1439, %v1438, %v1390
    %vm1456 = vcmask 523264
    %v1458 = vsel %vm1456, %v1440, 0
    %v1461 = vsel %vm1456, %v1441, 0
    %v1464 = vsel %vm1456, %v1442, 0
    %v1467 = vsel %vm1456, %v1443, 0
    %v1470 = vsel %vm1456, %v1444, 0
    %v1473 = vsel %vm1456, %v1445, 0
    %v1476 = vsel %vm1456, %v1446, 0
    %v1479 = vsel %vm1456, %v1447, 0
    %v1482 = vsel %vm1456, %v1448, 0
    %v1485 = vsel %vm1456, %v1449, 0
    %v1488 = vsel %vm1456, %v1450, 0
    %v1491 = vsel %vm1456, %v1451, 0
    %v1494 = vsel %vm1456, %v1452, 0
    %v1497 = vsel %vm1456, %v1453, 0
    %v1500 = vsel %vm1456, %v1454, 0
    %v1503 = vsel %vm1456, %v1455, 0
    %1505 = vmatprep.subr.mxu0 0.0
    %1506 = vmatpush1.msra.mxu0 0.0
    %1507 = vmatprep.subr.mxu0 0.0
    %1508 = vmatpush1.msra.mxu0 0.0
    %1509 = vmatprep.subr.mxu0 0.0
    %1510 = vmatpush1.msra.mxu0 0.0
    %1511 = vmatprep.subr.mxu0 0.0
    %1512 = vmatpush1.msra.mxu0 0.0
    %1513 = vmatprep.subr.mxu0 0.0
    %1514 = vmatpush1.msra.mxu0 0.0
    %1515 = vmatprep.subr.mxu0 0.0
    %1516 = vmatpush1.msra.mxu0 0.0
    %1517 = vmatprep.subr.mxu0 0.0
    %1518 = vmatpush1.msra.mxu0 0.0
    %1519 = vmatprep.subr.mxu0 0.0
    %1520 = vmatpush1.msra.mxu0 0.0
    %1521 = vmatprep.subr.mxu0 0.0
    %1522 = vmatpush1.msra.mxu0 %v1088
    %1523 = vmatprep.subr.mxu0 0.0
    %1524 = vmatpush1.msra.mxu0 %v1087
    %1525 = vmatprep.subr.mxu0 0.0
    %1526 = vmatpush1.msra.mxu0 %v1086
    %1527 = vmatprep.subr.mxu0 0.0
    %1528 = vmatpush1.msra.mxu0 %v1085
    %1529 = vmatprep.subr.mxu0 0.0
    %1530 = vmatpush1.msra.mxu0 %v1084
    %1531 = vmatprep.subr.mxu0 0.0
    %1532 = vmatpush1.msra.mxu0 %v1083
    %1533 = vmatprep.subr.mxu0 0.0
    %1534 = vmatpush1.msra.mxu0 %v1082
    %1535 = vmatprep.subr.mxu0 0.0
    %1536 = vmatpush1.msra.mxu0 %v1081
    %1537 = vmatprep.subr.mxu0 0.0
    %1538 = vmatpush2.msra.mxu0 0.0
    %1539 = vmatprep.subr.mxu0 0.0
    %1540 = vmatpush2.msra.mxu0 0.0
    %1541 = vmatprep.subr.mxu0 0.0
    %1542 = vmatpush2.msra.mxu0 0.0
    %1543 = vmatprep.subr.mxu0 0.0
    %1544 = vmatpush2.msra.mxu0 0.0
    %1545 = vmatprep.subr.mxu0 0.0
    %1546 = vmatpush2.msra.mxu0 0.0
    %1547 = vmatprep.subr.mxu0 0.0
    %1548 = vmatpush2.msra.mxu0 0.0
    %1549 = vmatprep.subr.mxu0 0.0
    %1550 = vmatpush2.msra.mxu0 0.0
    %1551 = vmatprep.subr.mxu0 0.0
    %1552 = vmatpush2.msra.mxu0 0.0
    %1553 = vmatprep.subr.mxu0 0.0
    %1554 = vmatpush2.msra.mxu0 0.0
    %1555 = vmatprep.subr.mxu0 0.0
    %1556 = vmatpush2.msra.mxu0 0.0
    %1557 = vmatprep.subr.mxu0 0.0
    %1558 = vmatpush2.msra.mxu0 0.0
    %1559 = vmatprep.subr.mxu0 0.0
    %1560 = vmatpush2.msra.mxu0 0.0
    %1561 = vmatprep.subr.mxu0 0.0
    %1562 = vmatpush2.msra.mxu0 0.0
    %1563 = vmatprep.subr.mxu0 0.0
    %1564 = vmatpush2.msra.mxu0 0.0
    %1565 = vmatprep.subr.mxu0 0.0
    %1566 = vmatpush2.msra.mxu0 0.0
    %1567 = vmatprep.subr.mxu0 0.0
    %1568 = vmatpush2.msra.mxu0 0.0
    %1569 = vmatprep.mubr.f32.mxu0 0.0
    %1570 = vmatmul.mubr.f32.gmra.mxu0 %v1458
    %v1571 = vpop.f32.mrf.mxu0
    %v1572 = vadd.f32 0.0, %v1571
    %v1573 = vpop.f32.mrf.mxu0
    %1574 = vmatprep.mubr.f32.mxu0 0.0
    %1575 = vmatmul.mubr.f32.gmra.mxu0 %v1461
    %v1576 = vpop.f32.mrf.mxu0
    %v1577 = vadd.f32 0.0, %v1576
    %v1578 = vpop.f32.mrf.mxu0
    %1579 = vmatprep.mubr.f32.mxu0 0.0
    %1580 = vmatmul.mubr.f32.gmra.mxu0 %v1464
    %v1581 = vpop.f32.mrf.mxu0
    %v1582 = vadd.f32 0.0, %v1581
    %v1583 = vpop.f32.mrf.mxu0
    %1584 = vmatprep.mubr.f32.mxu0 0.0
    %1585 = vmatmul.mubr.f32.gmra.mxu0 %v1467
    %v1586 = vpop.f32.mrf.mxu0
    %v1587 = vadd.f32 0.0, %v1586
    %v1588 = vpop.f32.mrf.mxu0
    %1589 = vmatprep.mubr.f32.mxu0 0.0
    %1590 = vmatmul.mubr.f32.gmra.mxu0 %v1470
    %v1591 = vpop.f32.mrf.mxu0
    %v1592 = vadd.f32 0.0, %v1591
    %v1593 = vpop.f32.mrf.mxu0
    %1594 = vmatprep.mubr.f32.mxu0 0.0
    %1595 = vmatmul.mubr.f32.gmra.mxu0 %v1473
    %v1596 = vpop.f32.mrf.mxu0
    %v1597 = vadd.f32 0.0, %v1596
    %v1598 = vpop.f32.mrf.mxu0
    %1599 = vmatprep.mubr.f32.mxu0 0.0
    %1600 = vmatmul.mubr.f32.gmra.mxu0 %v1476
    %v1601 = vpop.f32.mrf.mxu0
    %v1602 = vadd.f32 0.0, %v1601
    %v1603 = vpop.f32.mrf.mxu0
    %1604 = vmatprep.mubr.f32.mxu0 0.0
    %1605 = vmatmul.mubr.f32.gmra.mxu0 %v1479
    %v1606 = vpop.f32.mrf.mxu0
    %v1607 = vadd.f32 0.0, %v1606
    %v1608 = vpop.f32.mrf.mxu0
    %1609 = vmatprep.mubr.f32.mxu0 0.0
    %1610 = vmatmul.mubr.f32.gmra.mxu0 %v1482
    %v1611 = vpop.f32.mrf.mxu0
    %v1612 = vadd.f32 0.0, %v1611
    %v1613 = vpop.f32.mrf.mxu0
    %1614 = vmatprep.mubr.f32.mxu0 0.0
    %1615 = vmatmul.mubr.f32.gmra.mxu0 %v1485
    %v1616 = vpop.f32.mrf.mxu0
    %v1617 = vadd.f32 0.0, %v1616
    %v1618 = vpop.f32.mrf.mxu0
    %1619 = vmatprep.mubr.f32.mxu0 0.0
    %1620 = vmatmul.mubr.f32.gmra.mxu0 %v1488
    %v1621 = vpop.f32.mrf.mxu0
    %v1622 = vadd.f32 0.0, %v1621
    %v1623 = vpop.f32.mrf.mxu0
    %1624 = vmatprep.mubr.f32.mxu0 0.0
    %1625 = vmatmul.mubr.f32.gmra.mxu0 %v1491
    %v1626 = vpop.f32.mrf.mxu0
    %v1627 = vadd.f32 0.0, %v1626
    %v1628 = vpop.f32.mrf.mxu0
    %1629 = vmatprep.mubr.f32.mxu0 0.0
    %1630 = vmatmul.mubr.f32.gmra.mxu0 %v1494
    %v1631 = vpop.f32.mrf.mxu0
    %v1632 = vadd.f32 0.0, %v1631
    %v1633 = vpop.f32.mrf.mxu0
    %1634 = vmatprep.mubr.f32.mxu0 0.0
    %1635 = vmatmul.mubr.f32.gmra.mxu0 %v1497
    %v1636 = vpop.f32.mrf.mxu0
    %v1637 = vadd.f32 0.0, %v1636
    %v1638 = vpop.f32.mrf.mxu0
    %1639 = vmatprep.mubr.f32.mxu0 0.0
    %1640 = vmatmul.mubr.f32.gmra.mxu0 %v1500
    %v1641 = vpop.f32.mrf.mxu0
    %v1642 = vadd.f32 0.0, %v1641
    %v1643 = vpop.f32.mrf.mxu0
    %1644 = vmatprep.mubr.f32.mxu0 0.0
    %1645 = vmatmul.mubr.f32.gmra.mxu0 %v1503
    %v1646 = vpop.f32.mrf.mxu0
    %v1647 = vadd.f32 0.0, %v1646
    %v1648 = vpop.f32.mrf.mxu0
    %1649 = vdwg.mxu0
    %v1650 = vld [vmem:[#allocation2 + $0x68] sm:$0xff]
    %v1651 = vld [vmem:[#allocation2 + $0x70] sm:$0xff]
    %v1652 = vld [vmem:[#allocation2 + $0x78] sm:$0xff]
    %v1653 = vld [vmem:[#allocation2 + $0x80] sm:$0xff]
    %v1671 = vrot.slane %v1572, 1
    %v1672 = vrot.slane %v1577, 1
    %v1673 = vsel %vm120, %v1671, %v1672
    %v1674 = vrot.slane %v1582, 1
    %v1675 = vsel %vm120, %v1672, %v1674
    %v1676 = vrot.slane %v1587, 1
    %v1677 = vsel %vm120, %v1674, %v1676
    %v1678 = vrot.slane %v1592, 1
    %v1679 = vsel %vm120, %v1676, %v1678
    %v1680 = vrot.slane %v1597, 1
    %v1681 = vsel %vm120, %v1678, %v1680
    %v1682 = vrot.slane %v1602, 1
    %v1683 = vsel %vm120, %v1680, %v1682
    %v1684 = vrot.slane %v1607, 1
    %v1685 = vsel %vm120, %v1682, %v1684
    %v1686 = vrot.slane 0.0, 1
    %v1687 = vsel %vm120, %v1684, %v1686
    %v1688 = vrot.slane %v1612, 1
    %v1689 = vrot.slane %v1617, 1
    %v1690 = vsel %vm120, %v1688, %v1689
    %v1691 = vrot.slane %v1622, 1
    %v1692 = vsel %vm120, %v1689, %v1691
    %v1693 = vrot.slane %v1627, 1
    %v1694 = vsel %vm120, %v1691, %v1693
    %v1695 = vrot.slane %v1632, 1
    %v1696 = vsel %vm120, %v1693, %v1695
    %v1697 = vrot.slane %v1637, 1
    %v1698 = vsel %vm120, %v1695, %v1697
    %v1699 = vrot.slane %v1642, 1
    %v1700 = vsel %vm120, %v1697, %v1699
    %v1701 = vrot.slane %v1647, 1
    %v1702 = vsel %vm120, %v1699, %v1701
    %v1703 = vsel %vm120, %v1701, %v1686
    %1704 = vrot.lane.b32.xlu0 %v1673, 16
    %v1705 = vpop.permute.xlu0 %1704
    %1706 = vrot.lane.b32.xlu0 %v1675, 16
    %v1707 = vpop.permute.xlu0 %1706
    %1708 = vrot.lane.b32.xlu0 %v1677, 16
    %v1709 = vpop.permute.xlu0 %1708
    %1710 = vrot.lane.b32.xlu0 %v1679, 16
    %v1711 = vpop.permute.xlu0 %1710
    %1712 = vrot.lane.b32.xlu0 %v1681, 16
    %v1713 = vpop.permute.xlu0 %1712
    %1714 = vrot.lane.b32.xlu0 %v1683, 16
    %v1715 = vpop.permute.xlu0 %1714
    %1716 = vrot.lane.b32.xlu0 %v1685, 16
    %v1717 = vpop.permute.xlu0 %1716
    %1718 = vrot.lane.b32.xlu0 %v1687, 16
    %v1719 = vpop.permute.xlu0 %1718
    %1720 = vrot.lane.b32.xlu0 %v1690, 16
    %v1721 = vpop.permute.xlu0 %1720
    %1722 = vrot.lane.b32.xlu0 %v1692, 16
    %v1723 = vpop.permute.xlu0 %1722
    %1724 = vrot.lane.b32.xlu0 %v1694, 16
    %v1725 = vpop.permute.xlu0 %1724
    %1726 = vrot.lane.b32.xlu0 %v1696, 16
    %v1727 = vpop.permute.xlu0 %1726
    %1728 = vrot.lane.b32.xlu0 %v1698, 16
    %v1729 = vpop.permute.xlu0 %1728
    %1730 = vrot.lane.b32.xlu0 %v1700, 16
    %v1731 = vpop.permute.xlu0 %1730
    %1732 = vrot.lane.b32.xlu0 %v1702, 16
    %v1733 = vpop.permute.xlu0 %1732
    %1734 = vrot.lane.b32.xlu0 %v1703, 16
    %v1735 = vpop.permute.xlu0 %1734
    %v1752 = vsel %vm799, %v1572, %v1705
    %v1753 = vsel %vm799, %v1577, %v1707
    %v1754 = vsel %vm799, %v1582, %v1709
    %v1755 = vsel %vm799, %v1587, %v1711
    %v1756 = vsel %vm799, %v1592, %v1713
    %v1757 = vsel %vm799, %v1597, %v1715
    %v1758 = vsel %vm799, %v1602, %v1717
    %v1759 = vsel %vm799, %v1607, %v1719
    %v1760 = vsel %vm799, %v1612, %v1721
    %v1761 = vsel %vm799, %v1617, %v1723
    %v1762 = vsel %vm799, %v1622, %v1725
    %v1763 = vsel %vm799, %v1627, %v1727
    %v1764 = vsel %vm799, %v1632, %v1729
    %v1765 = vsel %vm799, %v1637, %v1731
    %v1766 = vsel %vm799, %v1642, %v1733
    %v1767 = vsel %vm799, %v1647, %v1735
    %v1769 = vsel %vm867, %v1752, 0
    %v1772 = vsel %vm867, %v1753, 0
    %v1775 = vsel %vm867, %v1754, 0
    %v1778 = vsel %vm867, %v1755, 0
    %v1781 = vsel %vm867, %v1756, 0
    %v1784 = vsel %vm867, %v1757, 0
    %v1787 = vsel %vm867, %v1758, 0
    %v1790 = vsel %vm867, %v1759, 0
    %v1793 = vsel %vm867, %v1760, 0
    %v1796 = vsel %vm867, %v1761, 0
    %v1799 = vsel %vm867, %v1762, 0
    %v1802 = vsel %vm867, %v1763, 0
    %v1805 = vsel %vm867, %v1764, 0
    %v1808 = vsel %vm867, %v1765, 0
    %v1811 = vsel %vm867, %v1766, 0
    %v1814 = vsel %vm867, %v1767, 0
    %1816 = vmatprep.subr.mxu0 0.0
    %1817 = vmatpush1.msra.mxu0 0.0
    %1818 = vmatprep.subr.mxu0 0.0
    %1819 = vmatpush1.msra.mxu0 0.0
    %1820 = vmatprep.subr.mxu0 0.0
    %1821 = vmatpush1.msra.mxu0 0.0
    %1822 = vmatprep.subr.mxu0 0.0
    %1823 = vmatpush1.msra.mxu0 0.0
    %1824 = vmatprep.subr.mxu0 0.0
    %1825 = vmatpush1.msra.mxu0 0.0
    %1826 = vmatprep.subr.mxu0 0.0
    %1827 = vmatpush1.msra.mxu0 0.0
    %1828 = vmatprep.subr.mxu0 0.0
    %1829 = vmatpush1.msra.mxu0 0.0
    %1830 = vmatprep.subr.mxu0 0.0
    %1831 = vmatpush1.msra.mxu0 0.0
    %1832 = vmatprep.subr.mxu0 0.0
    %1833 = vmatpush1.msra.mxu0 0.0
    %1834 = vmatprep.subr.mxu0 0.0
    %1835 = vmatpush1.msra.mxu0 0.0
    %1836 = vmatprep.subr.mxu0 0.0
    %1837 = vmatpush1.msra.mxu0 0.0
    %1838 = vmatprep.subr.mxu0 0.0
    %1839 = vmatpush1.msra.mxu0 0.0
    %1840 = vmatprep.subr.mxu0 0.0
    %1841 = vmatpush1.msra.mxu0 %v1653
    %1842 = vmatprep.subr.mxu0 0.0
    %1843 = vmatpush1.msra.mxu0 %v1652
    %1844 = vmatprep.subr.mxu0 0.0
    %1845 = vmatpush1.msra.mxu0 %v1651
    %1846 = vmatprep.subr.mxu0 0.0
    %1847 = vmatpush1.msra.mxu0 %v1650
    %1848 = vmatprep.subr.mxu0 0.0
    %1849 = vmatpush2.msra.mxu0 0.0
    %1850 = vmatprep.subr.mxu0 0.0
    %1851 = vmatpush2.msra.mxu0 0.0
    %1852 = vmatprep.subr.mxu0 0.0
    %1853 = vmatpush2.msra.mxu0 0.0
    %1854 = vmatprep.subr.mxu0 0.0
    %1855 = vmatpush2.msra.mxu0 0.0
    %1856 = vmatprep.subr.mxu0 0.0
    %1857 = vmatpush2.msra.mxu0 0.0
    %1858 = vmatprep.subr.mxu0 0.0
    %1859 = vmatpush2.msra.mxu0 0.0
    %1860 = vmatprep.subr.mxu0 0.0
    %1861 = vmatpush2.msra.mxu0 0.0
    %1862 = vmatprep.subr.mxu0 0.0
    %1863 = vmatpush2.msra.mxu0 0.0
    %1864 = vmatprep.subr.mxu0 0.0
    %1865 = vmatpush2.msra.mxu0 0.0
    %1866 = vmatprep.subr.mxu0 0.0
    %1867 = vmatpush2.msra.mxu0 0.0
    %1868 = vmatprep.subr.mxu0 0.0
    %1869 = vmatpush2.msra.mxu0 0.0
    %1870 = vmatprep.subr.mxu0 0.0
    %1871 = vmatpush2.msra.mxu0 0.0
    %1872 = vmatprep.subr.mxu0 0.0
    %1873 = vmatpush2.msra.mxu0 0.0
    %1874 = vmatprep.subr.mxu0 0.0
    %1875 = vmatpush2.msra.mxu0 0.0
    %1876 = vmatprep.subr.mxu0 0.0
    %1877 = vmatpush2.msra.mxu0 0.0
    %1878 = vmatprep.subr.mxu0 0.0
    %1879 = vmatpush2.msra.mxu0 0.0
    %1880 = vmatprep.mubr.f32.mxu0 0.0
    %1881 = vmatmul.mubr.f32.gmra.mxu0 %v1769
    %v1882 = vpop.f32.mrf.mxu0
    %v1883 = vadd.f32 0.0, %v1882
    %v1884 = vpop.f32.mrf.mxu0
    %1885 = vmatprep.mubr.f32.mxu0 0.0
    %1886 = vmatmul.mubr.f32.gmra.mxu0 %v1772
    %v1887 = vpop.f32.mrf.mxu0
    %v1888 = vadd.f32 0.0, %v1887
    %v1889 = vpop.f32.mrf.mxu0
    %1890 = vmatprep.mubr.f32.mxu0 0.0
    %1891 = vmatmul.mubr.f32.gmra.mxu0 %v1775
    %v1892 = vpop.f32.mrf.mxu0
    %v1893 = vadd.f32 0.0, %v1892
    %v1894 = vpop.f32.mrf.mxu0
    %1895 = vmatprep.mubr.f32.mxu0 0.0
    %1896 = vmatmul.mubr.f32.gmra.mxu0 %v1778
    %v1897 = vpop.f32.mrf.mxu0
    %v1898 = vadd.f32 0.0, %v1897
    %v1899 = vpop.f32.mrf.mxu0
    %1900 = vmatprep.mubr.f32.mxu0 0.0
    %1901 = vmatmul.mubr.f32.gmra.mxu0 %v1781
    %v1902 = vpop.f32.mrf.mxu0
    %v1903 = vadd.f32 0.0, %v1902
    %v1904 = vpop.f32.mrf.mxu0
    %1905 = vmatprep.mubr.f32.mxu0 0.0
    %1906 = vmatmul.mubr.f32.gmra.mxu0 %v1784
    %v1907 = vpop.f32.mrf.mxu0
    %v1908 = vadd.f32 0.0, %v1907
    %v1909 = vpop.f32.mrf.mxu0
    %1910 = vmatprep.mubr.f32.mxu0 0.0
    %1911 = vmatmul.mubr.f32.gmra.mxu0 %v1787
    %v1912 = vpop.f32.mrf.mxu0
    %v1913 = vadd.f32 0.0, %v1912
    %v1914 = vpop.f32.mrf.mxu0
    %1915 = vmatprep.mubr.f32.mxu0 0.0
    %1916 = vmatmul.mubr.f32.gmra.mxu0 %v1790
    %v1917 = vpop.f32.mrf.mxu0
    %v1918 = vadd.f32 0.0, %v1917
    %v1919 = vpop.f32.mrf.mxu0
    %1920 = vmatprep.mubr.f32.mxu0 0.0
    %1921 = vmatmul.mubr.f32.gmra.mxu0 %v1793
    %v1922 = vpop.f32.mrf.mxu0
    %v1923 = vadd.f32 0.0, %v1922
    %v1924 = vpop.f32.mrf.mxu0
    %1925 = vmatprep.mubr.f32.mxu0 0.0
    %1926 = vmatmul.mubr.f32.gmra.mxu0 %v1796
    %v1927 = vpop.f32.mrf.mxu0
    %v1928 = vadd.f32 0.0, %v1927
    %v1929 = vpop.f32.mrf.mxu0
    %1930 = vmatprep.mubr.f32.mxu0 0.0
    %1931 = vmatmul.mubr.f32.gmra.mxu0 %v1799
    %v1932 = vpop.f32.mrf.mxu0
    %v1933 = vadd.f32 0.0, %v1932
    %v1934 = vpop.f32.mrf.mxu0
    %1935 = vmatprep.mubr.f32.mxu0 0.0
    %1936 = vmatmul.mubr.f32.gmra.mxu0 %v1802
    %v1937 = vpop.f32.mrf.mxu0
    %v1938 = vadd.f32 0.0, %v1937
    %v1939 = vpop.f32.mrf.mxu0
    %1940 = vmatprep.mubr.f32.mxu0 0.0
    %1941 = vmatmul.mubr.f32.gmra.mxu0 %v1805
    %v1942 = vpop.f32.mrf.mxu0
    %v1943 = vadd.f32 0.0, %v1942
    %v1944 = vpop.f32.mrf.mxu0
    %1945 = vmatprep.mubr.f32.mxu0 0.0
    %1946 = vmatmul.mubr.f32.gmra.mxu0 %v1808
    %v1947 = vpop.f32.mrf.mxu0
    %v1948 = vadd.f32 0.0, %v1947
    %v1949 = vpop.f32.mrf.mxu0
    %1950 = vmatprep.mubr.f32.mxu0 0.0
    %1951 = vmatmul.mubr.f32.gmra.mxu0 %v1811
    %v1952 = vpop.f32.mrf.mxu0
    %v1953 = vadd.f32 0.0, %v1952
    %v1954 = vpop.f32.mrf.mxu0
    %1955 = vmatprep.mubr.f32.mxu0 0.0
    %1956 = vmatmul.mubr.f32.gmra.mxu0 %v1814
    %v1957 = vpop.f32.mrf.mxu0
    %v1958 = vadd.f32 0.0, %v1957
    %v1959 = vpop.f32.mrf.mxu0
    %1960 = vdwg.mxu0
    %v1961 = vld [vmem:[#allocation2 + $0x88] sm:$0xff]
    %v1962 = vld [vmem:[#allocation2 + $0x90] sm:$0xff]
    %v1963 = vld [vmem:[#allocation2 + $0x98] sm:$0xff]
    %v1964 = vld [vmem:[#allocation2 + $0xa0] sm:$0xff]
    %v1965 = vld [vmem:[#allocation2 + $0xa8] sm:$0xff]
    %v1966 = vld [vmem:[#allocation2 + $0xb0] sm:$0xff]
    %v1967 = vld [vmem:[#allocation2 + $0xb8] sm:$0xff]
    %v1968 = vld [vmem:[#allocation2 + $0xc0] sm:$0xff]
    %v1969 = vld [vmem:[#allocation2 + $0xc8] sm:$0xff]
    %v1970 = vld [vmem:[#allocation2 + $0xd0] sm:$0xff]
    %v1971 = vld [vmem:[#allocation2 + $0xd8] sm:$0xff]
    %v1972 = vld [vmem:[#allocation2 + $0xe0] sm:$0xff]
    %v1973 = vld [vmem:[#allocation2 + $0xe8] sm:$0xff]
    %v1974 = vld [vmem:[#allocation2 + $0xf0] sm:$0xff]
    %v1975 = vld [vmem:[#allocation2 + $0xf8] sm:$0xff]
    %v1976 = vld [vmem:[#allocation2 + $0x100] sm:$0xff]
    %v1977 = vld [vmem:[#allocation2 + $0x108] sm:$0xff]
    %v1978 = vld [vmem:[#allocation2 + $0x110] sm:$0xff]
    %v1995 = vrot.slane %v1883, 4
    %v1996 = vrot.slane %v1888, 4
    %v1997 = vsel %vm63, %v1995, %v1996
    %v1998 = vrot.slane %v1893, 4
    %v1999 = vsel %vm63, %v1996, %v1998
    %v2000 = vrot.slane %v1898, 4
    %v2001 = vsel %vm63, %v1998, %v2000
    %v2002 = vrot.slane %v1903, 4
    %v2003 = vsel %vm63, %v2000, %v2002
    %v2004 = vrot.slane %v1908, 4
    %v2005 = vsel %vm63, %v2002, %v2004
    %v2006 = vrot.slane %v1913, 4
    %v2007 = vsel %vm63, %v2004, %v2006
    %v2008 = vrot.slane %v1918, 4
    %v2009 = vsel %vm63, %v2006, %v2008
    %v2010 = vrot.slane %v1923, 4
    %v2011 = vrot.slane %v1928, 4
    %v2012 = vsel %vm63, %v2010, %v2011
    %v2013 = vrot.slane %v1933, 4
    %v2014 = vsel %vm63, %v2011, %v2013
    %v2015 = vrot.slane %v1938, 4
    %v2016 = vsel %vm63, %v2013, %v2015
    %v2017 = vrot.slane %v1943, 4
    %v2018 = vsel %vm63, %v2015, %v2017
    %v2019 = vrot.slane %v1948, 4
    %v2020 = vsel %vm63, %v2017, %v2019
    %v2021 = vrot.slane %v1953, 4
    %v2022 = vsel %vm63, %v2019, %v2021
    %v2023 = vrot.slane %v1958, 4
    %v2024 = vsel %vm63, %v2021, %v2023
    %v2043 = vsel %vm63, 0.0, %v1995
    %v2044 = vsel %vm63, 0.0, %v2010
    %v2045 = vsel %vm63, %v2008, 0.0
    %v2046 = vsel %vm63, %v2023, 0.0
    %v2051 = vrot.slane %v2043, 1
    %v2052 = vrot.slane %v1997, 1
    %v2053 = vsel %vm120, %v2051, %v2052
    %v2054 = vrot.slane %v1999, 1
    %v2055 = vsel %vm120, %v2052, %v2054
    %v2056 = vrot.slane %v2001, 1
    %v2057 = vsel %vm120, %v2054, %v2056
    %v2058 = vrot.slane %v2003, 1
    %v2059 = vsel %vm120, %v2056, %v2058
    %v2060 = vrot.slane %v2005, 1
    %v2061 = vsel %vm120, %v2058, %v2060
    %v2062 = vrot.slane %v2007, 1
    %v2063 = vsel %vm120, %v2060, %v2062
    %v2064 = vrot.slane %v2009, 1
    %v2065 = vsel %vm120, %v2062, %v2064
    %v2066 = vrot.slane %v2045, 1
    %v2067 = vsel %vm120, %v2064, %v2066
    %v2068 = vrot.slane %v2044, 1
    %v2069 = vrot.slane %v2012, 1
    %v2070 = vsel %vm120, %v2068, %v2069
    %v2071 = vrot.slane %v2014, 1
    %v2072 = vsel %vm120, %v2069, %v2071
    %v2073 = vrot.slane %v2016, 1
    %v2074 = vsel %vm120, %v2071, %v2073
    %v2075 = vrot.slane %v2018, 1
    %v2076 = vsel %vm120, %v2073, %v2075
    %v2077 = vrot.slane %v2020, 1
    %v2078 = vsel %vm120, %v2075, %v2077
    %v2079 = vrot.slane %v2022, 1
    %v2080 = vsel %vm120, %v2077, %v2079
    %v2081 = vrot.slane %v2024, 1
    %v2082 = vsel %vm120, %v2079, %v2081
    %v2083 = vrot.slane %v2046, 1
    %v2084 = vsel %vm120, %v2081, %v2083
    %2085 = vrot.lane.b32.xlu0 %v2053, 16
    %v2086 = vpop.permute.xlu0 %2085
    %2087 = vrot.lane.b32.xlu0 %v2055, 16
    %v2088 = vpop.permute.xlu0 %2087
    %2089 = vrot.lane.b32.xlu0 %v2057, 16
    %v2090 = vpop.permute.xlu0 %2089
    %2091 = vrot.lane.b32.xlu0 %v2059, 16
    %v2092 = vpop.permute.xlu0 %2091
    %2093 = vrot.lane.b32.xlu0 %v2061, 16
    %v2094 = vpop.permute.xlu0 %2093
    %2095 = vrot.lane.b32.xlu0 %v2063, 16
    %v2096 = vpop.permute.xlu0 %2095
    %2097 = vrot.lane.b32.xlu0 %v2065, 16
    %v2098 = vpop.permute.xlu0 %2097
    %2099 = vrot.lane.b32.xlu0 %v2067, 16
    %v2100 = vpop.permute.xlu0 %2099
    %2101 = vrot.lane.b32.xlu0 %v2070, 16
    %v2102 = vpop.permute.xlu0 %2101
    %2103 = vrot.lane.b32.xlu0 %v2072, 16
    %v2104 = vpop.permute.xlu0 %2103
    %2105 = vrot.lane.b32.xlu0 %v2074, 16
    %v2106 = vpop.permute.xlu0 %2105
    %2107 = vrot.lane.b32.xlu0 %v2076, 16
    %v2108 = vpop.permute.xlu0 %2107
    %2109 = vrot.lane.b32.xlu0 %v2078, 16
    %v2110 = vpop.permute.xlu0 %2109
    %2111 = vrot.lane.b32.xlu0 %v2080, 16
    %v2112 = vpop.permute.xlu0 %2111
    %2113 = vrot.lane.b32.xlu0 %v2082, 16
    %v2114 = vpop.permute.xlu0 %2113
    %2115 = vrot.lane.b32.xlu0 %v2084, 16
    %v2116 = vpop.permute.xlu0 %2115
    %v2133 = vrot.slane %v2043, 2
    %v2134 = vrot.slane %v1997, 2
    %v2135 = vsel %vm203, %v2133, %v2134
    %v2136 = vrot.slane %v1999, 2
    %v2137 = vsel %vm203, %v2134, %v2136
    %v2138 = vrot.slane %v2001, 2
    %v2139 = vsel %vm203, %v2136, %v2138
    %v2140 = vrot.slane %v2003, 2
    %v2141 = vsel %vm203, %v2138, %v2140
    %v2142 = vrot.slane %v2005, 2
    %v2143 = vsel %vm203, %v2140, %v2142
    %v2144 = vrot.slane %v2007, 2
    %v2145 = vsel %vm203, %v2142, %v2144
    %v2146 = vrot.slane %v2009, 2
    %v2147 = vsel %vm203, %v2144, %v2146
    %v2148 = vrot.slane %v2045, 2
    %v2149 = vsel %vm203, %v2146, %v2148
    %v2150 = vrot.slane %v2044, 2
    %v2151 = vrot.slane %v2012, 2
    %v2152 = vsel %vm203, %v2150, %v2151
    %v2153 = vrot.slane %v2014, 2
    %v2154 = vsel %vm203, %v2151, %v2153
    %v2155 = vrot.slane %v2016, 2
    %v2156 = vsel %vm203, %v2153, %v2155
    %v2157 = vrot.slane %v2018, 2
    %v2158 = vsel %vm203, %v2155, %v2157
    %v2159 = vrot.slane %v2020, 2
    %v2160 = vsel %vm203, %v2157, %v2159
    %v2161 = vrot.slane %v2022, 2
    %v2162 = vsel %vm203, %v2159, %v2161
    %v2163 = vrot.slane %v2024, 2
    %v2164 = vsel %vm203, %v2161, %v2163
    %v2165 = vrot.slane %v2046, 2
    %v2166 = vsel %vm203, %v2163, %v2165
    %2167 = vrot.lane.b32.xlu0 %v2135, 32
    %v2168 = vpop.permute.xlu0 %2167
    %2169 = vrot.lane.b32.xlu0 %v2137, 32
    %v2170 = vpop.permute.xlu0 %2169
    %2171 = vrot.lane.b32.xlu0 %v2139, 32
    %v2172 = vpop.permute.xlu0 %2171
    %2173 = vrot.lane.b32.xlu0 %v2141, 32
    %v2174 = vpop.permute.xlu0 %2173
    %2175 = vrot.lane.b32.xlu0 %v2143, 32
    %v2176 = vpop.permute.xlu0 %2175
    %2177 = vrot.lane.b32.xlu0 %v2145, 32
    %v2178 = vpop.permute.xlu0 %2177
    %2179 = vrot.lane.b32.xlu0 %v2147, 32
    %v2180 = vpop.permute.xlu0 %2179
    %2181 = vrot.lane.b32.xlu0 %v2149, 32
    %v2182 = vpop.permute.xlu0 %2181
    %2183 = vrot.lane.b32.xlu0 %v2152, 32
    %v2184 = vpop.permute.xlu0 %2183
    %2185 = vrot.lane.b32.xlu0 %v2154, 32
    %v2186 = vpop.permute.xlu0 %2185
    %2187 = vrot.lane.b32.xlu0 %v2156, 32
    %v2188 = vpop.permute.xlu0 %2187
    %2189 = vrot.lane.b32.xlu0 %v2158, 32
    %v2190 = vpop.permute.xlu0 %2189
    %2191 = vrot.lane.b32.xlu0 %v2160, 32
    %v2192 = vpop.permute.xlu0 %2191
    %2193 = vrot.lane.b32.xlu0 %v2162, 32
    %v2194 = vpop.permute.xlu0 %2193
    %2195 = vrot.lane.b32.xlu0 %v2164, 32
    %v2196 = vpop.permute.xlu0 %2195
    %2197 = vrot.lane.b32.xlu0 %v2166, 32
    %v2198 = vpop.permute.xlu0 %2197
    %v2215 = vrot.slane %v2043, 3
    %v2216 = vrot.slane %v1997, 3
    %v2217 = vsel %vm286, %v2215, %v2216
    %v2218 = vrot.slane %v1999, 3
    %v2219 = vsel %vm286, %v2216, %v2218
    %v2220 = vrot.slane %v2001, 3
    %v2221 = vsel %vm286, %v2218, %v2220
    %v2222 = vrot.slane %v2003, 3
    %v2223 = vsel %vm286, %v2220, %v2222
    %v2224 = vrot.slane %v2005, 3
    %v2225 = vsel %vm286, %v2222, %v2224
    %v2226 = vrot.slane %v2007, 3
    %v2227 = vsel %vm286, %v2224, %v2226
    %v2228 = vrot.slane %v2009, 3
    %v2229 = vsel %vm286, %v2226, %v2228
    %v2230 = vrot.slane %v2045, 3
    %v2231 = vsel %vm286, %v2228, %v2230
    %v2232 = vrot.slane %v2044, 3
    %v2233 = vrot.slane %v2012, 3
    %v2234 = vsel %vm286, %v2232, %v2233
    %v2235 = vrot.slane %v2014, 3
    %v2236 = vsel %vm286, %v2233, %v2235
    %v2237 = vrot.slane %v2016, 3
    %v2238 = vsel %vm286, %v2235, %v2237
    %v2239 = vrot.slane %v2018, 3
    %v2240 = vsel %vm286, %v2237, %v2239
    %v2241 = vrot.slane %v2020, 3
    %v2242 = vsel %vm286, %v2239, %v2241
    %v2243 = vrot.slane %v2022, 3
    %v2244 = vsel %vm286, %v2241, %v2243
    %v2245 = vrot.slane %v2024, 3
    %v2246 = vsel %vm286, %v2243, %v2245
    %v2247 = vrot.slane %v2046, 3
    %v2248 = vsel %vm286, %v2245, %v2247
    %2249 = vrot.lane.b32.xlu0 %v2217, 48
    %v2250 = vpop.permute.xlu0 %2249
    %2251 = vrot.lane.b32.xlu0 %v2219, 48
    %v2252 = vpop.permute.xlu0 %2251
    %2253 = vrot.lane.b32.xlu0 %v2221, 48
    %v2254 = vpop.permute.xlu0 %2253
    %2255 = vrot.lane.b32.xlu0 %v2223, 48
    %v2256 = vpop.permute.xlu0 %2255
    %2257 = vrot.lane.b32.xlu0 %v2225, 48
    %v2258 = vpop.permute.xlu0 %2257
    %2259 = vrot.lane.b32.xlu0 %v2227, 48
    %v2260 = vpop.permute.xlu0 %2259
    %2261 = vrot.lane.b32.xlu0 %v2229, 48
    %v2262 = vpop.permute.xlu0 %2261
    %2263 = vrot.lane.b32.xlu0 %v2231, 48
    %v2264 = vpop.permute.xlu0 %2263
    %2265 = vrot.lane.b32.xlu0 %v2234, 48
    %v2266 = vpop.permute.xlu0 %2265
    %2267 = vrot.lane.b32.xlu0 %v2236, 48
    %v2268 = vpop.permute.xlu0 %2267
    %2269 = vrot.lane.b32.xlu0 %v2238, 48
    %v2270 = vpop.permute.xlu0 %2269
    %2271 = vrot.lane.b32.xlu0 %v2240, 48
    %v2272 = vpop.permute.xlu0 %2271
    %2273 = vrot.lane.b32.xlu0 %v2242, 48
    %v2274 = vpop.permute.xlu0 %2273
    %2275 = vrot.lane.b32.xlu0 %v2244, 48
    %v2276 = vpop.permute.xlu0 %2275
    %2277 = vrot.lane.b32.xlu0 %v2246, 48
    %v2278 = vpop.permute.xlu0 %2277
    %2279 = vrot.lane.b32.xlu0 %v2248, 48
    %v2280 = vpop.permute.xlu0 %2279
    %v2297 = vrot.slane %v2043, 4
    %v2298 = vrot.slane %v1997, 4
    %v2299 = vsel %vm63, %v2297, %v2298
    %v2300 = vrot.slane %v1999, 4
    %v2301 = vsel %vm63, %v2298, %v2300
    %v2302 = vrot.slane %v2001, 4
    %v2303 = vsel %vm63, %v2300, %v2302
    %v2304 = vrot.slane %v2003, 4
    %v2305 = vsel %vm63, %v2302, %v2304
    %v2306 = vrot.slane %v2005, 4
    %v2307 = vsel %vm63, %v2304, %v2306
    %v2308 = vrot.slane %v2007, 4
    %v2309 = vsel %vm63, %v2306, %v2308
    %v2310 = vrot.slane %v2009, 4
    %v2311 = vsel %vm63, %v2308, %v2310
    %v2312 = vrot.slane %v2045, 4
    %v2313 = vsel %vm63, %v2310, %v2312
    %v2314 = vrot.slane %v2044, 4
    %v2315 = vrot.slane %v2012, 4
    %v2316 = vsel %vm63, %v2314, %v2315
    %v2317 = vrot.slane %v2014, 4
    %v2318 = vsel %vm63, %v2315, %v2317
    %v2319 = vrot.slane %v2016, 4
    %v2320 = vsel %vm63, %v2317, %v2319
    %v2321 = vrot.slane %v2018, 4
    %v2322 = vsel %vm63, %v2319, %v2321
    %v2323 = vrot.slane %v2020, 4
    %v2324 = vsel %vm63, %v2321, %v2323
    %v2325 = vrot.slane %v2022, 4
    %v2326 = vsel %vm63, %v2323, %v2325
    %v2327 = vrot.slane %v2024, 4
    %v2328 = vsel %vm63, %v2325, %v2327
    %v2329 = vrot.slane %v2046, 4
    %v2330 = vsel %vm63, %v2327, %v2329
    %2331 = vrot.lane.b32.xlu0 %v2299, 64
    %v2332 = vpop.permute.xlu0 %2331
    %2333 = vrot.lane.b32.xlu0 %v2301, 64
    %v2334 = vpop.permute.xlu0 %2333
    %2335 = vrot.lane.b32.xlu0 %v2303, 64
    %v2336 = vpop.permute.xlu0 %2335
    %2337 = vrot.lane.b32.xlu0 %v2305, 64
    %v2338 = vpop.permute.xlu0 %2337
    %2339 = vrot.lane.b32.xlu0 %v2307, 64
    %v2340 = vpop.permute.xlu0 %2339
    %2341 = vrot.lane.b32.xlu0 %v2309, 64
    %v2342 = vpop.permute.xlu0 %2341
    %2343 = vrot.lane.b32.xlu0 %v2311, 64
    %v2344 = vpop.permute.xlu0 %2343
    %2345 = vrot.lane.b32.xlu0 %v2313, 64
    %v2346 = vpop.permute.xlu0 %2345
    %2347 = vrot.lane.b32.xlu0 %v2316, 64
    %v2348 = vpop.permute.xlu0 %2347
    %2349 = vrot.lane.b32.xlu0 %v2318, 64
    %v2350 = vpop.permute.xlu0 %2349
    %2351 = vrot.lane.b32.xlu0 %v2320, 64
    %v2352 = vpop.permute.xlu0 %2351
    %2353 = vrot.lane.b32.xlu0 %v2322, 64
    %v2354 = vpop.permute.xlu0 %2353
    %2355 = vrot.lane.b32.xlu0 %v2324, 64
    %v2356 = vpop.permute.xlu0 %2355
    %2357 = vrot.lane.b32.xlu0 %v2326, 64
    %v2358 = vpop.permute.xlu0 %2357
    %2359 = vrot.lane.b32.xlu0 %v2328, 64
    %v2360 = vpop.permute.xlu0 %2359
    %2361 = vrot.lane.b32.xlu0 %v2330, 64
    %v2362 = vpop.permute.xlu0 %2361
    %v2379 = vrot.slane %v2043, 5
    %v2380 = vrot.slane %v1997, 5
    %v2381 = vsel %vm451, %v2379, %v2380
    %v2382 = vrot.slane %v1999, 5
    %v2383 = vsel %vm451, %v2380, %v2382
    %v2384 = vrot.slane %v2001, 5
    %v2385 = vsel %vm451, %v2382, %v2384
    %v2386 = vrot.slane %v2003, 5
    %v2387 = vsel %vm451, %v2384, %v2386
    %v2388 = vrot.slane %v2005, 5
    %v2389 = vsel %vm451, %v2386, %v2388
    %v2390 = vrot.slane %v2007, 5
    %v2391 = vsel %vm451, %v2388, %v2390
    %v2392 = vrot.slane %v2009, 5
    %v2393 = vsel %vm451, %v2390, %v2392
    %v2394 = vrot.slane %v2045, 5
    %v2395 = vsel %vm451, %v2392, %v2394
    %v2396 = vrot.slane %v2044, 5
    %v2397 = vrot.slane %v2012, 5
    %v2398 = vsel %vm451, %v2396, %v2397
    %v2399 = vrot.slane %v2014, 5
    %v2400 = vsel %vm451, %v2397, %v2399
    %v2401 = vrot.slane %v2016, 5
    %v2402 = vsel %vm451, %v2399, %v2401
    %v2403 = vrot.slane %v2018, 5
    %v2404 = vsel %vm451, %v2401, %v2403
    %v2405 = vrot.slane %v2020, 5
    %v2406 = vsel %vm451, %v2403, %v2405
    %v2407 = vrot.slane %v2022, 5
    %v2408 = vsel %vm451, %v2405, %v2407
    %v2409 = vrot.slane %v2024, 5
    %v2410 = vsel %vm451, %v2407, %v2409
    %v2411 = vrot.slane %v2046, 5
    %v2412 = vsel %vm451, %v2409, %v2411
    %2413 = vrot.lane.b32.xlu0 %v2381, 80
    %v2414 = vpop.permute.xlu0 %2413
    %2415 = vrot.lane.b32.xlu0 %v2383, 80
    %v2416 = vpop.permute.xlu0 %2415
    %2417 = vrot.lane.b32.xlu0 %v2385, 80
    %v2418 = vpop.permute.xlu0 %2417
    %2419 = vrot.lane.b32.xlu0 %v2387, 80
    %v2420 = vpop.permute.xlu0 %2419
    %2421 = vrot.lane.b32.xlu0 %v2389, 80
    %v2422 = vpop.permute.xlu0 %2421
    %2423 = vrot.lane.b32.xlu0 %v2391, 80
    %v2424 = vpop.permute.xlu0 %2423
    %2425 = vrot.lane.b32.xlu0 %v2393, 80
    %v2426 = vpop.permute.xlu0 %2425
    %2427 = vrot.lane.b32.xlu0 %v2395, 80
    %v2428 = vpop.permute.xlu0 %2427
    %2429 = vrot.lane.b32.xlu0 %v2398, 80
    %v2430 = vpop.permute.xlu0 %2429
    %2431 = vrot.lane.b32.xlu0 %v2400, 80
    %v2432 = vpop.permute.xlu0 %2431
    %2433 = vrot.lane.b32.xlu0 %v2402, 80
    %v2434 = vpop.permute.xlu0 %2433
    %2435 = vrot.lane.b32.xlu0 %v2404, 80
    %v2436 = vpop.permute.xlu0 %2435
    %2437 = vrot.lane.b32.xlu0 %v2406, 80
    %v2438 = vpop.permute.xlu0 %2437
    %2439 = vrot.lane.b32.xlu0 %v2408, 80
    %v2440 = vpop.permute.xlu0 %2439
    %2441 = vrot.lane.b32.xlu0 %v2410, 80
    %v2442 = vpop.permute.xlu0 %2441
    %2443 = vrot.lane.b32.xlu0 %v2412, 80
    %v2444 = vpop.permute.xlu0 %2443
    %v2461 = vrot.slane %v2043, 6
    %v2462 = vrot.slane %v1997, 6
    %v2463 = vsel %vm534, %v2461, %v2462
    %v2464 = vrot.slane %v1999, 6
    %v2465 = vsel %vm534, %v2462, %v2464
    %v2466 = vrot.slane %v2001, 6
    %v2467 = vsel %vm534, %v2464, %v2466
    %v2468 = vrot.slane %v2003, 6
    %v2469 = vsel %vm534, %v2466, %v2468
    %v2470 = vrot.slane %v2005, 6
    %v2471 = vsel %vm534, %v2468, %v2470
    %v2472 = vrot.slane %v2007, 6
    %v2473 = vsel %vm534, %v2470, %v2472
    %v2474 = vrot.slane %v2009, 6
    %v2475 = vsel %vm534, %v2472, %v2474
    %v2476 = vrot.slane %v2045, 6
    %v2477 = vsel %vm534, %v2474, %v2476
    %v2478 = vrot.slane %v2044, 6
    %v2479 = vrot.slane %v2012, 6
    %v2480 = vsel %vm534, %v2478, %v2479
    %v2481 = vrot.slane %v2014, 6
    %v2482 = vsel %vm534, %v2479, %v2481
    %v2483 = vrot.slane %v2016, 6
    %v2484 = vsel %vm534, %v2481, %v2483
    %v2485 = vrot.slane %v2018, 6
    %v2486 = vsel %vm534, %v2483, %v2485
    %v2487 = vrot.slane %v2020, 6
    %v2488 = vsel %vm534, %v2485, %v2487
    %v2489 = vrot.slane %v2022, 6
    %v2490 = vsel %vm534, %v2487, %v2489
    %v2491 = vrot.slane %v2024, 6
    %v2492 = vsel %vm534, %v2489, %v2491
    %v2493 = vrot.slane %v2046, 6
    %v2494 = vsel %vm534, %v2491, %v2493
    %2495 = vrot.lane.b32.xlu0 %v2463, 96
    %v2496 = vpop.permute.xlu0 %2495
    %2497 = vrot.lane.b32.xlu0 %v2465, 96
    %v2498 = vpop.permute.xlu0 %2497
    %2499 = vrot.lane.b32.xlu0 %v2467, 96
    %v2500 = vpop.permute.xlu0 %2499
    %2501 = vrot.lane.b32.xlu0 %v2469, 96
    %v2502 = vpop.permute.xlu0 %2501
    %2503 = vrot.lane.b32.xlu0 %v2471, 96
    %v2504 = vpop.permute.xlu0 %2503
    %2505 = vrot.lane.b32.xlu0 %v2473, 96
    %v2506 = vpop.permute.xlu0 %2505
    %2507 = vrot.lane.b32.xlu0 %v2475, 96
    %v2508 = vpop.permute.xlu0 %2507
    %2509 = vrot.lane.b32.xlu0 %v2477, 96
    %v2510 = vpop.permute.xlu0 %2509
    %2511 = vrot.lane.b32.xlu0 %v2480, 96
    %v2512 = vpop.permute.xlu0 %2511
    %2513 = vrot.lane.b32.xlu0 %v2482, 96
    %v2514 = vpop.permute.xlu0 %2513
    %2515 = vrot.lane.b32.xlu0 %v2484, 96
    %v2516 = vpop.permute.xlu0 %2515
    %2517 = vrot.lane.b32.xlu0 %v2486, 96
    %v2518 = vpop.permute.xlu0 %2517
    %2519 = vrot.lane.b32.xlu0 %v2488, 96
    %v2520 = vpop.permute.xlu0 %2519
    %2521 = vrot.lane.b32.xlu0 %v2490, 96
    %v2522 = vpop.permute.xlu0 %2521
    %2523 = vrot.lane.b32.xlu0 %v2492, 96
    %v2524 = vpop.permute.xlu0 %2523
    %2525 = vrot.lane.b32.xlu0 %v2494, 96
    %v2526 = vpop.permute.xlu0 %2525
    %v2543 = vrot.slane %v2043, 7
    %v2544 = vrot.slane %v1997, 7
    %v2545 = vsel %vm617, %v2543, %v2544
    %v2546 = vrot.slane %v1999, 7
    %v2547 = vsel %vm617, %v2544, %v2546
    %v2548 = vrot.slane %v2001, 7
    %v2549 = vsel %vm617, %v2546, %v2548
    %v2550 = vrot.slane %v2003, 7
    %v2551 = vsel %vm617, %v2548, %v2550
    %v2552 = vrot.slane %v2005, 7
    %v2553 = vsel %vm617, %v2550, %v2552
    %v2554 = vrot.slane %v2007, 7
    %v2555 = vsel %vm617, %v2552, %v2554
    %v2556 = vrot.slane %v2009, 7
    %v2557 = vsel %vm617, %v2554, %v2556
    %v2558 = vrot.slane %v2045, 7
    %v2559 = vsel %vm617, %v2556, %v2558
    %v2560 = vrot.slane %v2044, 7
    %v2561 = vrot.slane %v2012, 7
    %v2562 = vsel %vm617, %v2560, %v2561
    %v2563 = vrot.slane %v2014, 7
    %v2564 = vsel %vm617, %v2561, %v2563
    %v2565 = vrot.slane %v2016, 7
    %v2566 = vsel %vm617, %v2563, %v2565
    %v2567 = vrot.slane %v2018, 7
    %v2568 = vsel %vm617, %v2565, %v2567
    %v2569 = vrot.slane %v2020, 7
    %v2570 = vsel %vm617, %v2567, %v2569
    %v2571 = vrot.slane %v2022, 7
    %v2572 = vsel %vm617, %v2569, %v2571
    %v2573 = vrot.slane %v2024, 7
    %v2574 = vsel %vm617, %v2571, %v2573
    %v2575 = vrot.slane %v2046, 7
    %v2576 = vsel %vm617, %v2573, %v2575
    %2577 = vrot.lane.b32.xlu0 %v2545, 112
    %v2578 = vpop.permute.xlu0 %2577
    %2579 = vrot.lane.b32.xlu0 %v2547, 112
    %v2580 = vpop.permute.xlu0 %2579
    %2581 = vrot.lane.b32.xlu0 %v2549, 112
    %v2582 = vpop.permute.xlu0 %2581
    %2583 = vrot.lane.b32.xlu0 %v2551, 112
    %v2584 = vpop.permute.xlu0 %2583
    %2585 = vrot.lane.b32.xlu0 %v2553, 112
    %v2586 = vpop.permute.xlu0 %2585
    %2587 = vrot.lane.b32.xlu0 %v2555, 112
    %v2588 = vpop.permute.xlu0 %2587
    %2589 = vrot.lane.b32.xlu0 %v2557, 112
    %v2590 = vpop.permute.xlu0 %2589
    %2591 = vrot.lane.b32.xlu0 %v2559, 112
    %v2592 = vpop.permute.xlu0 %2591
    %2593 = vrot.lane.b32.xlu0 %v2562, 112
    %v2594 = vpop.permute.xlu0 %2593
    %2595 = vrot.lane.b32.xlu0 %v2564, 112
    %v2596 = vpop.permute.xlu0 %2595
    %2597 = vrot.lane.b32.xlu0 %v2566, 112
    %v2598 = vpop.permute.xlu0 %2597
    %2599 = vrot.lane.b32.xlu0 %v2568, 112
    %v2600 = vpop.permute.xlu0 %2599
    %2601 = vrot.lane.b32.xlu0 %v2570, 112
    %v2602 = vpop.permute.xlu0 %2601
    %2603 = vrot.lane.b32.xlu0 %v2572, 112
    %v2604 = vpop.permute.xlu0 %2603
    %2605 = vrot.lane.b32.xlu0 %v2574, 112
    %v2606 = vpop.permute.xlu0 %2605
    %2607 = vrot.lane.b32.xlu0 %v2576, 112
    %v2608 = vpop.permute.xlu0 %2607
    %v2625 = vsel %vm799, %v2043, %v2086
    %v2626 = vsel %vm799, %v1997, %v2088
    %v2627 = vsel %vm799, %v1999, %v2090
    %v2628 = vsel %vm799, %v2001, %v2092
    %v2629 = vsel %vm799, %v2003, %v2094
    %v2630 = vsel %vm799, %v2005, %v2096
    %v2631 = vsel %vm799, %v2007, %v2098
    %v2632 = vsel %vm799, %v2009, %v2100
    %v2633 = vsel %vm799, %v2044, %v2102
    %v2634 = vsel %vm799, %v2012, %v2104
    %v2635 = vsel %vm799, %v2014, %v2106
    %v2636 = vsel %vm799, %v2016, %v2108
    %v2637 = vsel %vm799, %v2018, %v2110
    %v2638 = vsel %vm799, %v2020, %v2112
    %v2639 = vsel %vm799, %v2022, %v2114
    %v2640 = vsel %vm799, %v2024, %v2116
    %v2641 = vsel %vm867, %v2625, %v2168
    %v2642 = vsel %vm867, %v2626, %v2170
    %v2643 = vsel %vm867, %v2627, %v2172
    %v2644 = vsel %vm867, %v2628, %v2174
    %v2645 = vsel %vm867, %v2629, %v2176
    %v2646 = vsel %vm867, %v2630, %v2178
    %v2647 = vsel %vm867, %v2631, %v2180
    %v2648 = vsel %vm867, %v2632, %v2182
    %v2649 = vsel %vm867, %v2633, %v2184
    %v2650 = vsel %vm867, %v2634, %v2186
    %v2651 = vsel %vm867, %v2635, %v2188
    %v2652 = vsel %vm867, %v2636, %v2190
    %v2653 = vsel %vm867, %v2637, %v2192
    %v2654 = vsel %vm867, %v2638, %v2194
    %v2655 = vsel %vm867, %v2639, %v2196
    %v2656 = vsel %vm867, %v2640, %v2198
    %v2657 = vsel %vm1439, %v2641, %v2250
    %v2658 = vsel %vm1439, %v2642, %v2252
    %v2659 = vsel %vm1439, %v2643, %v2254
    %v2660 = vsel %vm1439, %v2644, %v2256
    %v2661 = vsel %vm1439, %v2645, %v2258
    %v2662 = vsel %vm1439, %v2646, %v2260
    %v2663 = vsel %vm1439, %v2647, %v2262
    %v2664 = vsel %vm1439, %v2648, %v2264
    %v2665 = vsel %vm1439, %v2649, %v2266
    %v2666 = vsel %vm1439, %v2650, %v2268
    %v2667 = vsel %vm1439, %v2651, %v2270
    %v2668 = vsel %vm1439, %v2652, %v2272
    %v2669 = vsel %vm1439, %v2653, %v2274
    %v2670 = vsel %vm1439, %v2654, %v2276
    %v2671 = vsel %vm1439, %v2655, %v2278
    %v2672 = vsel %vm1439, %v2656, %v2280
    %v2673 = vsel %vm1456, %v2657, %v2332
    %v2674 = vsel %vm1456, %v2658, %v2334
    %v2675 = vsel %vm1456, %v2659, %v2336
    %v2676 = vsel %vm1456, %v2660, %v2338
    %v2677 = vsel %vm1456, %v2661, %v2340
    %v2678 = vsel %vm1456, %v2662, %v2342
    %v2679 = vsel %vm1456, %v2663, %v2344
    %v2680 = vsel %vm1456, %v2664, %v2346
    %v2681 = vsel %vm1456, %v2665, %v2348
    %v2682 = vsel %vm1456, %v2666, %v2350
    %v2683 = vsel %vm1456, %v2667, %v2352
    %v2684 = vsel %vm1456, %v2668, %v2354
    %v2685 = vsel %vm1456, %v2669, %v2356
    %v2686 = vsel %vm1456, %v2670, %v2358
    %v2687 = vsel %vm1456, %v2671, %v2360
    %v2688 = vsel %vm1456, %v2672, %v2362
    %vm2689 = vcmask 654336
    %v2690 = vsel %vm2689, %v2673, %v2414
    %v2691 = vsel %vm2689, %v2674, %v2416
    %v2692 = vsel %vm2689, %v2675, %v2418
    %v2693 = vsel %vm2689, %v2676, %v2420
    %v2694 = vsel %vm2689, %v2677, %v2422
    %v2695 = vsel %vm2689, %v2678, %v2424
    %v2696 = vsel %vm2689, %v2679, %v2426
    %v2697 = vsel %vm2689, %v2680, %v2428
    %v2698 = vsel %vm2689, %v2681, %v2430
    %v2699 = vsel %vm2689, %v2682, %v2432
    %v2700 = vsel %vm2689, %v2683, %v2434
    %v2701 = vsel %vm2689, %v2684, %v2436
    %v2702 = vsel %vm2689, %v2685, %v2438
    %v2703 = vsel %vm2689, %v2686, %v2440
    %v2704 = vsel %vm2689, %v2687, %v2442
    %v2705 = vsel %vm2689, %v2688, %v2444
    %vm2706 = vcmask 785408
    %v2707 = vsel %vm2706, %v2690, %v2496
    %v2708 = vsel %vm2706, %v2691, %v2498
    %v2709 = vsel %vm2706, %v2692, %v2500
    %v2710 = vsel %vm2706, %v2693, %v2502
    %v2711 = vsel %vm2706, %v2694, %v2504
    %v2712 = vsel %vm2706, %v2695, %v2506
    %v2713 = vsel %vm2706, %v2696, %v2508
    %v2714 = vsel %vm2706, %v2697, %v2510
    %v2715 = vsel %vm2706, %v2698, %v2512
    %v2716 = vsel %vm2706, %v2699, %v2514
    %v2717 = vsel %vm2706, %v2700, %v2516
    %v2718 = vsel %vm2706, %v2701, %v2518
    %v2719 = vsel %vm2706, %v2702, %v2520
    %v2720 = vsel %vm2706, %v2703, %v2522
    %v2721 = vsel %vm2706, %v2704, %v2524
    %v2722 = vsel %vm2706, %v2705, %v2526
    %vm2723 = vcmask 916480
    %v2724 = vsel %vm2723, %v2707, %v2578
    %v2725 = vsel %vm2723, %v2708, %v2580
    %v2726 = vsel %vm2723, %v2709, %v2582
    %v2727 = vsel %vm2723, %v2710, %v2584
    %v2728 = vsel %vm2723, %v2711, %v2586
    %v2729 = vsel %vm2723, %v2712, %v2588
    %v2730 = vsel %vm2723, %v2713, %v2590
    %v2731 = vsel %vm2723, %v2714, %v2592
    %v2732 = vsel %vm2723, %v2715, %v2594
    %v2733 = vsel %vm2723, %v2716, %v2596
    %v2734 = vsel %vm2723, %v2717, %v2598
    %v2735 = vsel %vm2723, %v2718, %v2600
    %v2736 = vsel %vm2723, %v2719, %v2602
    %v2737 = vsel %vm2723, %v2720, %v2604
    %v2738 = vsel %vm2723, %v2721, %v2606
    %v2739 = vsel %vm2723, %v2722, %v2608
    %v2740 = vsel %vm799, %v1997, 0
    %v2742 = vsel %vm799, %v1999, 0
    %v2744 = vsel %vm799, %v2001, 0
    %v2746 = vsel %vm799, %v2003, 0
    %v2748 = vsel %vm799, %v2005, 0
    %v2750 = vsel %vm799, %v2007, 0
    %v2752 = vsel %vm799, %v2009, 0
    %v2754 = vsel %vm799, %v2045, 0
    %v2756 = vsel %vm799, %v2012, 0
    %v2758 = vsel %vm799, %v2014, 0
    %v2760 = vsel %vm799, %v2016, 0
    %v2762 = vsel %vm799, %v2018, 0
    %v2764 = vsel %vm799, %v2020, 0
    %v2766 = vsel %vm799, %v2022, 0
    %v2768 = vsel %vm799, %v2024, 0
    %v2770 = vsel %vm799, %v2046, 0
    %2772 = vmatprep.subr.mxu0 0.0
    %2773 = vmatpush1.msra.mxu0 %v1976
    %2774 = vmatprep.subr.mxu0 0.0
    %2775 = vmatpush1.msra.mxu0 %v1975
    %2776 = vmatprep.subr.mxu0 0.0
    %2777 = vmatpush1.msra.mxu0 %v1974
    %2778 = vmatprep.subr.mxu0 0.0
    %2779 = vmatpush1.msra.mxu0 %v1973
    %2780 = vmatprep.subr.mxu0 0.0
    %2781 = vmatpush1.msra.mxu0 %v1972
    %2782 = vmatprep.subr.mxu0 0.0
    %2783 = vmatpush1.msra.mxu0 %v1971
    %2784 = vmatprep.subr.mxu0 0.0
    %2785 = vmatpush1.msra.mxu0 %v1970
    %2786 = vmatprep.subr.mxu0 0.0
    %2787 = vmatpush1.msra.mxu0 %v1969
    %2788 = vmatprep.subr.mxu0 0.0
    %2789 = vmatpush1.msra.mxu0 %v1968
    %2790 = vmatprep.subr.mxu0 0.0
    %2791 = vmatpush1.msra.mxu0 %v1967
    %2792 = vmatprep.subr.mxu0 0.0
    %2793 = vmatpush1.msra.mxu0 %v1966
    %2794 = vmatprep.subr.mxu0 0.0
    %2795 = vmatpush1.msra.mxu0 %v1965
    %2796 = vmatprep.subr.mxu0 0.0
    %2797 = vmatpush1.msra.mxu0 %v1964
    %2798 = vmatprep.subr.mxu0 0.0
    %2799 = vmatpush1.msra.mxu0 %v1963
    %2800 = vmatprep.subr.mxu0 0.0
    %2801 = vmatpush1.msra.mxu0 %v1962
    %2802 = vmatprep.subr.mxu0 0.0
    %2803 = vmatpush1.msra.mxu0 %v1961
    %2804 = vmatprep.subr.mxu0 0.0
    %2805 = vmatpush2.msra.mxu0 0.0
    %2806 = vmatprep.subr.mxu0 0.0
    %2807 = vmatpush2.msra.mxu0 0.0
    %2808 = vmatprep.subr.mxu0 0.0
    %2809 = vmatpush2.msra.mxu0 0.0
    %2810 = vmatprep.subr.mxu0 0.0
    %2811 = vmatpush2.msra.mxu0 0.0
    %2812 = vmatprep.subr.mxu0 0.0
    %2813 = vmatpush2.msra.mxu0 0.0
    %2814 = vmatprep.subr.mxu0 0.0
    %2815 = vmatpush2.msra.mxu0 0.0
    %2816 = vmatprep.subr.mxu0 0.0
    %2817 = vmatpush2.msra.mxu0 0.0
    %2818 = vmatprep.subr.mxu0 0.0
    %2819 = vmatpush2.msra.mxu0 0.0
    %2820 = vmatprep.subr.mxu0 0.0
    %2821 = vmatpush2.msra.mxu0 0.0
    %2822 = vmatprep.subr.mxu0 0.0
    %2823 = vmatpush2.msra.mxu0 0.0
    %2824 = vmatprep.subr.mxu0 0.0
    %2825 = vmatpush2.msra.mxu0 0.0
    %2826 = vmatprep.subr.mxu0 0.0
    %2827 = vmatpush2.msra.mxu0 0.0
    %2828 = vmatprep.subr.mxu0 0.0
    %2829 = vmatpush2.msra.mxu0 0.0
    %2830 = vmatprep.subr.mxu0 0.0
    %2831 = vmatpush2.msra.mxu0 0.0
    %2832 = vmatprep.subr.mxu0 0.0
    %2833 = vmatpush2.msra.mxu0 %v1978
    %2834 = vmatprep.subr.mxu0 0.0
    %2835 = vmatpush2.msra.mxu0 %v1977
    %2836 = vmatprep.mubr.f32.mxu0 %v2740
    %2837 = vmatmul.mubr.f32.gmra.mxu0 %v2724
    %v2838 = vpop.f32.mrf.mxu0
    %v2839 = vadd.f32 0.0, %v2838
    %v2840 = vpop.f32.mrf.mxu0
    %2841 = vmatprep.mubr.f32.mxu0 %v2742
    %2842 = vmatmul.mubr.f32.gmra.mxu0 %v2725
    %v2843 = vpop.f32.mrf.mxu0
    %v2844 = vadd.f32 0.0, %v2843
    %v2845 = vpop.f32.mrf.mxu0
    %2846 = vmatprep.mubr.f32.mxu0 %v2744
    %2847 = vmatmul.mubr.f32.gmra.mxu0 %v2726
    %v2848 = vpop.f32.mrf.mxu0
    %v2849 = vadd.f32 0.0, %v2848
    %v2850 = vpop.f32.mrf.mxu0
    %2851 = vmatprep.mubr.f32.mxu0 %v2746
    %2852 = vmatmul.mubr.f32.gmra.mxu0 %v2727
    %v2853 = vpop.f32.mrf.mxu0
    %v2854 = vadd.f32 0.0, %v2853
    %v2855 = vpop.f32.mrf.mxu0
    %2856 = vmatprep.mubr.f32.mxu0 %v2748
    %2857 = vmatmul.mubr.f32.gmra.mxu0 %v2728
    %v2858 = vpop.f32.mrf.mxu0
    %v2859 = vadd.f32 0.0, %v2858
    %v2860 = vpop.f32.mrf.mxu0
    %2861 = vmatprep.mubr.f32.mxu0 %v2750
    %2862 = vmatmul.mubr.f32.gmra.mxu0 %v2729
    %v2863 = vpop.f32.mrf.mxu0
    %v2864 = vadd.f32 0.0, %v2863
    %v2865 = vpop.f32.mrf.mxu0
    %2866 = vmatprep.mubr.f32.mxu0 %v2752
    %2867 = vmatmul.mubr.f32.gmra.mxu0 %v2730
    %v2868 = vpop.f32.mrf.mxu0
    %v2869 = vadd.f32 0.0, %v2868
    %v2870 = vpop.f32.mrf.mxu0
    %2871 = vmatprep.mubr.f32.mxu0 %v2754
    %2872 = vmatmul.mubr.f32.gmra.mxu0 %v2731
    %v2873 = vpop.f32.mrf.mxu0
    %v2874 = vadd.f32 0.0, %v2873
    %v2875 = vpop.f32.mrf.mxu0
    %2876 = vmatprep.mubr.f32.mxu0 %v2756
    %2877 = vmatmul.mubr.f32.gmra.mxu0 %v2732
    %v2878 = vpop.f32.mrf.mxu0
    %v2879 = vadd.f32 0.0, %v2878
    %v2880 = vpop.f32.mrf.mxu0
    %2881 = vmatprep.mubr.f32.mxu0 %v2758
    %2882 = vmatmul.mubr.f32.gmra.mxu0 %v2733
    %v2883 = vpop.f32.mrf.mxu0
    %v2884 = vadd.f32 0.0, %v2883
    %v2885 = vpop.f32.mrf.mxu0
    %2886 = vmatprep.mubr.f32.mxu0 %v2760
    %2887 = vmatmul.mubr.f32.gmra.mxu0 %v2734
    %v2888 = vpop.f32.mrf.mxu0
    %v2889 = vadd.f32 0.0, %v2888
    %v2890 = vpop.f32.mrf.mxu0
    %2891 = vmatprep.mubr.f32.mxu0 %v2762
    %2892 = vmatmul.mubr.f32.gmra.mxu0 %v2735
    %v2893 = vpop.f32.mrf.mxu0
    %v2894 = vadd.f32 0.0, %v2893
    %v2895 = vpop.f32.mrf.mxu0
    %2896 = vmatprep.mubr.f32.mxu0 %v2764
    %2897 = vmatmul.mubr.f32.gmra.mxu0 %v2736
    %v2898 = vpop.f32.mrf.mxu0
    %v2899 = vadd.f32 0.0, %v2898
    %v2900 = vpop.f32.mrf.mxu0
    %2901 = vmatprep.mubr.f32.mxu0 %v2766
    %2902 = vmatmul.mubr.f32.gmra.mxu0 %v2737
    %v2903 = vpop.f32.mrf.mxu0
    %v2904 = vadd.f32 0.0, %v2903
    %v2905 = vpop.f32.mrf.mxu0
    %2906 = vmatprep.mubr.f32.mxu0 %v2768
    %2907 = vmatmul.mubr.f32.gmra.mxu0 %v2738
    %v2908 = vpop.f32.mrf.mxu0
    %v2909 = vadd.f32 0.0, %v2908
    %v2910 = vpop.f32.mrf.mxu0
    %2911 = vmatprep.mubr.f32.mxu0 %v2770
    %2912 = vmatmul.mubr.f32.gmra.mxu0 %v2739
    %v2913 = vpop.f32.mrf.mxu0
    %v2914 = vadd.f32 0.0, %v2913
    %v2915 = vpop.f32.mrf.mxu0
    %2916 = vdwg.mxu0
    %v2917 = vld [vmem:[#allocation2 + $0x118] sm:$0xff]
    %v2918 = vld [vmem:[#allocation2 + $0x120] sm:$0xff]
    %v2919 = vld [vmem:[#allocation2 + $0x128] sm:$0xff]
    %v2920 = vld [vmem:[#allocation2 + $0x130] sm:$0xff]
    %v2921 = vld [vmem:[#allocation2 + $0x138] sm:$0xff]
    %v2922 = vld [vmem:[#allocation2 + $0x140] sm:$0xff]
    %v2923 = vld [vmem:[#allocation2 + $0x148] sm:$0xff]
    %v2924 = vld [vmem:[#allocation2 + $0x150] sm:$0xff]
    %v2941 = vrot.slane %v2839, 7
    %v2942 = vrot.slane %v2844, 7
    %v2943 = vsel %vm617, %v2941, %v2942
    %v2944 = vrot.slane %v2849, 7
    %v2945 = vsel %vm617, %v2942, %v2944
    %v2946 = vrot.slane %v2854, 7
    %v2947 = vsel %vm617, %v2944, %v2946
    %v2948 = vrot.slane %v2859, 7
    %v2949 = vsel %vm617, %v2946, %v2948
    %v2950 = vrot.slane %v2864, 7
    %v2951 = vsel %vm617, %v2948, %v2950
    %v2952 = vrot.slane %v2869, 7
    %v2953 = vsel %vm617, %v2950, %v2952
    %v2954 = vrot.slane %v2874, 7
    %v2955 = vsel %vm617, %v2952, %v2954
    %v2956 = vrot.slane %v2879, 7
    %v2957 = vrot.slane %v2884, 7
    %v2958 = vsel %vm617, %v2956, %v2957
    %v2959 = vrot.slane %v2889, 7
    %v2960 = vsel %vm617, %v2957, %v2959
    %v2961 = vrot.slane %v2894, 7
    %v2962 = vsel %vm617, %v2959, %v2961
    %v2963 = vrot.slane %v2899, 7
    %v2964 = vsel %vm617, %v2961, %v2963
    %v2965 = vrot.slane %v2904, 7
    %v2966 = vsel %vm617, %v2963, %v2965
    %v2967 = vrot.slane %v2909, 7
    %v2968 = vsel %vm617, %v2965, %v2967
    %v2969 = vrot.slane %v2914, 7
    %v2970 = vsel %vm617, %v2967, %v2969
    %v2989 = vsel %vm617, 0.0, %v2941
    %v2990 = vsel %vm617, 0.0, %v2956
    %v2991 = vsel %vm617, %v2954, 0.0
    %v2992 = vsel %vm617, %v2969, 0.0
    %v2997 = vrot.slane %v2989, 1
    %v2998 = vrot.slane %v2943, 1
    %v2999 = vsel %vm120, %v2997, %v2998
    %v3000 = vrot.slane %v2945, 1
    %v3001 = vsel %vm120, %v2998, %v3000
    %v3002 = vrot.slane %v2947, 1
    %v3003 = vsel %vm120, %v3000, %v3002
    %v3004 = vrot.slane %v2949, 1
    %v3005 = vsel %vm120, %v3002, %v3004
    %v3006 = vrot.slane %v2951, 1
    %v3007 = vsel %vm120, %v3004, %v3006
    %v3008 = vrot.slane %v2953, 1
    %v3009 = vsel %vm120, %v3006, %v3008
    %v3010 = vrot.slane %v2955, 1
    %v3011 = vsel %vm120, %v3008, %v3010
    %v3012 = vrot.slane %v2991, 1
    %v3013 = vsel %vm120, %v3010, %v3012
    %v3014 = vrot.slane %v2990, 1
    %v3015 = vrot.slane %v2958, 1
    %v3016 = vsel %vm120, %v3014, %v3015
    %v3017 = vrot.slane %v2960, 1
    %v3018 = vsel %vm120, %v3015, %v3017
    %v3019 = vrot.slane %v2962, 1
    %v3020 = vsel %vm120, %v3017, %v3019
    %v3021 = vrot.slane %v2964, 1
    %v3022 = vsel %vm120, %v3019, %v3021
    %v3023 = vrot.slane %v2966, 1
    %v3024 = vsel %vm120, %v3021, %v3023
    %v3025 = vrot.slane %v2968, 1
    %v3026 = vsel %vm120, %v3023, %v3025
    %v3027 = vrot.slane %v2970, 1
    %v3028 = vsel %vm120, %v3025, %v3027
    %v3029 = vrot.slane %v2992, 1
    %v3030 = vsel %vm120, %v3027, %v3029
    %3031 = vrot.lane.b32.xlu0 %v2999, 16
    %v3032 = vpop.permute.xlu0 %3031
    %3033 = vrot.lane.b32.xlu0 %v3001, 16
    %v3034 = vpop.permute.xlu0 %3033
    %3035 = vrot.lane.b32.xlu0 %v3003, 16
    %v3036 = vpop.permute.xlu0 %3035
    %3037 = vrot.lane.b32.xlu0 %v3005, 16
    %v3038 = vpop.permute.xlu0 %3037
    %3039 = vrot.lane.b32.xlu0 %v3007, 16
    %v3040 = vpop.permute.xlu0 %3039
    %3041 = vrot.lane.b32.xlu0 %v3009, 16
    %v3042 = vpop.permute.xlu0 %3041
    %3043 = vrot.lane.b32.xlu0 %v3011, 16
    %v3044 = vpop.permute.xlu0 %3043
    %3045 = vrot.lane.b32.xlu0 %v3013, 16
    %v3046 = vpop.permute.xlu0 %3045
    %3047 = vrot.lane.b32.xlu0 %v3016, 16
    %v3048 = vpop.permute.xlu0 %3047
    %3049 = vrot.lane.b32.xlu0 %v3018, 16
    %v3050 = vpop.permute.xlu0 %3049
    %3051 = vrot.lane.b32.xlu0 %v3020, 16
    %v3052 = vpop.permute.xlu0 %3051
    %3053 = vrot.lane.b32.xlu0 %v3022, 16
    %v3054 = vpop.permute.xlu0 %3053
    %3055 = vrot.lane.b32.xlu0 %v3024, 16
    %v3056 = vpop.permute.xlu0 %3055
    %3057 = vrot.lane.b32.xlu0 %v3026, 16
    %v3058 = vpop.permute.xlu0 %3057
    %3059 = vrot.lane.b32.xlu0 %v3028, 16
    %v3060 = vpop.permute.xlu0 %3059
    %3061 = vrot.lane.b32.xlu0 %v3030, 16
    %v3062 = vpop.permute.xlu0 %3061
    %v3079 = vrot.slane %v2989, 2
    %v3080 = vrot.slane %v2943, 2
    %v3081 = vsel %vm203, %v3079, %v3080
    %v3082 = vrot.slane %v2945, 2
    %v3083 = vsel %vm203, %v3080, %v3082
    %v3084 = vrot.slane %v2947, 2
    %v3085 = vsel %vm203, %v3082, %v3084
    %v3086 = vrot.slane %v2949, 2
    %v3087 = vsel %vm203, %v3084, %v3086
    %v3088 = vrot.slane %v2951, 2
    %v3089 = vsel %vm203, %v3086, %v3088
    %v3090 = vrot.slane %v2953, 2
    %v3091 = vsel %vm203, %v3088, %v3090
    %v3092 = vrot.slane %v2955, 2
    %v3093 = vsel %vm203, %v3090, %v3092
    %v3094 = vrot.slane %v2991, 2
    %v3095 = vsel %vm203, %v3092, %v3094
    %v3096 = vrot.slane %v2990, 2
    %v3097 = vrot.slane %v2958, 2
    %v3098 = vsel %vm203, %v3096, %v3097
    %v3099 = vrot.slane %v2960, 2
    %v3100 = vsel %vm203, %v3097, %v3099
    %v3101 = vrot.slane %v2962, 2
    %v3102 = vsel %vm203, %v3099, %v3101
    %v3103 = vrot.slane %v2964, 2
    %v3104 = vsel %vm203, %v3101, %v3103
    %v3105 = vrot.slane %v2966, 2
    %v3106 = vsel %vm203, %v3103, %v3105
    %v3107 = vrot.slane %v2968, 2
    %v3108 = vsel %vm203, %v3105, %v3107
    %v3109 = vrot.slane %v2970, 2
    %v3110 = vsel %vm203, %v3107, %v3109
    %v3111 = vrot.slane %v2992, 2
    %v3112 = vsel %vm203, %v3109, %v3111
    %3113 = vrot.lane.b32.xlu0 %v3081, 32
    %v3114 = vpop.permute.xlu0 %3113
    %3115 = vrot.lane.b32.xlu0 %v3083, 32
    %v3116 = vpop.permute.xlu0 %3115
    %3117 = vrot.lane.b32.xlu0 %v3085, 32
    %v3118 = vpop.permute.xlu0 %3117
    %3119 = vrot.lane.b32.xlu0 %v3087, 32
    %v3120 = vpop.permute.xlu0 %3119
    %3121 = vrot.lane.b32.xlu0 %v3089, 32
    %v3122 = vpop.permute.xlu0 %3121
    %3123 = vrot.lane.b32.xlu0 %v3091, 32
    %v3124 = vpop.permute.xlu0 %3123
    %3125 = vrot.lane.b32.xlu0 %v3093, 32
    %v3126 = vpop.permute.xlu0 %3125
    %3127 = vrot.lane.b32.xlu0 %v3095, 32
    %v3128 = vpop.permute.xlu0 %3127
    %3129 = vrot.lane.b32.xlu0 %v3098, 32
    %v3130 = vpop.permute.xlu0 %3129
    %3131 = vrot.lane.b32.xlu0 %v3100, 32
    %v3132 = vpop.permute.xlu0 %3131
    %3133 = vrot.lane.b32.xlu0 %v3102, 32
    %v3134 = vpop.permute.xlu0 %3133
    %3135 = vrot.lane.b32.xlu0 %v3104, 32
    %v3136 = vpop.permute.xlu0 %3135
    %3137 = vrot.lane.b32.xlu0 %v3106, 32
    %v3138 = vpop.permute.xlu0 %3137
    %3139 = vrot.lane.b32.xlu0 %v3108, 32
    %v3140 = vpop.permute.xlu0 %3139
    %3141 = vrot.lane.b32.xlu0 %v3110, 32
    %v3142 = vpop.permute.xlu0 %3141
    %3143 = vrot.lane.b32.xlu0 %v3112, 32
    %v3144 = vpop.permute.xlu0 %3143
    %v3161 = vrot.slane %v2989, 3
    %v3162 = vrot.slane %v2943, 3
    %v3163 = vsel %vm286, %v3161, %v3162
    %v3164 = vrot.slane %v2945, 3
    %v3165 = vsel %vm286, %v3162, %v3164
    %v3166 = vrot.slane %v2947, 3
    %v3167 = vsel %vm286, %v3164, %v3166
    %v3168 = vrot.slane %v2949, 3
    %v3169 = vsel %vm286, %v3166, %v3168
    %v3170 = vrot.slane %v2951, 3
    %v3171 = vsel %vm286, %v3168, %v3170
    %v3172 = vrot.slane %v2953, 3
    %v3173 = vsel %vm286, %v3170, %v3172
    %v3174 = vrot.slane %v2955, 3
    %v3175 = vsel %vm286, %v3172, %v3174
    %v3176 = vrot.slane %v2991, 3
    %v3177 = vsel %vm286, %v3174, %v3176
    %v3178 = vrot.slane %v2990, 3
    %v3179 = vrot.slane %v2958, 3
    %v3180 = vsel %vm286, %v3178, %v3179
    %v3181 = vrot.slane %v2960, 3
    %v3182 = vsel %vm286, %v3179, %v3181
    %v3183 = vrot.slane %v2962, 3
    %v3184 = vsel %vm286, %v3181, %v3183
    %v3185 = vrot.slane %v2964, 3
    %v3186 = vsel %vm286, %v3183, %v3185
    %v3187 = vrot.slane %v2966, 3
    %v3188 = vsel %vm286, %v3185, %v3187
    %v3189 = vrot.slane %v2968, 3
    %v3190 = vsel %vm286, %v3187, %v3189
    %v3191 = vrot.slane %v2970, 3
    %v3192 = vsel %vm286, %v3189, %v3191
    %v3193 = vrot.slane %v2992, 3
    %v3194 = vsel %vm286, %v3191, %v3193
    %3195 = vrot.lane.b32.xlu0 %v3163, 48
    %v3196 = vpop.permute.xlu0 %3195
    %3197 = vrot.lane.b32.xlu0 %v3165, 48
    %v3198 = vpop.permute.xlu0 %3197
    %3199 = vrot.lane.b32.xlu0 %v3167, 48
    %v3200 = vpop.permute.xlu0 %3199
    %3201 = vrot.lane.b32.xlu0 %v3169, 48
    %v3202 = vpop.permute.xlu0 %3201
    %3203 = vrot.lane.b32.xlu0 %v3171, 48
    %v3204 = vpop.permute.xlu0 %3203
    %3205 = vrot.lane.b32.xlu0 %v3173, 48
    %v3206 = vpop.permute.xlu0 %3205
    %3207 = vrot.lane.b32.xlu0 %v3175, 48
    %v3208 = vpop.permute.xlu0 %3207
    %3209 = vrot.lane.b32.xlu0 %v3177, 48
    %v3210 = vpop.permute.xlu0 %3209
    %3211 = vrot.lane.b32.xlu0 %v3180, 48
    %v3212 = vpop.permute.xlu0 %3211
    %3213 = vrot.lane.b32.xlu0 %v3182, 48
    %v3214 = vpop.permute.xlu0 %3213
    %3215 = vrot.lane.b32.xlu0 %v3184, 48
    %v3216 = vpop.permute.xlu0 %3215
    %3217 = vrot.lane.b32.xlu0 %v3186, 48
    %v3218 = vpop.permute.xlu0 %3217
    %3219 = vrot.lane.b32.xlu0 %v3188, 48
    %v3220 = vpop.permute.xlu0 %3219
    %3221 = vrot.lane.b32.xlu0 %v3190, 48
    %v3222 = vpop.permute.xlu0 %3221
    %3223 = vrot.lane.b32.xlu0 %v3192, 48
    %v3224 = vpop.permute.xlu0 %3223
    %3225 = vrot.lane.b32.xlu0 %v3194, 48
    %v3226 = vpop.permute.xlu0 %3225
    %v3243 = vsel %vm799, %v2989, %v3032
    %v3244 = vsel %vm799, %v2943, %v3034
    %v3245 = vsel %vm799, %v2945, %v3036
    %v3246 = vsel %vm799, %v2947, %v3038
    %v3247 = vsel %vm799, %v2949, %v3040
    %v3248 = vsel %vm799, %v2951, %v3042
    %v3249 = vsel %vm799, %v2953, %v3044
    %v3250 = vsel %vm799, %v2955, %v3046
    %v3251 = vsel %vm799, %v2990, %v3048
    %v3252 = vsel %vm799, %v2958, %v3050
    %v3253 = vsel %vm799, %v2960, %v3052
    %v3254 = vsel %vm799, %v2962, %v3054
    %v3255 = vsel %vm799, %v2964, %v3056
    %v3256 = vsel %vm799, %v2966, %v3058
    %v3257 = vsel %vm799, %v2968, %v3060
    %v3258 = vsel %vm799, %v2970, %v3062
    %v3259 = vsel %vm867, %v3243, %v3114
    %v3260 = vsel %vm867, %v3244, %v3116
    %v3261 = vsel %vm867, %v3245, %v3118
    %v3262 = vsel %vm867, %v3246, %v3120
    %v3263 = vsel %vm867, %v3247, %v3122
    %v3264 = vsel %vm867, %v3248, %v3124
    %v3265 = vsel %vm867, %v3249, %v3126
    %v3266 = vsel %vm867, %v3250, %v3128
    %v3267 = vsel %vm867, %v3251, %v3130
    %v3268 = vsel %vm867, %v3252, %v3132
    %v3269 = vsel %vm867, %v3253, %v3134
    %v3270 = vsel %vm867, %v3254, %v3136
    %v3271 = vsel %vm867, %v3255, %v3138
    %v3272 = vsel %vm867, %v3256, %v3140
    %v3273 = vsel %vm867, %v3257, %v3142
    %v3274 = vsel %vm867, %v3258, %v3144
    %v3275 = vsel %vm1439, %v3259, %v3196
    %v3276 = vsel %vm1439, %v3260, %v3198
    %v3277 = vsel %vm1439, %v3261, %v3200
    %v3278 = vsel %vm1439, %v3262, %v3202
    %v3279 = vsel %vm1439, %v3263, %v3204
    %v3280 = vsel %vm1439, %v3264, %v3206
    %v3281 = vsel %vm1439, %v3265, %v3208
    %v3282 = vsel %vm1439, %v3266, %v3210
    %v3283 = vsel %vm1439, %v3267, %v3212
    %v3284 = vsel %vm1439, %v3268, %v3214
    %v3285 = vsel %vm1439, %v3269, %v3216
    %v3286 = vsel %vm1439, %v3270, %v3218
    %v3287 = vsel %vm1439, %v3271, %v3220
    %v3288 = vsel %vm1439, %v3272, %v3222
    %v3289 = vsel %vm1439, %v3273, %v3224
    %v3290 = vsel %vm1439, %v3274, %v3226
    %v3292 = vsel %vm1456, %v3275, 0
    %v3295 = vsel %vm1456, %v3276, 0
    %v3298 = vsel %vm1456, %v3277, 0
    %v3301 = vsel %vm1456, %v3278, 0
    %v3304 = vsel %vm1456, %v3279, 0
    %v3307 = vsel %vm1456, %v3280, 0
    %v3310 = vsel %vm1456, %v3281, 0
    %v3313 = vsel %vm1456, %v3282, 0
    %v3316 = vsel %vm1456, %v3283, 0
    %v3319 = vsel %vm1456, %v3284, 0
    %v3322 = vsel %vm1456, %v3285, 0
    %v3325 = vsel %vm1456, %v3286, 0
    %v3328 = vsel %vm1456, %v3287, 0
    %v3331 = vsel %vm1456, %v3288, 0
    %v3334 = vsel %vm1456, %v3289, 0
    %v3337 = vsel %vm1456, %v3290, 0
    %3339 = vmatprep.subr.mxu0 0.0
    %3340 = vmatpush1.msra.mxu0 0.0
    %3341 = vmatprep.subr.mxu0 0.0
    %3342 = vmatpush1.msra.mxu0 0.0
    %3343 = vmatprep.subr.mxu0 0.0
    %3344 = vmatpush1.msra.mxu0 0.0
    %3345 = vmatprep.subr.mxu0 0.0
    %3346 = vmatpush1.msra.mxu0 0.0
    %3347 = vmatprep.subr.mxu0 0.0
    %3348 = vmatpush1.msra.mxu0 0.0
    %3349 = vmatprep.subr.mxu0 0.0
    %3350 = vmatpush1.msra.mxu0 0.0
    %3351 = vmatprep.subr.mxu0 0.0
    %3352 = vmatpush1.msra.mxu0 0.0
    %3353 = vmatprep.subr.mxu0 0.0
    %3354 = vmatpush1.msra.mxu0 0.0
    %3355 = vmatprep.subr.mxu0 0.0
    %3356 = vmatpush1.msra.mxu0 %v2924
    %3357 = vmatprep.subr.mxu0 0.0
    %3358 = vmatpush1.msra.mxu0 %v2923
    %3359 = vmatprep.subr.mxu0 0.0
    %3360 = vmatpush1.msra.mxu0 %v2922
    %3361 = vmatprep.subr.mxu0 0.0
    %3362 = vmatpush1.msra.mxu0 %v2921
    %3363 = vmatprep.subr.mxu0 0.0
    %3364 = vmatpush1.msra.mxu0 %v2920
    %3365 = vmatprep.subr.mxu0 0.0
    %3366 = vmatpush1.msra.mxu0 %v2919
    %3367 = vmatprep.subr.mxu0 0.0
    %3368 = vmatpush1.msra.mxu0 %v2918
    %3369 = vmatprep.subr.mxu0 0.0
    %3370 = vmatpush1.msra.mxu0 %v2917
    %3371 = vmatprep.subr.mxu0 0.0
    %3372 = vmatpush2.msra.mxu0 0.0
    %3373 = vmatprep.subr.mxu0 0.0
    %3374 = vmatpush2.msra.mxu0 0.0
    %3375 = vmatprep.subr.mxu0 0.0
    %3376 = vmatpush2.msra.mxu0 0.0
    %3377 = vmatprep.subr.mxu0 0.0
    %3378 = vmatpush2.msra.mxu0 0.0
    %3379 = vmatprep.subr.mxu0 0.0
    %3380 = vmatpush2.msra.mxu0 0.0
    %3381 = vmatprep.subr.mxu0 0.0
    %3382 = vmatpush2.msra.mxu0 0.0
    %3383 = vmatprep.subr.mxu0 0.0
    %3384 = vmatpush2.msra.mxu0 0.0
    %3385 = vmatprep.subr.mxu0 0.0
    %3386 = vmatpush2.msra.mxu0 0.0
    %3387 = vmatprep.subr.mxu0 0.0
    %3388 = vmatpush2.msra.mxu0 0.0
    %3389 = vmatprep.subr.mxu0 0.0
    %3390 = vmatpush2.msra.mxu0 0.0
    %3391 = vmatprep.subr.mxu0 0.0
    %3392 = vmatpush2.msra.mxu0 0.0
    %3393 = vmatprep.subr.mxu0 0.0
    %3394 = vmatpush2.msra.mxu0 0.0
    %3395 = vmatprep.subr.mxu0 0.0
    %3396 = vmatpush2.msra.mxu0 0.0
    %3397 = vmatprep.subr.mxu0 0.0
    %3398 = vmatpush2.msra.mxu0 0.0
    %3399 = vmatprep.subr.mxu0 0.0
    %3400 = vmatpush2.msra.mxu0 0.0
    %3401 = vmatprep.subr.mxu0 0.0
    %3402 = vmatpush2.msra.mxu0 0.0
    %3403 = vmatprep.mubr.f32.mxu0 0.0
    %3404 = vmatmul.mubr.f32.gmra.mxu0 %v3292
    %v3405 = vpop.f32.mrf.mxu0
    %v3406 = vadd.f32 0.0, %v3405
    %v3407 = vpop.f32.mrf.mxu0
    %3408 = vmatprep.mubr.f32.mxu0 0.0
    %3409 = vmatmul.mubr.f32.gmra.mxu0 %v3295
    %v3410 = vpop.f32.mrf.mxu0
    %v3411 = vadd.f32 0.0, %v3410
    %v3412 = vpop.f32.mrf.mxu0
    %3413 = vmatprep.mubr.f32.mxu0 0.0
    %3414 = vmatmul.mubr.f32.gmra.mxu0 %v3298
    %v3415 = vpop.f32.mrf.mxu0
    %v3416 = vadd.f32 0.0, %v3415
    %v3417 = vpop.f32.mrf.mxu0
    %3418 = vmatprep.mubr.f32.mxu0 0.0
    %3419 = vmatmul.mubr.f32.gmra.mxu0 %v3301
    %v3420 = vpop.f32.mrf.mxu0
    %v3421 = vadd.f32 0.0, %v3420
    %v3422 = vpop.f32.mrf.mxu0
    %3423 = vmatprep.mubr.f32.mxu0 0.0
    %3424 = vmatmul.mubr.f32.gmra.mxu0 %v3304
    %v3425 = vpop.f32.mrf.mxu0
    %v3426 = vadd.f32 0.0, %v3425
    %v3427 = vpop.f32.mrf.mxu0
    %3428 = vmatprep.mubr.f32.mxu0 0.0
    %3429 = vmatmul.mubr.f32.gmra.mxu0 %v3307
    %v3430 = vpop.f32.mrf.mxu0
    %v3431 = vadd.f32 0.0, %v3430
    %v3432 = vpop.f32.mrf.mxu0
    %3433 = vmatprep.mubr.f32.mxu0 0.0
    %3434 = vmatmul.mubr.f32.gmra.mxu0 %v3310
    %v3435 = vpop.f32.mrf.mxu0
    %v3436 = vadd.f32 0.0, %v3435
    %v3437 = vpop.f32.mrf.mxu0
    %3438 = vmatprep.mubr.f32.mxu0 0.0
    %3439 = vmatmul.mubr.f32.gmra.mxu0 %v3313
    %v3440 = vpop.f32.mrf.mxu0
    %v3441 = vadd.f32 0.0, %v3440
    %v3442 = vpop.f32.mrf.mxu0
    %3443 = vmatprep.mubr.f32.mxu0 0.0
    %3444 = vmatmul.mubr.f32.gmra.mxu0 %v3316
    %v3445 = vpop.f32.mrf.mxu0
    %v3446 = vadd.f32 0.0, %v3445
    %v3447 = vpop.f32.mrf.mxu0
    %3448 = vmatprep.mubr.f32.mxu0 0.0
    %3449 = vmatmul.mubr.f32.gmra.mxu0 %v3319
    %v3450 = vpop.f32.mrf.mxu0
    %v3451 = vadd.f32 0.0, %v3450
    %v3452 = vpop.f32.mrf.mxu0
    %3453 = vmatprep.mubr.f32.mxu0 0.0
    %3454 = vmatmul.mubr.f32.gmra.mxu0 %v3322
    %v3455 = vpop.f32.mrf.mxu0
    %v3456 = vadd.f32 0.0, %v3455
    %v3457 = vpop.f32.mrf.mxu0
    %3458 = vmatprep.mubr.f32.mxu0 0.0
    %3459 = vmatmul.mubr.f32.gmra.mxu0 %v3325
    %v3460 = vpop.f32.mrf.mxu0
    %v3461 = vadd.f32 0.0, %v3460
    %v3462 = vpop.f32.mrf.mxu0
    %3463 = vmatprep.mubr.f32.mxu0 0.0
    %3464 = vmatmul.mubr.f32.gmra.mxu0 %v3328
    %v3465 = vpop.f32.mrf.mxu0
    %v3466 = vadd.f32 0.0, %v3465
    %v3467 = vpop.f32.mrf.mxu0
    %3468 = vmatprep.mubr.f32.mxu0 0.0
    %3469 = vmatmul.mubr.f32.gmra.mxu0 %v3331
    %v3470 = vpop.f32.mrf.mxu0
    %v3471 = vadd.f32 0.0, %v3470
    %v3472 = vpop.f32.mrf.mxu0
    %3473 = vmatprep.mubr.f32.mxu0 0.0
    %3474 = vmatmul.mubr.f32.gmra.mxu0 %v3334
    %v3475 = vpop.f32.mrf.mxu0
    %v3476 = vadd.f32 0.0, %v3475
    %v3477 = vpop.f32.mrf.mxu0
    %3478 = vmatprep.mubr.f32.mxu0 0.0
    %3479 = vmatmul.mubr.f32.gmra.mxu0 %v3337
    %v3480 = vpop.f32.mrf.mxu0
    %v3481 = vadd.f32 0.0, %v3480
    %v3482 = vpop.f32.mrf.mxu0
    %3483 = vdwg.mxu0
    %v3484 = vld [vmem:[#allocation2 + $0x158] sm:$0xff]
    %v3485 = vld [vmem:[#allocation2 + $0x160] sm:$0xff]
    %v3486 = vld [vmem:[#allocation2 + $0x168] sm:$0xff]
    %v3487 = vld [vmem:[#allocation2 + $0x170] sm:$0xff]
    %v3504 = vrot.slane %v3406, 1
    %v3505 = vrot.slane %v3411, 1
    %v3506 = vsel %vm120, %v3504, %v3505
    %v3507 = vrot.slane %v3416, 1
    %v3508 = vsel %vm120, %v3505, %v3507
    %v3509 = vrot.slane %v3421, 1
    %v3510 = vsel %vm120, %v3507, %v3509
    %v3511 = vrot.slane %v3426, 1
    %v3512 = vsel %vm120, %v3509, %v3511
    %v3513 = vrot.slane %v3431, 1
    %v3514 = vsel %vm120, %v3511, %v3513
    %v3515 = vrot.slane %v3436, 1
    %v3516 = vsel %vm120, %v3513, %v3515
    %v3517 = vrot.slane %v3441, 1
    %v3518 = vsel %vm120, %v3515, %v3517
    %v3519 = vsel %vm120, %v3517, %v1686
    %v3520 = vrot.slane %v3446, 1
    %v3521 = vrot.slane %v3451, 1
    %v3522 = vsel %vm120, %v3520, %v3521
    %v3523 = vrot.slane %v3456, 1
    %v3524 = vsel %vm120, %v3521, %v3523
    %v3525 = vrot.slane %v3461, 1
    %v3526 = vsel %vm120, %v3523, %v3525
    %v3527 = vrot.slane %v3466, 1
    %v3528 = vsel %vm120, %v3525, %v3527
    %v3529 = vrot.slane %v3471, 1
    %v3530 = vsel %vm120, %v3527, %v3529
    %v3531 = vrot.slane %v3476, 1
    %v3532 = vsel %vm120, %v3529, %v3531
    %v3533 = vrot.slane %v3481, 1
    %v3534 = vsel %vm120, %v3531, %v3533
    %v3535 = vsel %vm120, %v3533, %v1686
    %3536 = vrot.lane.b32.xlu0 %v3506, 16
    %v3537 = vpop.permute.xlu0 %3536
    %3538 = vrot.lane.b32.xlu0 %v3508, 16
    %v3539 = vpop.permute.xlu0 %3538
    %3540 = vrot.lane.b32.xlu0 %v3510, 16
    %v3541 = vpop.permute.xlu0 %3540
    %3542 = vrot.lane.b32.xlu0 %v3512, 16
    %v3543 = vpop.permute.xlu0 %3542
    %3544 = vrot.lane.b32.xlu0 %v3514, 16
    %v3545 = vpop.permute.xlu0 %3544
    %3546 = vrot.lane.b32.xlu0 %v3516, 16
    %v3547 = vpop.permute.xlu0 %3546
    %3548 = vrot.lane.b32.xlu0 %v3518, 16
    %v3549 = vpop.permute.xlu0 %3548
    %3550 = vrot.lane.b32.xlu0 %v3519, 16
    %v3551 = vpop.permute.xlu0 %3550
    %3552 = vrot.lane.b32.xlu0 %v3522, 16
    %v3553 = vpop.permute.xlu0 %3552
    %3554 = vrot.lane.b32.xlu0 %v3524, 16
    %v3555 = vpop.permute.xlu0 %3554
    %3556 = vrot.lane.b32.xlu0 %v3526, 16
    %v3557 = vpop.permute.xlu0 %3556
    %3558 = vrot.lane.b32.xlu0 %v3528, 16
    %v3559 = vpop.permute.xlu0 %3558
    %3560 = vrot.lane.b32.xlu0 %v3530, 16
    %v3561 = vpop.permute.xlu0 %3560
    %3562 = vrot.lane.b32.xlu0 %v3532, 16
    %v3563 = vpop.permute.xlu0 %3562
    %3564 = vrot.lane.b32.xlu0 %v3534, 16
    %v3565 = vpop.permute.xlu0 %3564
    %3566 = vrot.lane.b32.xlu0 %v3535, 16
    %v3567 = vpop.permute.xlu0 %3566
    %v3584 = vsel %vm799, %v3406, %v3537
    %v3585 = vsel %vm799, %v3411, %v3539
    %v3586 = vsel %vm799, %v3416, %v3541
    %v3587 = vsel %vm799, %v3421, %v3543
    %v3588 = vsel %vm799, %v3426, %v3545
    %v3589 = vsel %vm799, %v3431, %v3547
    %v3590 = vsel %vm799, %v3436, %v3549
    %v3591 = vsel %vm799, %v3441, %v3551
    %v3592 = vsel %vm799, %v3446, %v3553
    %v3593 = vsel %vm799, %v3451, %v3555
    %v3594 = vsel %vm799, %v3456, %v3557
    %v3595 = vsel %vm799, %v3461, %v3559
    %v3596 = vsel %vm799, %v3466, %v3561
    %v3597 = vsel %vm799, %v3471, %v3563
    %v3598 = vsel %vm799, %v3476, %v3565
    %v3599 = vsel %vm799, %v3481, %v3567
    %v3601 = vsel %vm867, %v3584, 0
    %v3604 = vsel %vm867, %v3585, 0
    %v3607 = vsel %vm867, %v3586, 0
    %v3610 = vsel %vm867, %v3587, 0
    %v3613 = vsel %vm867, %v3588, 0
    %v3616 = vsel %vm867, %v3589, 0
    %v3619 = vsel %vm867, %v3590, 0
    %v3622 = vsel %vm867, %v3591, 0
    %v3625 = vsel %vm867, %v3592, 0
    %v3628 = vsel %vm867, %v3593, 0
    %v3631 = vsel %vm867, %v3594, 0
    %v3634 = vsel %vm867, %v3595, 0
    %v3637 = vsel %vm867, %v3596, 0
    %v3640 = vsel %vm867, %v3597, 0
    %v3643 = vsel %vm867, %v3598, 0
    %v3646 = vsel %vm867, %v3599, 0
    %3648 = vmatprep.subr.mxu0 0.0
    %3649 = vmatpush1.msra.mxu0 0.0
    %3650 = vmatprep.subr.mxu0 0.0
    %3651 = vmatpush1.msra.mxu0 0.0
    %3652 = vmatprep.subr.mxu0 0.0
    %3653 = vmatpush1.msra.mxu0 0.0
    %3654 = vmatprep.subr.mxu0 0.0
    %3655 = vmatpush1.msra.mxu0 0.0
    %3656 = vmatprep.subr.mxu0 0.0
    %3657 = vmatpush1.msra.mxu0 0.0
    %3658 = vmatprep.subr.mxu0 0.0
    %3659 = vmatpush1.msra.mxu0 0.0
    %3660 = vmatprep.subr.mxu0 0.0
    %3661 = vmatpush1.msra.mxu0 0.0
    %3662 = vmatprep.subr.mxu0 0.0
    %3663 = vmatpush1.msra.mxu0 0.0
    %3664 = vmatprep.subr.mxu0 0.0
    %3665 = vmatpush1.msra.mxu0 0.0
    %3666 = vmatprep.subr.mxu0 0.0
    %3667 = vmatpush1.msra.mxu0 0.0
    %3668 = vmatprep.subr.mxu0 0.0
    %3669 = vmatpush1.msra.mxu0 0.0
    %3670 = vmatprep.subr.mxu0 0.0
    %3671 = vmatpush1.msra.mxu0 0.0
    %3672 = vmatprep.subr.mxu0 0.0
    %3673 = vmatpush1.msra.mxu0 %v3487
    %3674 = vmatprep.subr.mxu0 0.0
    %3675 = vmatpush1.msra.mxu0 %v3486
    %3676 = vmatprep.subr.mxu0 0.0
    %3677 = vmatpush1.msra.mxu0 %v3485
    %3678 = vmatprep.subr.mxu0 0.0
    %3679 = vmatpush1.msra.mxu0 %v3484
    %3680 = vmatprep.subr.mxu0 0.0
    %3681 = vmatpush2.msra.mxu0 0.0
    %3682 = vmatprep.subr.mxu0 0.0
    %3683 = vmatpush2.msra.mxu0 0.0
    %3684 = vmatprep.subr.mxu0 0.0
    %3685 = vmatpush2.msra.mxu0 0.0
    %3686 = vmatprep.subr.mxu0 0.0
    %3687 = vmatpush2.msra.mxu0 0.0
    %3688 = vmatprep.subr.mxu0 0.0
    %3689 = vmatpush2.msra.mxu0 0.0
    %3690 = vmatprep.subr.mxu0 0.0
    %3691 = vmatpush2.msra.mxu0 0.0
    %3692 = vmatprep.subr.mxu0 0.0
    %3693 = vmatpush2.msra.mxu0 0.0
    %3694 = vmatprep.subr.mxu0 0.0
    %3695 = vmatpush2.msra.mxu0 0.0
    %3696 = vmatprep.subr.mxu0 0.0
    %3697 = vmatpush2.msra.mxu0 0.0
    %3698 = vmatprep.subr.mxu0 0.0
    %3699 = vmatpush2.msra.mxu0 0.0
    %3700 = vmatprep.subr.mxu0 0.0
    %3701 = vmatpush2.msra.mxu0 0.0
    %3702 = vmatprep.subr.mxu0 0.0
    %3703 = vmatpush2.msra.mxu0 0.0
    %3704 = vmatprep.subr.mxu0 0.0
    %3705 = vmatpush2.msra.mxu0 0.0
    %3706 = vmatprep.subr.mxu0 0.0
    %3707 = vmatpush2.msra.mxu0 0.0
    %3708 = vmatprep.subr.mxu0 0.0
    %3709 = vmatpush2.msra.mxu0 0.0
    %3710 = vmatprep.subr.mxu0 0.0
    %3711 = vmatpush2.msra.mxu0 0.0
    %3712 = vmatprep.mubr.f32.mxu0 0.0
    %3713 = vmatmul.mubr.f32.gmra.mxu0 %v3601
    %v3714 = vpop.f32.mrf.mxu0
    %v3715 = vadd.f32 0.0, %v3714
    %v3716 = vpop.f32.mrf.mxu0
    %3717 = vmatprep.mubr.f32.mxu0 0.0
    %3718 = vmatmul.mubr.f32.gmra.mxu0 %v3604
    %v3719 = vpop.f32.mrf.mxu0
    %v3720 = vadd.f32 0.0, %v3719
    %v3721 = vpop.f32.mrf.mxu0
    %3722 = vmatprep.mubr.f32.mxu0 0.0
    %3723 = vmatmul.mubr.f32.gmra.mxu0 %v3607
    %v3724 = vpop.f32.mrf.mxu0
    %v3725 = vadd.f32 0.0, %v3724
    %v3726 = vpop.f32.mrf.mxu0
    %3727 = vmatprep.mubr.f32.mxu0 0.0
    %3728 = vmatmul.mubr.f32.gmra.mxu0 %v3610
    %v3729 = vpop.f32.mrf.mxu0
    %v3730 = vadd.f32 0.0, %v3729
    %v3731 = vpop.f32.mrf.mxu0
    %3732 = vmatprep.mubr.f32.mxu0 0.0
    %3733 = vmatmul.mubr.f32.gmra.mxu0 %v3613
    %v3734 = vpop.f32.mrf.mxu0
    %v3735 = vadd.f32 0.0, %v3734
    %v3736 = vpop.f32.mrf.mxu0
    %3737 = vmatprep.mubr.f32.mxu0 0.0
    %3738 = vmatmul.mubr.f32.gmra.mxu0 %v3616
    %v3739 = vpop.f32.mrf.mxu0
    %v3740 = vadd.f32 0.0, %v3739
    %v3741 = vpop.f32.mrf.mxu0
    %3742 = vmatprep.mubr.f32.mxu0 0.0
    %3743 = vmatmul.mubr.f32.gmra.mxu0 %v3619
    %v3744 = vpop.f32.mrf.mxu0
    %v3745 = vadd.f32 0.0, %v3744
    %v3746 = vpop.f32.mrf.mxu0
    %3747 = vmatprep.mubr.f32.mxu0 0.0
    %3748 = vmatmul.mubr.f32.gmra.mxu0 %v3622
    %v3749 = vpop.f32.mrf.mxu0
    %v3750 = vadd.f32 0.0, %v3749
    %v3751 = vpop.f32.mrf.mxu0
    %3752 = vmatprep.mubr.f32.mxu0 0.0
    %3753 = vmatmul.mubr.f32.gmra.mxu0 %v3625
    %v3754 = vpop.f32.mrf.mxu0
    %v3755 = vadd.f32 0.0, %v3754
    %v3756 = vpop.f32.mrf.mxu0
    %3757 = vmatprep.mubr.f32.mxu0 0.0
    %3758 = vmatmul.mubr.f32.gmra.mxu0 %v3628
    %v3759 = vpop.f32.mrf.mxu0
    %v3760 = vadd.f32 0.0, %v3759
    %v3761 = vpop.f32.mrf.mxu0
    %3762 = vmatprep.mubr.f32.mxu0 0.0
    %3763 = vmatmul.mubr.f32.gmra.mxu0 %v3631
    %v3764 = vpop.f32.mrf.mxu0
    %v3765 = vadd.f32 0.0, %v3764
    %v3766 = vpop.f32.mrf.mxu0
    %3767 = vmatprep.mubr.f32.mxu0 0.0
    %3768 = vmatmul.mubr.f32.gmra.mxu0 %v3634
    %v3769 = vpop.f32.mrf.mxu0
    %v3770 = vadd.f32 0.0, %v3769
    %v3771 = vpop.f32.mrf.mxu0
    %3772 = vmatprep.mubr.f32.mxu0 0.0
    %3773 = vmatmul.mubr.f32.gmra.mxu0 %v3637
    %v3774 = vpop.f32.mrf.mxu0
    %v3775 = vadd.f32 0.0, %v3774
    %v3776 = vpop.f32.mrf.mxu0
    %3777 = vmatprep.mubr.f32.mxu0 0.0
    %3778 = vmatmul.mubr.f32.gmra.mxu0 %v3640
    %v3779 = vpop.f32.mrf.mxu0
    %v3780 = vadd.f32 0.0, %v3779
    %v3781 = vpop.f32.mrf.mxu0
    %3782 = vmatprep.mubr.f32.mxu0 0.0
    %3783 = vmatmul.mubr.f32.gmra.mxu0 %v3643
    %v3784 = vpop.f32.mrf.mxu0
    %v3785 = vadd.f32 0.0, %v3784
    %v3786 = vpop.f32.mrf.mxu0
    %3787 = vmatprep.mubr.f32.mxu0 0.0
    %3788 = vmatmul.mubr.f32.gmra.mxu0 %v3646
    %v3789 = vpop.f32.mrf.mxu0
    %v3790 = vadd.f32 0.0, %v3789
    %v3791 = vpop.f32.mrf.mxu0
    %3792 = vdwg.mxu0
    %v3793 = vld [vmem:[#allocation2 + $0x178] sm:$0xff]
    %v3794 = vld [vmem:[#allocation2 + $0x180] sm:$0xff]
    %v3795 = vld [vmem:[#allocation2 + $0x188] sm:$0xff]
    %v3796 = vld [vmem:[#allocation2 + $0x190] sm:$0xff]
    %v3797 = vld [vmem:[#allocation2 + $0x198] sm:$0xff]
    %v3798 = vld [vmem:[#allocation2 + $0x1a0] sm:$0xff]
    %v3799 = vld [vmem:[#allocation2 + $0x1a8] sm:$0xff]
    %v3800 = vld [vmem:[#allocation2 + $0x1b0] sm:$0xff]
    %v3801 = vld [vmem:[#allocation2 + $0x1b8] sm:$0xff]
    %v3802 = vld [vmem:[#allocation2 + $0x1c0] sm:$0xff]
    %v3803 = vld [vmem:[#allocation2 + $0x1c8] sm:$0xff]
    %v3804 = vld [vmem:[#allocation2 + $0x1d0] sm:$0xff]
    %v3805 = vld [vmem:[#allocation2 + $0x1d8] sm:$0xff]
    %v3806 = vld [vmem:[#allocation2 + $0x1e0] sm:$0xff]
    %v3807 = vld [vmem:[#allocation2 + $0x1e8] sm:$0xff]
    %v3808 = vld [vmem:[#allocation2 + $0x1f0] sm:$0xff]
    %v3809 = vld [vmem:[#allocation2 + $0x1f8] sm:$0xff]
    %v3810 = vld [vmem:[#allocation2 + $0x200] sm:$0xff]
    %v3827 = vrot.slane %v3715, 4
    %v3828 = vrot.slane %v3720, 4
    %v3829 = vsel %vm63, %v3827, %v3828
    %v3830 = vrot.slane %v3725, 4
    %v3831 = vsel %vm63, %v3828, %v3830
    %v3832 = vrot.slane %v3730, 4
    %v3833 = vsel %vm63, %v3830, %v3832
    %v3834 = vrot.slane %v3735, 4
    %v3835 = vsel %vm63, %v3832, %v3834
    %v3836 = vrot.slane %v3740, 4
    %v3837 = vsel %vm63, %v3834, %v3836
    %v3838 = vrot.slane %v3745, 4
    %v3839 = vsel %vm63, %v3836, %v3838
    %v3840 = vrot.slane %v3750, 4
    %v3841 = vsel %vm63, %v3838, %v3840
    %v3842 = vrot.slane %v3755, 4
    %v3843 = vrot.slane %v3760, 4
    %v3844 = vsel %vm63, %v3842, %v3843
    %v3845 = vrot.slane %v3765, 4
    %v3846 = vsel %vm63, %v3843, %v3845
    %v3847 = vrot.slane %v3770, 4
    %v3848 = vsel %vm63, %v3845, %v3847
    %v3849 = vrot.slane %v3775, 4
    %v3850 = vsel %vm63, %v3847, %v3849
    %v3851 = vrot.slane %v3780, 4
    %v3852 = vsel %vm63, %v3849, %v3851
    %v3853 = vrot.slane %v3785, 4
    %v3854 = vsel %vm63, %v3851, %v3853
    %v3855 = vrot.slane %v3790, 4
    %v3856 = vsel %vm63, %v3853, %v3855
    %v3875 = vsel %vm63, 0.0, %v3827
    %v3876 = vsel %vm63, 0.0, %v3842
    %v3877 = vsel %vm63, %v3840, 0.0
    %v3878 = vsel %vm63, %v3855, 0.0
    %v3883 = vrot.slane %v3875, 1
    %v3884 = vrot.slane %v3829, 1
    %v3885 = vsel %vm120, %v3883, %v3884
    %v3886 = vrot.slane %v3831, 1
    %v3887 = vsel %vm120, %v3884, %v3886
    %v3888 = vrot.slane %v3833, 1
    %v3889 = vsel %vm120, %v3886, %v3888
    %v3890 = vrot.slane %v3835, 1
    %v3891 = vsel %vm120, %v3888, %v3890
    %v3892 = vrot.slane %v3837, 1
    %v3893 = vsel %vm120, %v3890, %v3892
    %v3894 = vrot.slane %v3839, 1
    %v3895 = vsel %vm120, %v3892, %v3894
    %v3896 = vrot.slane %v3841, 1
    %v3897 = vsel %vm120, %v3894, %v3896
    %v3898 = vrot.slane %v3877, 1
    %v3899 = vsel %vm120, %v3896, %v3898
    %v3900 = vrot.slane %v3876, 1
    %v3901 = vrot.slane %v3844, 1
    %v3902 = vsel %vm120, %v3900, %v3901
    %v3903 = vrot.slane %v3846, 1
    %v3904 = vsel %vm120, %v3901, %v3903
    %v3905 = vrot.slane %v3848, 1
    %v3906 = vsel %vm120, %v3903, %v3905
    %v3907 = vrot.slane %v3850, 1
    %v3908 = vsel %vm120, %v3905, %v3907
    %v3909 = vrot.slane %v3852, 1
    %v3910 = vsel %vm120, %v3907, %v3909
    %v3911 = vrot.slane %v3854, 1
    %v3912 = vsel %vm120, %v3909, %v3911
    %v3913 = vrot.slane %v3856, 1
    %v3914 = vsel %vm120, %v3911, %v3913
    %v3915 = vrot.slane %v3878, 1
    %v3916 = vsel %vm120, %v3913, %v3915
    %3917 = vrot.lane.b32.xlu0 %v3885, 16
    %v3918 = vpop.permute.xlu0 %3917
    %3919 = vrot.lane.b32.xlu0 %v3887, 16
    %v3920 = vpop.permute.xlu0 %3919
    %3921 = vrot.lane.b32.xlu0 %v3889, 16
    %v3922 = vpop.permute.xlu0 %3921
    %3923 = vrot.lane.b32.xlu0 %v3891, 16
    %v3924 = vpop.permute.xlu0 %3923
    %3925 = vrot.lane.b32.xlu0 %v3893, 16
    %v3926 = vpop.permute.xlu0 %3925
    %3927 = vrot.lane.b32.xlu0 %v3895, 16
    %v3928 = vpop.permute.xlu0 %3927
    %3929 = vrot.lane.b32.xlu0 %v3897, 16
    %v3930 = vpop.permute.xlu0 %3929
    %3931 = vrot.lane.b32.xlu0 %v3899, 16
    %v3932 = vpop.permute.xlu0 %3931
    %3933 = vrot.lane.b32.xlu0 %v3902, 16
    %v3934 = vpop.permute.xlu0 %3933
    %3935 = vrot.lane.b32.xlu0 %v3904, 16
    %v3936 = vpop.permute.xlu0 %3935
    %3937 = vrot.lane.b32.xlu0 %v3906, 16
    %v3938 = vpop.permute.xlu0 %3937
    %3939 = vrot.lane.b32.xlu0 %v3908, 16
    %v3940 = vpop.permute.xlu0 %3939
    %3941 = vrot.lane.b32.xlu0 %v3910, 16
    %v3942 = vpop.permute.xlu0 %3941
    %3943 = vrot.lane.b32.xlu0 %v3912, 16
    %v3944 = vpop.permute.xlu0 %3943
    %3945 = vrot.lane.b32.xlu0 %v3914, 16
    %v3946 = vpop.permute.xlu0 %3945
    %3947 = vrot.lane.b32.xlu0 %v3916, 16
    %v3948 = vpop.permute.xlu0 %3947
    %v3965 = vrot.slane %v3875, 2
    %v3966 = vrot.slane %v3829, 2
    %v3967 = vsel %vm203, %v3965, %v3966
    %v3968 = vrot.slane %v3831, 2
    %v3969 = vsel %vm203, %v3966, %v3968
    %v3970 = vrot.slane %v3833, 2
    %v3971 = vsel %vm203, %v3968, %v3970
    %v3972 = vrot.slane %v3835, 2
    %v3973 = vsel %vm203, %v3970, %v3972
    %v3974 = vrot.slane %v3837, 2
    %v3975 = vsel %vm203, %v3972, %v3974
    %v3976 = vrot.slane %v3839, 2
    %v3977 = vsel %vm203, %v3974, %v3976
    %v3978 = vrot.slane %v3841, 2
    %v3979 = vsel %vm203, %v3976, %v3978
    %v3980 = vrot.slane %v3877, 2
    %v3981 = vsel %vm203, %v3978, %v3980
    %v3982 = vrot.slane %v3876, 2
    %v3983 = vrot.slane %v3844, 2
    %v3984 = vsel %vm203, %v3982, %v3983
    %v3985 = vrot.slane %v3846, 2
    %v3986 = vsel %vm203, %v3983, %v3985
    %v3987 = vrot.slane %v3848, 2
    %v3988 = vsel %vm203, %v3985, %v3987
    %v3989 = vrot.slane %v3850, 2
    %v3990 = vsel %vm203, %v3987, %v3989
    %v3991 = vrot.slane %v3852, 2
    %v3992 = vsel %vm203, %v3989, %v3991
    %v3993 = vrot.slane %v3854, 2
    %v3994 = vsel %vm203, %v3991, %v3993
    %v3995 = vrot.slane %v3856, 2
    %v3996 = vsel %vm203, %v3993, %v3995
    %v3997 = vrot.slane %v3878, 2
    %v3998 = vsel %vm203, %v3995, %v3997
    %3999 = vrot.lane.b32.xlu0 %v3967, 32
    %v4000 = vpop.permute.xlu0 %3999
    %4001 = vrot.lane.b32.xlu0 %v3969, 32
    %v4002 = vpop.permute.xlu0 %4001
    %4003 = vrot.lane.b32.xlu0 %v3971, 32
    %v4004 = vpop.permute.xlu0 %4003
    %4005 = vrot.lane.b32.xlu0 %v3973, 32
    %v4006 = vpop.permute.xlu0 %4005
    %4007 = vrot.lane.b32.xlu0 %v3975, 32
    %v4008 = vpop.permute.xlu0 %4007
    %4009 = vrot.lane.b32.xlu0 %v3977, 32
    %v4010 = vpop.permute.xlu0 %4009
    %4011 = vrot.lane.b32.xlu0 %v3979, 32
    %v4012 = vpop.permute.xlu0 %4011
    %4013 = vrot.lane.b32.xlu0 %v3981, 32
    %v4014 = vpop.permute.xlu0 %4013
    %4015 = vrot.lane.b32.xlu0 %v3984, 32
    %v4016 = vpop.permute.xlu0 %4015
    %4017 = vrot.lane.b32.xlu0 %v3986, 32
    %v4018 = vpop.permute.xlu0 %4017
    %4019 = vrot.lane.b32.xlu0 %v3988, 32
    %v4020 = vpop.permute.xlu0 %4019
    %4021 = vrot.lane.b32.xlu0 %v3990, 32
    %v4022 = vpop.permute.xlu0 %4021
    %4023 = vrot.lane.b32.xlu0 %v3992, 32
    %v4024 = vpop.permute.xlu0 %4023
    %4025 = vrot.lane.b32.xlu0 %v3994, 32
    %v4026 = vpop.permute.xlu0 %4025
    %4027 = vrot.lane.b32.xlu0 %v3996, 32
    %v4028 = vpop.permute.xlu0 %4027
    %4029 = vrot.lane.b32.xlu0 %v3998, 32
    %v4030 = vpop.permute.xlu0 %4029
    %v4047 = vrot.slane %v3875, 3
    %v4048 = vrot.slane %v3829, 3
    %v4049 = vsel %vm286, %v4047, %v4048
    %v4050 = vrot.slane %v3831, 3
    %v4051 = vsel %vm286, %v4048, %v4050
    %v4052 = vrot.slane %v3833, 3
    %v4053 = vsel %vm286, %v4050, %v4052
    %v4054 = vrot.slane %v3835, 3
    %v4055 = vsel %vm286, %v4052, %v4054
    %v4056 = vrot.slane %v3837, 3
    %v4057 = vsel %vm286, %v4054, %v4056
    %v4058 = vrot.slane %v3839, 3
    %v4059 = vsel %vm286, %v4056, %v4058
    %v4060 = vrot.slane %v3841, 3
    %v4061 = vsel %vm286, %v4058, %v4060
    %v4062 = vrot.slane %v3877, 3
    %v4063 = vsel %vm286, %v4060, %v4062
    %v4064 = vrot.slane %v3876, 3
    %v4065 = vrot.slane %v3844, 3
    %v4066 = vsel %vm286, %v4064, %v4065
    %v4067 = vrot.slane %v3846, 3
    %v4068 = vsel %vm286, %v4065, %v4067
    %v4069 = vrot.slane %v3848, 3
    %v4070 = vsel %vm286, %v4067, %v4069
    %v4071 = vrot.slane %v3850, 3
    %v4072 = vsel %vm286, %v4069, %v4071
    %v4073 = vrot.slane %v3852, 3
    %v4074 = vsel %vm286, %v4071, %v4073
    %v4075 = vrot.slane %v3854, 3
    %v4076 = vsel %vm286, %v4073, %v4075
    %v4077 = vrot.slane %v3856, 3
    %v4078 = vsel %vm286, %v4075, %v4077
    %v4079 = vrot.slane %v3878, 3
    %v4080 = vsel %vm286, %v4077, %v4079
    %4081 = vrot.lane.b32.xlu0 %v4049, 48
    %v4082 = vpop.permute.xlu0 %4081
    %4083 = vrot.lane.b32.xlu0 %v4051, 48
    %v4084 = vpop.permute.xlu0 %4083
    %4085 = vrot.lane.b32.xlu0 %v4053, 48
    %v4086 = vpop.permute.xlu0 %4085
    %4087 = vrot.lane.b32.xlu0 %v4055, 48
    %v4088 = vpop.permute.xlu0 %4087
    %4089 = vrot.lane.b32.xlu0 %v4057, 48
    %v4090 = vpop.permute.xlu0 %4089
    %4091 = vrot.lane.b32.xlu0 %v4059, 48
    %v4092 = vpop.permute.xlu0 %4091
    %4093 = vrot.lane.b32.xlu0 %v4061, 48
    %v4094 = vpop.permute.xlu0 %4093
    %4095 = vrot.lane.b32.xlu0 %v4063, 48
    %v4096 = vpop.permute.xlu0 %4095
    %4097 = vrot.lane.b32.xlu0 %v4066, 48
    %v4098 = vpop.permute.xlu0 %4097
    %4099 = vrot.lane.b32.xlu0 %v4068, 48
    %v4100 = vpop.permute.xlu0 %4099
    %4101 = vrot.lane.b32.xlu0 %v4070, 48
    %v4102 = vpop.permute.xlu0 %4101
    %4103 = vrot.lane.b32.xlu0 %v4072, 48
    %v4104 = vpop.permute.xlu0 %4103
    %4105 = vrot.lane.b32.xlu0 %v4074, 48
    %v4106 = vpop.permute.xlu0 %4105
    %4107 = vrot.lane.b32.xlu0 %v4076, 48
    %v4108 = vpop.permute.xlu0 %4107
    %4109 = vrot.lane.b32.xlu0 %v4078, 48
    %v4110 = vpop.permute.xlu0 %4109
    %4111 = vrot.lane.b32.xlu0 %v4080, 48
    %v4112 = vpop.permute.xlu0 %4111
    %v4129 = vrot.slane %v3875, 4
    %v4130 = vrot.slane %v3829, 4
    %v4131 = vsel %vm63, %v4129, %v4130
    %v4132 = vrot.slane %v3831, 4
    %v4133 = vsel %vm63, %v4130, %v4132
    %v4134 = vrot.slane %v3833, 4
    %v4135 = vsel %vm63, %v4132, %v4134
    %v4136 = vrot.slane %v3835, 4
    %v4137 = vsel %vm63, %v4134, %v4136
    %v4138 = vrot.slane %v3837, 4
    %v4139 = vsel %vm63, %v4136, %v4138
    %v4140 = vrot.slane %v3839, 4
    %v4141 = vsel %vm63, %v4138, %v4140
    %v4142 = vrot.slane %v3841, 4
    %v4143 = vsel %vm63, %v4140, %v4142
    %v4144 = vrot.slane %v3877, 4
    %v4145 = vsel %vm63, %v4142, %v4144
    %v4146 = vrot.slane %v3876, 4
    %v4147 = vrot.slane %v3844, 4
    %v4148 = vsel %vm63, %v4146, %v4147
    %v4149 = vrot.slane %v3846, 4
    %v4150 = vsel %vm63, %v4147, %v4149
    %v4151 = vrot.slane %v3848, 4
    %v4152 = vsel %vm63, %v4149, %v4151
    %v4153 = vrot.slane %v3850, 4
    %v4154 = vsel %vm63, %v4151, %v4153
    %v4155 = vrot.slane %v3852, 4
    %v4156 = vsel %vm63, %v4153, %v4155
    %v4157 = vrot.slane %v3854, 4
    %v4158 = vsel %vm63, %v4155, %v4157
    %v4159 = vrot.slane %v3856, 4
    %v4160 = vsel %vm63, %v4157, %v4159
    %v4161 = vrot.slane %v3878, 4
    %v4162 = vsel %vm63, %v4159, %v4161
    %4163 = vrot.lane.b32.xlu0 %v4131, 64
    %v4164 = vpop.permute.xlu0 %4163
    %4165 = vrot.lane.b32.xlu0 %v4133, 64
    %v4166 = vpop.permute.xlu0 %4165
    %4167 = vrot.lane.b32.xlu0 %v4135, 64
    %v4168 = vpop.permute.xlu0 %4167
    %4169 = vrot.lane.b32.xlu0 %v4137, 64
    %v4170 = vpop.permute.xlu0 %4169
    %4171 = vrot.lane.b32.xlu0 %v4139, 64
    %v4172 = vpop.permute.xlu0 %4171
    %4173 = vrot.lane.b32.xlu0 %v4141, 64
    %v4174 = vpop.permute.xlu0 %4173
    %4175 = vrot.lane.b32.xlu0 %v4143, 64
    %v4176 = vpop.permute.xlu0 %4175
    %4177 = vrot.lane.b32.xlu0 %v4145, 64
    %v4178 = vpop.permute.xlu0 %4177
    %4179 = vrot.lane.b32.xlu0 %v4148, 64
    %v4180 = vpop.permute.xlu0 %4179
    %4181 = vrot.lane.b32.xlu0 %v4150, 64
    %v4182 = vpop.permute.xlu0 %4181
    %4183 = vrot.lane.b32.xlu0 %v4152, 64
    %v4184 = vpop.permute.xlu0 %4183
    %4185 = vrot.lane.b32.xlu0 %v4154, 64
    %v4186 = vpop.permute.xlu0 %4185
    %4187 = vrot.lane.b32.xlu0 %v4156, 64
    %v4188 = vpop.permute.xlu0 %4187
    %4189 = vrot.lane.b32.xlu0 %v4158, 64
    %v4190 = vpop.permute.xlu0 %4189
    %4191 = vrot.lane.b32.xlu0 %v4160, 64
    %v4192 = vpop.permute.xlu0 %4191
    %4193 = vrot.lane.b32.xlu0 %v4162, 64
    %v4194 = vpop.permute.xlu0 %4193
    %v4211 = vrot.slane %v3875, 5
    %v4212 = vrot.slane %v3829, 5
    %v4213 = vsel %vm451, %v4211, %v4212
    %v4214 = vrot.slane %v3831, 5
    %v4215 = vsel %vm451, %v4212, %v4214
    %v4216 = vrot.slane %v3833, 5
    %v4217 = vsel %vm451, %v4214, %v4216
    %v4218 = vrot.slane %v3835, 5
    %v4219 = vsel %vm451, %v4216, %v4218
    %v4220 = vrot.slane %v3837, 5
    %v4221 = vsel %vm451, %v4218, %v4220
    %v4222 = vrot.slane %v3839, 5
    %v4223 = vsel %vm451, %v4220, %v4222
    %v4224 = vrot.slane %v3841, 5
    %v4225 = vsel %vm451, %v4222, %v4224
    %v4226 = vrot.slane %v3877, 5
    %v4227 = vsel %vm451, %v4224, %v4226
    %v4228 = vrot.slane %v3876, 5
    %v4229 = vrot.slane %v3844, 5
    %v4230 = vsel %vm451, %v4228, %v4229
    %v4231 = vrot.slane %v3846, 5
    %v4232 = vsel %vm451, %v4229, %v4231
    %v4233 = vrot.slane %v3848, 5
    %v4234 = vsel %vm451, %v4231, %v4233
    %v4235 = vrot.slane %v3850, 5
    %v4236 = vsel %vm451, %v4233, %v4235
    %v4237 = vrot.slane %v3852, 5
    %v4238 = vsel %vm451, %v4235, %v4237
    %v4239 = vrot.slane %v3854, 5
    %v4240 = vsel %vm451, %v4237, %v4239
    %v4241 = vrot.slane %v3856, 5
    %v4242 = vsel %vm451, %v4239, %v4241
    %v4243 = vrot.slane %v3878, 5
    %v4244 = vsel %vm451, %v4241, %v4243
    %4245 = vrot.lane.b32.xlu0 %v4213, 80
    %v4246 = vpop.permute.xlu0 %4245
    %4247 = vrot.lane.b32.xlu0 %v4215, 80
    %v4248 = vpop.permute.xlu0 %4247
    %4249 = vrot.lane.b32.xlu0 %v4217, 80
    %v4250 = vpop.permute.xlu0 %4249
    %4251 = vrot.lane.b32.xlu0 %v4219, 80
    %v4252 = vpop.permute.xlu0 %4251
    %4253 = vrot.lane.b32.xlu0 %v4221, 80
    %v4254 = vpop.permute.xlu0 %4253
    %4255 = vrot.lane.b32.xlu0 %v4223, 80
    %v4256 = vpop.permute.xlu0 %4255
    %4257 = vrot.lane.b32.xlu0 %v4225, 80
    %v4258 = vpop.permute.xlu0 %4257
    %4259 = vrot.lane.b32.xlu0 %v4227, 80
    %v4260 = vpop.permute.xlu0 %4259
    %4261 = vrot.lane.b32.xlu0 %v4230, 80
    %v4262 = vpop.permute.xlu0 %4261
    %4263 = vrot.lane.b32.xlu0 %v4232, 80
    %v4264 = vpop.permute.xlu0 %4263
    %4265 = vrot.lane.b32.xlu0 %v4234, 80
    %v4266 = vpop.permute.xlu0 %4265
    %4267 = vrot.lane.b32.xlu0 %v4236, 80
    %v4268 = vpop.permute.xlu0 %4267
    %4269 = vrot.lane.b32.xlu0 %v4238, 80
    %v4270 = vpop.permute.xlu0 %4269
    %4271 = vrot.lane.b32.xlu0 %v4240, 80
    %v4272 = vpop.permute.xlu0 %4271
    %4273 = vrot.lane.b32.xlu0 %v4242, 80
    %v4274 = vpop.permute.xlu0 %4273
    %4275 = vrot.lane.b32.xlu0 %v4244, 80
    %v4276 = vpop.permute.xlu0 %4275
    %v4293 = vrot.slane %v3875, 6
    %v4294 = vrot.slane %v3829, 6
    %v4295 = vsel %vm534, %v4293, %v4294
    %v4296 = vrot.slane %v3831, 6
    %v4297 = vsel %vm534, %v4294, %v4296
    %v4298 = vrot.slane %v3833, 6
    %v4299 = vsel %vm534, %v4296, %v4298
    %v4300 = vrot.slane %v3835, 6
    %v4301 = vsel %vm534, %v4298, %v4300
    %v4302 = vrot.slane %v3837, 6
    %v4303 = vsel %vm534, %v4300, %v4302
    %v4304 = vrot.slane %v3839, 6
    %v4305 = vsel %vm534, %v4302, %v4304
    %v4306 = vrot.slane %v3841, 6
    %v4307 = vsel %vm534, %v4304, %v4306
    %v4308 = vrot.slane %v3877, 6
    %v4309 = vsel %vm534, %v4306, %v4308
    %v4310 = vrot.slane %v3876, 6
    %v4311 = vrot.slane %v3844, 6
    %v4312 = vsel %vm534, %v4310, %v4311
    %v4313 = vrot.slane %v3846, 6
    %v4314 = vsel %vm534, %v4311, %v4313
    %v4315 = vrot.slane %v3848, 6
    %v4316 = vsel %vm534, %v4313, %v4315
    %v4317 = vrot.slane %v3850, 6
    %v4318 = vsel %vm534, %v4315, %v4317
    %v4319 = vrot.slane %v3852, 6
    %v4320 = vsel %vm534, %v4317, %v4319
    %v4321 = vrot.slane %v3854, 6
    %v4322 = vsel %vm534, %v4319, %v4321
    %v4323 = vrot.slane %v3856, 6
    %v4324 = vsel %vm534, %v4321, %v4323
    %v4325 = vrot.slane %v3878, 6
    %v4326 = vsel %vm534, %v4323, %v4325
    %4327 = vrot.lane.b32.xlu0 %v4295, 96
    %v4328 = vpop.permute.xlu0 %4327
    %4329 = vrot.lane.b32.xlu0 %v4297, 96
    %v4330 = vpop.permute.xlu0 %4329
    %4331 = vrot.lane.b32.xlu0 %v4299, 96
    %v4332 = vpop.permute.xlu0 %4331
    %4333 = vrot.lane.b32.xlu0 %v4301, 96
    %v4334 = vpop.permute.xlu0 %4333
    %4335 = vrot.lane.b32.xlu0 %v4303, 96
    %v4336 = vpop.permute.xlu0 %4335
    %4337 = vrot.lane.b32.xlu0 %v4305, 96
    %v4338 = vpop.permute.xlu0 %4337
    %4339 = vrot.lane.b32.xlu0 %v4307, 96
    %v4340 = vpop.permute.xlu0 %4339
    %4341 = vrot.lane.b32.xlu0 %v4309, 96
    %v4342 = vpop.permute.xlu0 %4341
    %4343 = vrot.lane.b32.xlu0 %v4312, 96
    %v4344 = vpop.permute.xlu0 %4343
    %4345 = vrot.lane.b32.xlu0 %v4314, 96
    %v4346 = vpop.permute.xlu0 %4345
    %4347 = vrot.lane.b32.xlu0 %v4316, 96
    %v4348 = vpop.permute.xlu0 %4347
    %4349 = vrot.lane.b32.xlu0 %v4318, 96
    %v4350 = vpop.permute.xlu0 %4349
    %4351 = vrot.lane.b32.xlu0 %v4320, 96
    %v4352 = vpop.permute.xlu0 %4351
    %4353 = vrot.lane.b32.xlu0 %v4322, 96
    %v4354 = vpop.permute.xlu0 %4353
    %4355 = vrot.lane.b32.xlu0 %v4324, 96
    %v4356 = vpop.permute.xlu0 %4355
    %4357 = vrot.lane.b32.xlu0 %v4326, 96
    %v4358 = vpop.permute.xlu0 %4357
    %v4375 = vrot.slane %v3875, 7
    %v4376 = vrot.slane %v3829, 7
    %v4377 = vsel %vm617, %v4375, %v4376
    %v4378 = vrot.slane %v3831, 7
    %v4379 = vsel %vm617, %v4376, %v4378
    %v4380 = vrot.slane %v3833, 7
    %v4381 = vsel %vm617, %v4378, %v4380
    %v4382 = vrot.slane %v3835, 7
    %v4383 = vsel %vm617, %v4380, %v4382
    %v4384 = vrot.slane %v3837, 7
    %v4385 = vsel %vm617, %v4382, %v4384
    %v4386 = vrot.slane %v3839, 7
    %v4387 = vsel %vm617, %v4384, %v4386
    %v4388 = vrot.slane %v3841, 7
    %v4389 = vsel %vm617, %v4386, %v4388
    %v4390 = vrot.slane %v3877, 7
    %v4391 = vsel %vm617, %v4388, %v4390
    %v4392 = vrot.slane %v3876, 7
    %v4393 = vrot.slane %v3844, 7
    %v4394 = vsel %vm617, %v4392, %v4393
    %v4395 = vrot.slane %v3846, 7
    %v4396 = vsel %vm617, %v4393, %v4395
    %v4397 = vrot.slane %v3848, 7
    %v4398 = vsel %vm617, %v4395, %v4397
    %v4399 = vrot.slane %v3850, 7
    %v4400 = vsel %vm617, %v4397, %v4399
    %v4401 = vrot.slane %v3852, 7
    %v4402 = vsel %vm617, %v4399, %v4401
    %v4403 = vrot.slane %v3854, 7
    %v4404 = vsel %vm617, %v4401, %v4403
    %v4405 = vrot.slane %v3856, 7
    %v4406 = vsel %vm617, %v4403, %v4405
    %v4407 = vrot.slane %v3878, 7
    %v4408 = vsel %vm617, %v4405, %v4407
    %4409 = vrot.lane.b32.xlu0 %v4377, 112
    %v4410 = vpop.permute.xlu0 %4409
    %4411 = vrot.lane.b32.xlu0 %v4379, 112
    %v4412 = vpop.permute.xlu0 %4411
    %4413 = vrot.lane.b32.xlu0 %v4381, 112
    %v4414 = vpop.permute.xlu0 %4413
    %4415 = vrot.lane.b32.xlu0 %v4383, 112
    %v4416 = vpop.permute.xlu0 %4415
    %4417 = vrot.lane.b32.xlu0 %v4385, 112
    %v4418 = vpop.permute.xlu0 %4417
    %4419 = vrot.lane.b32.xlu0 %v4387, 112
    %v4420 = vpop.permute.xlu0 %4419
    %4421 = vrot.lane.b32.xlu0 %v4389, 112
    %v4422 = vpop.permute.xlu0 %4421
    %4423 = vrot.lane.b32.xlu0 %v4391, 112
    %v4424 = vpop.permute.xlu0 %4423
    %4425 = vrot.lane.b32.xlu0 %v4394, 112
    %v4426 = vpop.permute.xlu0 %4425
    %4427 = vrot.lane.b32.xlu0 %v4396, 112
    %v4428 = vpop.permute.xlu0 %4427
    %4429 = vrot.lane.b32.xlu0 %v4398, 112
    %v4430 = vpop.permute.xlu0 %4429
    %4431 = vrot.lane.b32.xlu0 %v4400, 112
    %v4432 = vpop.permute.xlu0 %4431
    %4433 = vrot.lane.b32.xlu0 %v4402, 112
    %v4434 = vpop.permute.xlu0 %4433
    %4435 = vrot.lane.b32.xlu0 %v4404, 112
    %v4436 = vpop.permute.xlu0 %4435
    %4437 = vrot.lane.b32.xlu0 %v4406, 112
    %v4438 = vpop.permute.xlu0 %4437
    %4439 = vrot.lane.b32.xlu0 %v4408, 112
    %v4440 = vpop.permute.xlu0 %4439
    %v4457 = vsel %vm799, %v3875, %v3918
    %v4458 = vsel %vm799, %v3829, %v3920
    %v4459 = vsel %vm799, %v3831, %v3922
    %v4460 = vsel %vm799, %v3833, %v3924
    %v4461 = vsel %vm799, %v3835, %v3926
    %v4462 = vsel %vm799, %v3837, %v3928
    %v4463 = vsel %vm799, %v3839, %v3930
    %v4464 = vsel %vm799, %v3841, %v3932
    %v4465 = vsel %vm799, %v3876, %v3934
    %v4466 = vsel %vm799, %v3844, %v3936
    %v4467 = vsel %vm799, %v3846, %v3938
    %v4468 = vsel %vm799, %v3848, %v3940
    %v4469 = vsel %vm799, %v3850, %v3942
    %v4470 = vsel %vm799, %v3852, %v3944
    %v4471 = vsel %vm799, %v3854, %v3946
    %v4472 = vsel %vm799, %v3856, %v3948
    %v4473 = vsel %vm867, %v4457, %v4000
    %v4474 = vsel %vm867, %v4458, %v4002
    %v4475 = vsel %vm867, %v4459, %v4004
    %v4476 = vsel %vm867, %v4460, %v4006
    %v4477 = vsel %vm867, %v4461, %v4008
    %v4478 = vsel %vm867, %v4462, %v4010
    %v4479 = vsel %vm867, %v4463, %v4012
    %v4480 = vsel %vm867, %v4464, %v4014
    %v4481 = vsel %vm867, %v4465, %v4016
    %v4482 = vsel %vm867, %v4466, %v4018
    %v4483 = vsel %vm867, %v4467, %v4020
    %v4484 = vsel %vm867, %v4468, %v4022
    %v4485 = vsel %vm867, %v4469, %v4024
    %v4486 = vsel %vm867, %v4470, %v4026
    %v4487 = vsel %vm867, %v4471, %v4028
    %v4488 = vsel %vm867, %v4472, %v4030
    %v4489 = vsel %vm1439, %v4473, %v4082
    %v4490 = vsel %vm1439, %v4474, %v4084
    %v4491 = vsel %vm1439, %v4475, %v4086
    %v4492 = vsel %vm1439, %v4476, %v4088
    %v4493 = vsel %vm1439, %v4477, %v4090
    %v4494 = vsel %vm1439, %v4478, %v4092
    %v4495 = vsel %vm1439, %v4479, %v4094
    %v4496 = vsel %vm1439, %v4480, %v4096
    %v4497 = vsel %vm1439, %v4481, %v4098
    %v4498 = vsel %vm1439, %v4482, %v4100
    %v4499 = vsel %vm1439, %v4483, %v4102
    %v4500 = vsel %vm1439, %v4484, %v4104
    %v4501 = vsel %vm1439, %v4485, %v4106
    %v4502 = vsel %vm1439, %v4486, %v4108
    %v4503 = vsel %vm1439, %v4487, %v4110
    %v4504 = vsel %vm1439, %v4488, %v4112
    %v4505 = vsel %vm1456, %v4489, %v4164
    %v4506 = vsel %vm1456, %v4490, %v4166
    %v4507 = vsel %vm1456, %v4491, %v4168
    %v4508 = vsel %vm1456, %v4492, %v4170
    %v4509 = vsel %vm1456, %v4493, %v4172
    %v4510 = vsel %vm1456, %v4494, %v4174
    %v4511 = vsel %vm1456, %v4495, %v4176
    %v4512 = vsel %vm1456, %v4496, %v4178
    %v4513 = vsel %vm1456, %v4497, %v4180
    %v4514 = vsel %vm1456, %v4498, %v4182
    %v4515 = vsel %vm1456, %v4499, %v4184
    %v4516 = vsel %vm1456, %v4500, %v4186
    %v4517 = vsel %vm1456, %v4501, %v4188
    %v4518 = vsel %vm1456, %v4502, %v4190
    %v4519 = vsel %vm1456, %v4503, %v4192
    %v4520 = vsel %vm1456, %v4504, %v4194
    %v4521 = vsel %vm2689, %v4505, %v4246
    %v4522 = vsel %vm2689, %v4506, %v4248
    %v4523 = vsel %vm2689, %v4507, %v4250
    %v4524 = vsel %vm2689, %v4508, %v4252
    %v4525 = vsel %vm2689, %v4509, %v4254
    %v4526 = vsel %vm2689, %v4510, %v4256
    %v4527 = vsel %vm2689, %v4511, %v4258
    %v4528 = vsel %vm2689, %v4512, %v4260
    %v4529 = vsel %vm2689, %v4513, %v4262
    %v4530 = vsel %vm2689, %v4514, %v4264
    %v4531 = vsel %vm2689, %v4515, %v4266
    %v4532 = vsel %vm2689, %v4516, %v4268
    %v4533 = vsel %vm2689, %v4517, %v4270
    %v4534 = vsel %vm2689, %v4518, %v4272
    %v4535 = vsel %vm2689, %v4519, %v4274
    %v4536 = vsel %vm2689, %v4520, %v4276
    %v4537 = vsel %vm2706, %v4521, %v4328
    %v4538 = vsel %vm2706, %v4522, %v4330
    %v4539 = vsel %vm2706, %v4523, %v4332
    %v4540 = vsel %vm2706, %v4524, %v4334
    %v4541 = vsel %vm2706, %v4525, %v4336
    %v4542 = vsel %vm2706, %v4526, %v4338
    %v4543 = vsel %vm2706, %v4527, %v4340
    %v4544 = vsel %vm2706, %v4528, %v4342
    %v4545 = vsel %vm2706, %v4529, %v4344
    %v4546 = vsel %vm2706, %v4530, %v4346
    %v4547 = vsel %vm2706, %v4531, %v4348
    %v4548 = vsel %vm2706, %v4532, %v4350
    %v4549 = vsel %vm2706, %v4533, %v4352
    %v4550 = vsel %vm2706, %v4534, %v4354
    %v4551 = vsel %vm2706, %v4535, %v4356
    %v4552 = vsel %vm2706, %v4536, %v4358
    %v4553 = vsel %vm2723, %v4537, %v4410
    %v4554 = vsel %vm2723, %v4538, %v4412
    %v4555 = vsel %vm2723, %v4539, %v4414
    %v4556 = vsel %vm2723, %v4540, %v4416
    %v4557 = vsel %vm2723, %v4541, %v4418
    %v4558 = vsel %vm2723, %v4542, %v4420
    %v4559 = vsel %vm2723, %v4543, %v4422
    %v4560 = vsel %vm2723, %v4544, %v4424
    %v4561 = vsel %vm2723, %v4545, %v4426
    %v4562 = vsel %vm2723, %v4546, %v4428
    %v4563 = vsel %vm2723, %v4547, %v4430
    %v4564 = vsel %vm2723, %v4548, %v4432
    %v4565 = vsel %vm2723, %v4549, %v4434
    %v4566 = vsel %vm2723, %v4550, %v4436
    %v4567 = vsel %vm2723, %v4551, %v4438
    %v4568 = vsel %vm2723, %v4552, %v4440
    %v4569 = vsel %vm799, %v3829, 0
    %v4571 = vsel %vm799, %v3831, 0
    %v4573 = vsel %vm799, %v3833, 0
    %v4575 = vsel %vm799, %v3835, 0
    %v4577 = vsel %vm799, %v3837, 0
    %v4579 = vsel %vm799, %v3839, 0
    %v4581 = vsel %vm799, %v3841, 0
    %v4583 = vsel %vm799, %v3877, 0
    %v4585 = vsel %vm799, %v3844, 0
    %v4587 = vsel %vm799, %v3846, 0
    %v4589 = vsel %vm799, %v3848, 0
    %v4591 = vsel %vm799, %v3850, 0
    %v4593 = vsel %vm799, %v3852, 0
    %v4595 = vsel %vm799, %v3854, 0
    %v4597 = vsel %vm799, %v3856, 0
    %v4599 = vsel %vm799, %v3878, 0
    %4601 = vmatprep.subr.mxu0 0.0
    %4602 = vmatpush1.msra.mxu0 %v3808
    %4603 = vmatprep.subr.mxu0 0.0
    %4604 = vmatpush1.msra.mxu0 %v3807
    %4605 = vmatprep.subr.mxu0 0.0
    %4606 = vmatpush1.msra.mxu0 %v3806
    %4607 = vmatprep.subr.mxu0 0.0
    %4608 = vmatpush1.msra.mxu0 %v3805
    %4609 = vmatprep.subr.mxu0 0.0
    %4610 = vmatpush1.msra.mxu0 %v3804
    %4611 = vmatprep.subr.mxu0 0.0
    %4612 = vmatpush1.msra.mxu0 %v3803
    %4613 = vmatprep.subr.mxu0 0.0
    %4614 = vmatpush1.msra.mxu0 %v3802
    %4615 = vmatprep.subr.mxu0 0.0
    %4616 = vmatpush1.msra.mxu0 %v3801
    %4617 = vmatprep.subr.mxu0 0.0
    %4618 = vmatpush1.msra.mxu0 %v3800
    %4619 = vmatprep.subr.mxu0 0.0
    %4620 = vmatpush1.msra.mxu0 %v3799
    %4621 = vmatprep.subr.mxu0 0.0
    %4622 = vmatpush1.msra.mxu0 %v3798
    %4623 = vmatprep.subr.mxu0 0.0
    %4624 = vmatpush1.msra.mxu0 %v3797
    %4625 = vmatprep.subr.mxu0 0.0
    %4626 = vmatpush1.msra.mxu0 %v3796
    %4627 = vmatprep.subr.mxu0 0.0
    %4628 = vmatpush1.msra.mxu0 %v3795
    %4629 = vmatprep.subr.mxu0 0.0
    %4630 = vmatpush1.msra.mxu0 %v3794
    %4631 = vmatprep.subr.mxu0 0.0
    %4632 = vmatpush1.msra.mxu0 %v3793
    %4633 = vmatprep.subr.mxu0 0.0
    %4634 = vmatpush2.msra.mxu0 0.0
    %4635 = vmatprep.subr.mxu0 0.0
    %4636 = vmatpush2.msra.mxu0 0.0
    %4637 = vmatprep.subr.mxu0 0.0
    %4638 = vmatpush2.msra.mxu0 0.0
    %4639 = vmatprep.subr.mxu0 0.0
    %4640 = vmatpush2.msra.mxu0 0.0
    %4641 = vmatprep.subr.mxu0 0.0
    %4642 = vmatpush2.msra.mxu0 0.0
    %4643 = vmatprep.subr.mxu0 0.0
    %4644 = vmatpush2.msra.mxu0 0.0
    %4645 = vmatprep.subr.mxu0 0.0
    %4646 = vmatpush2.msra.mxu0 0.0
    %4647 = vmatprep.subr.mxu0 0.0
    %4648 = vmatpush2.msra.mxu0 0.0
    %4649 = vmatprep.subr.mxu0 0.0
    %4650 = vmatpush2.msra.mxu0 0.0
    %4651 = vmatprep.subr.mxu0 0.0
    %4652 = vmatpush2.msra.mxu0 0.0
    %4653 = vmatprep.subr.mxu0 0.0
    %4654 = vmatpush2.msra.mxu0 0.0
    %4655 = vmatprep.subr.mxu0 0.0
    %4656 = vmatpush2.msra.mxu0 0.0
    %4657 = vmatprep.subr.mxu0 0.0
    %4658 = vmatpush2.msra.mxu0 0.0
    %4659 = vmatprep.subr.mxu0 0.0
    %4660 = vmatpush2.msra.mxu0 0.0
    %4661 = vmatprep.subr.mxu0 0.0
    %4662 = vmatpush2.msra.mxu0 %v3810
    %4663 = vmatprep.subr.mxu0 0.0
    %4664 = vmatpush2.msra.mxu0 %v3809
    %4665 = vmatprep.mubr.f32.mxu0 %v4569
    %4666 = vmatmul.mubr.f32.gmra.mxu0 %v4553
    %v4667 = vpop.f32.mrf.mxu0
    %v4668 = vadd.f32 0.0, %v4667
    %v4669 = vpop.f32.mrf.mxu0
    %4670 = vmatprep.mubr.f32.mxu0 %v4571
    %4671 = vmatmul.mubr.f32.gmra.mxu0 %v4554
    %v4672 = vpop.f32.mrf.mxu0
    %v4673 = vadd.f32 0.0, %v4672
    %v4674 = vpop.f32.mrf.mxu0
    %4675 = vmatprep.mubr.f32.mxu0 %v4573
    %4676 = vmatmul.mubr.f32.gmra.mxu0 %v4555
    %v4677 = vpop.f32.mrf.mxu0
    %v4678 = vadd.f32 0.0, %v4677
    %v4679 = vpop.f32.mrf.mxu0
    %4680 = vmatprep.mubr.f32.mxu0 %v4575
    %4681 = vmatmul.mubr.f32.gmra.mxu0 %v4556
    %v4682 = vpop.f32.mrf.mxu0
    %v4683 = vadd.f32 0.0, %v4682
    %v4684 = vpop.f32.mrf.mxu0
    %4685 = vmatprep.mubr.f32.mxu0 %v4577
    %4686 = vmatmul.mubr.f32.gmra.mxu0 %v4557
    %v4687 = vpop.f32.mrf.mxu0
    %v4688 = vadd.f32 0.0, %v4687
    %v4689 = vpop.f32.mrf.mxu0
    %4690 = vmatprep.mubr.f32.mxu0 %v4579
    %4691 = vmatmul.mubr.f32.gmra.mxu0 %v4558
    %v4692 = vpop.f32.mrf.mxu0
    %v4693 = vadd.f32 0.0, %v4692
    %v4694 = vpop.f32.mrf.mxu0
    %4695 = vmatprep.mubr.f32.mxu0 %v4581
    %4696 = vmatmul.mubr.f32.gmra.mxu0 %v4559
    %v4697 = vpop.f32.mrf.mxu0
    %v4698 = vadd.f32 0.0, %v4697
    %v4699 = vpop.f32.mrf.mxu0
    %4700 = vmatprep.mubr.f32.mxu0 %v4583
    %4701 = vmatmul.mubr.f32.gmra.mxu0 %v4560
    %v4702 = vpop.f32.mrf.mxu0
    %v4703 = vadd.f32 0.0, %v4702
    %v4704 = vpop.f32.mrf.mxu0
    %4705 = vmatprep.mubr.f32.mxu0 %v4585
    %4706 = vmatmul.mubr.f32.gmra.mxu0 %v4561
    %v4707 = vpop.f32.mrf.mxu0
    %v4708 = vadd.f32 0.0, %v4707
    %v4709 = vpop.f32.mrf.mxu0
    %4710 = vmatprep.mubr.f32.mxu0 %v4587
    %4711 = vmatmul.mubr.f32.gmra.mxu0 %v4562
    %v4712 = vpop.f32.mrf.mxu0
    %v4713 = vadd.f32 0.0, %v4712
    %v4714 = vpop.f32.mrf.mxu0
    %4715 = vmatprep.mubr.f32.mxu0 %v4589
    %4716 = vmatmul.mubr.f32.gmra.mxu0 %v4563
    %v4717 = vpop.f32.mrf.mxu0
    %v4718 = vadd.f32 0.0, %v4717
    %v4719 = vpop.f32.mrf.mxu0
    %4720 = vmatprep.mubr.f32.mxu0 %v4591
    %4721 = vmatmul.mubr.f32.gmra.mxu0 %v4564
    %v4722 = vpop.f32.mrf.mxu0
    %v4723 = vadd.f32 0.0, %v4722
    %v4724 = vpop.f32.mrf.mxu0
    %4725 = vmatprep.mubr.f32.mxu0 %v4593
    %4726 = vmatmul.mubr.f32.gmra.mxu0 %v4565
    %v4727 = vpop.f32.mrf.mxu0
    %v4728 = vadd.f32 0.0, %v4727
    %v4729 = vpop.f32.mrf.mxu0
    %4730 = vmatprep.mubr.f32.mxu0 %v4595
    %4731 = vmatmul.mubr.f32.gmra.mxu0 %v4566
    %v4732 = vpop.f32.mrf.mxu0
    %v4733 = vadd.f32 0.0, %v4732
    %v4734 = vpop.f32.mrf.mxu0
    %4735 = vmatprep.mubr.f32.mxu0 %v4597
    %4736 = vmatmul.mubr.f32.gmra.mxu0 %v4567
    %v4737 = vpop.f32.mrf.mxu0
    %v4738 = vadd.f32 0.0, %v4737
    %v4739 = vpop.f32.mrf.mxu0
    %4740 = vmatprep.mubr.f32.mxu0 %v4599
    %4741 = vmatmul.mubr.f32.gmra.mxu0 %v4568
    %v4742 = vpop.f32.mrf.mxu0
    %v4743 = vadd.f32 0.0, %v4742
    %v4744 = vpop.f32.mrf.mxu0
    %4745 = vdwg.mxu0
    %v4746 = vld [vmem:[#allocation2 + $0x208] sm:$0xff]
    %v4747 = vld [vmem:[#allocation2 + $0x210] sm:$0xff]
    %v4748 = vld [vmem:[#allocation2 + $0x218] sm:$0xff]
    %v4749 = vld [vmem:[#allocation2 + $0x220] sm:$0xff]
    %v4750 = vld [vmem:[#allocation2 + $0x228] sm:$0xff]
    %v4751 = vld [vmem:[#allocation2 + $0x230] sm:$0xff]
    %v4752 = vld [vmem:[#allocation2 + $0x238] sm:$0xff]
    %v4753 = vld [vmem:[#allocation2 + $0x240] sm:$0xff]
    %v4770 = vrot.slane %v4668, 7
    %v4771 = vrot.slane %v4673, 7
    %v4772 = vsel %vm617, %v4770, %v4771
    %v4773 = vrot.slane %v4678, 7
    %v4774 = vsel %vm617, %v4771, %v4773
    %v4775 = vrot.slane %v4683, 7
    %v4776 = vsel %vm617, %v4773, %v4775
    %v4777 = vrot.slane %v4688, 7
    %v4778 = vsel %vm617, %v4775, %v4777
    %v4779 = vrot.slane %v4693, 7
    %v4780 = vsel %vm617, %v4777, %v4779
    %v4781 = vrot.slane %v4698, 7
    %v4782 = vsel %vm617, %v4779, %v4781
    %v4783 = vrot.slane %v4703, 7
    %v4784 = vsel %vm617, %v4781, %v4783
    %v4785 = vrot.slane %v4708, 7
    %v4786 = vrot.slane %v4713, 7
    %v4787 = vsel %vm617, %v4785, %v4786
    %v4788 = vrot.slane %v4718, 7
    %v4789 = vsel %vm617, %v4786, %v4788
    %v4790 = vrot.slane %v4723, 7
    %v4791 = vsel %vm617, %v4788, %v4790
    %v4792 = vrot.slane %v4728, 7
    %v4793 = vsel %vm617, %v4790, %v4792
    %v4794 = vrot.slane %v4733, 7
    %v4795 = vsel %vm617, %v4792, %v4794
    %v4796 = vrot.slane %v4738, 7
    %v4797 = vsel %vm617, %v4794, %v4796
    %v4798 = vrot.slane %v4743, 7
    %v4799 = vsel %vm617, %v4796, %v4798
    %v4818 = vsel %vm617, 0.0, %v4770
    %v4819 = vsel %vm617, 0.0, %v4785
    %v4820 = vsel %vm617, %v4783, 0.0
    %v4821 = vsel %vm617, %v4798, 0.0
    %v4826 = vrot.slane %v4818, 1
    %v4827 = vrot.slane %v4772, 1
    %v4828 = vsel %vm120, %v4826, %v4827
    %v4829 = vrot.slane %v4774, 1
    %v4830 = vsel %vm120, %v4827, %v4829
    %v4831 = vrot.slane %v4776, 1
    %v4832 = vsel %vm120, %v4829, %v4831
    %v4833 = vrot.slane %v4778, 1
    %v4834 = vsel %vm120, %v4831, %v4833
    %v4835 = vrot.slane %v4780, 1
    %v4836 = vsel %vm120, %v4833, %v4835
    %v4837 = vrot.slane %v4782, 1
    %v4838 = vsel %vm120, %v4835, %v4837
    %v4839 = vrot.slane %v4784, 1
    %v4840 = vsel %vm120, %v4837, %v4839
    %v4841 = vrot.slane %v4820, 1
    %v4842 = vsel %vm120, %v4839, %v4841
    %v4843 = vrot.slane %v4819, 1
    %v4844 = vrot.slane %v4787, 1
    %v4845 = vsel %vm120, %v4843, %v4844
    %v4846 = vrot.slane %v4789, 1
    %v4847 = vsel %vm120, %v4844, %v4846
    %v4848 = vrot.slane %v4791, 1
    %v4849 = vsel %vm120, %v4846, %v4848
    %v4850 = vrot.slane %v4793, 1
    %v4851 = vsel %vm120, %v4848, %v4850
    %v4852 = vrot.slane %v4795, 1
    %v4853 = vsel %vm120, %v4850, %v4852
    %v4854 = vrot.slane %v4797, 1
    %v4855 = vsel %vm120, %v4852, %v4854
    %v4856 = vrot.slane %v4799, 1
    %v4857 = vsel %vm120, %v4854, %v4856
    %v4858 = vrot.slane %v4821, 1
    %v4859 = vsel %vm120, %v4856, %v4858
    %4860 = vrot.lane.b32.xlu0 %v4828, 16
    %v4861 = vpop.permute.xlu0 %4860
    %4862 = vrot.lane.b32.xlu0 %v4830, 16
    %v4863 = vpop.permute.xlu0 %4862
    %4864 = vrot.lane.b32.xlu0 %v4832, 16
    %v4865 = vpop.permute.xlu0 %4864
    %4866 = vrot.lane.b32.xlu0 %v4834, 16
    %v4867 = vpop.permute.xlu0 %4866
    %4868 = vrot.lane.b32.xlu0 %v4836, 16
    %v4869 = vpop.permute.xlu0 %4868
    %4870 = vrot.lane.b32.xlu0 %v4838, 16
    %v4871 = vpop.permute.xlu0 %4870
    %4872 = vrot.lane.b32.xlu0 %v4840, 16
    %v4873 = vpop.permute.xlu0 %4872
    %4874 = vrot.lane.b32.xlu0 %v4842, 16
    %v4875 = vpop.permute.xlu0 %4874
    %4876 = vrot.lane.b32.xlu0 %v4845, 16
    %v4877 = vpop.permute.xlu0 %4876
    %4878 = vrot.lane.b32.xlu0 %v4847, 16
    %v4879 = vpop.permute.xlu0 %4878
    %4880 = vrot.lane.b32.xlu0 %v4849, 16
    %v4881 = vpop.permute.xlu0 %4880
    %4882 = vrot.lane.b32.xlu0 %v4851, 16
    %v4883 = vpop.permute.xlu0 %4882
    %4884 = vrot.lane.b32.xlu0 %v4853, 16
    %v4885 = vpop.permute.xlu0 %4884
    %4886 = vrot.lane.b32.xlu0 %v4855, 16
    %v4887 = vpop.permute.xlu0 %4886
    %4888 = vrot.lane.b32.xlu0 %v4857, 16
    %v4889 = vpop.permute.xlu0 %4888
    %4890 = vrot.lane.b32.xlu0 %v4859, 16
    %v4891 = vpop.permute.xlu0 %4890
    %v4908 = vrot.slane %v4818, 2
    %v4909 = vrot.slane %v4772, 2
    %v4910 = vsel %vm203, %v4908, %v4909
    %v4911 = vrot.slane %v4774, 2
    %v4912 = vsel %vm203, %v4909, %v4911
    %v4913 = vrot.slane %v4776, 2
    %v4914 = vsel %vm203, %v4911, %v4913
    %v4915 = vrot.slane %v4778, 2
    %v4916 = vsel %vm203, %v4913, %v4915
    %v4917 = vrot.slane %v4780, 2
    %v4918 = vsel %vm203, %v4915, %v4917
    %v4919 = vrot.slane %v4782, 2
    %v4920 = vsel %vm203, %v4917, %v4919
    %v4921 = vrot.slane %v4784, 2
    %v4922 = vsel %vm203, %v4919, %v4921
    %v4923 = vrot.slane %v4820, 2
    %v4924 = vsel %vm203, %v4921, %v4923
    %v4925 = vrot.slane %v4819, 2
    %v4926 = vrot.slane %v4787, 2
    %v4927 = vsel %vm203, %v4925, %v4926
    %v4928 = vrot.slane %v4789, 2
    %v4929 = vsel %vm203, %v4926, %v4928
    %v4930 = vrot.slane %v4791, 2
    %v4931 = vsel %vm203, %v4928, %v4930
    %v4932 = vrot.slane %v4793, 2
    %v4933 = vsel %vm203, %v4930, %v4932
    %v4934 = vrot.slane %v4795, 2
    %v4935 = vsel %vm203, %v4932, %v4934
    %v4936 = vrot.slane %v4797, 2
    %v4937 = vsel %vm203, %v4934, %v4936
    %v4938 = vrot.slane %v4799, 2
    %v4939 = vsel %vm203, %v4936, %v4938
    %v4940 = vrot.slane %v4821, 2
    %v4941 = vsel %vm203, %v4938, %v4940
    %4942 = vrot.lane.b32.xlu0 %v4910, 32
    %v4943 = vpop.permute.xlu0 %4942
    %4944 = vrot.lane.b32.xlu0 %v4912, 32
    %v4945 = vpop.permute.xlu0 %4944
    %4946 = vrot.lane.b32.xlu0 %v4914, 32
    %v4947 = vpop.permute.xlu0 %4946
    %4948 = vrot.lane.b32.xlu0 %v4916, 32
    %v4949 = vpop.permute.xlu0 %4948
    %4950 = vrot.lane.b32.xlu0 %v4918, 32
    %v4951 = vpop.permute.xlu0 %4950
    %4952 = vrot.lane.b32.xlu0 %v4920, 32
    %v4953 = vpop.permute.xlu0 %4952
    %4954 = vrot.lane.b32.xlu0 %v4922, 32
    %v4955 = vpop.permute.xlu0 %4954
    %4956 = vrot.lane.b32.xlu0 %v4924, 32
    %v4957 = vpop.permute.xlu0 %4956
    %4958 = vrot.lane.b32.xlu0 %v4927, 32
    %v4959 = vpop.permute.xlu0 %4958
    %4960 = vrot.lane.b32.xlu0 %v4929, 32
    %v4961 = vpop.permute.xlu0 %4960
    %4962 = vrot.lane.b32.xlu0 %v4931, 32
    %v4963 = vpop.permute.xlu0 %4962
    %4964 = vrot.lane.b32.xlu0 %v4933, 32
    %v4965 = vpop.permute.xlu0 %4964
    %4966 = vrot.lane.b32.xlu0 %v4935, 32
    %v4967 = vpop.permute.xlu0 %4966
    %4968 = vrot.lane.b32.xlu0 %v4937, 32
    %v4969 = vpop.permute.xlu0 %4968
    %4970 = vrot.lane.b32.xlu0 %v4939, 32
    %v4971 = vpop.permute.xlu0 %4970
    %4972 = vrot.lane.b32.xlu0 %v4941, 32
    %v4973 = vpop.permute.xlu0 %4972
    %v4990 = vrot.slane %v4818, 3
    %v4991 = vrot.slane %v4772, 3
    %v4992 = vsel %vm286, %v4990, %v4991
    %v4993 = vrot.slane %v4774, 3
    %v4994 = vsel %vm286, %v4991, %v4993
    %v4995 = vrot.slane %v4776, 3
    %v4996 = vsel %vm286, %v4993, %v4995
    %v4997 = vrot.slane %v4778, 3
    %v4998 = vsel %vm286, %v4995, %v4997
    %v4999 = vrot.slane %v4780, 3
    %v5000 = vsel %vm286, %v4997, %v4999
    %v5001 = vrot.slane %v4782, 3
    %v5002 = vsel %vm286, %v4999, %v5001
    %v5003 = vrot.slane %v4784, 3
    %v5004 = vsel %vm286, %v5001, %v5003
    %v5005 = vrot.slane %v4820, 3
    %v5006 = vsel %vm286, %v5003, %v5005
    %v5007 = vrot.slane %v4819, 3
    %v5008 = vrot.slane %v4787, 3
    %v5009 = vsel %vm286, %v5007, %v5008
    %v5010 = vrot.slane %v4789, 3
    %v5011 = vsel %vm286, %v5008, %v5010
    %v5012 = vrot.slane %v4791, 3
    %v5013 = vsel %vm286, %v5010, %v5012
    %v5014 = vrot.slane %v4793, 3
    %v5015 = vsel %vm286, %v5012, %v5014
    %v5016 = vrot.slane %v4795, 3
    %v5017 = vsel %vm286, %v5014, %v5016
    %v5018 = vrot.slane %v4797, 3
    %v5019 = vsel %vm286, %v5016, %v5018
    %v5020 = vrot.slane %v4799, 3
    %v5021 = vsel %vm286, %v5018, %v5020
    %v5022 = vrot.slane %v4821, 3
    %v5023 = vsel %vm286, %v5020, %v5022
    %5024 = vrot.lane.b32.xlu0 %v4992, 48
    %v5025 = vpop.permute.xlu0 %5024
    %5026 = vrot.lane.b32.xlu0 %v4994, 48
    %v5027 = vpop.permute.xlu0 %5026
    %5028 = vrot.lane.b32.xlu0 %v4996, 48
    %v5029 = vpop.permute.xlu0 %5028
    %5030 = vrot.lane.b32.xlu0 %v4998, 48
    %v5031 = vpop.permute.xlu0 %5030
    %5032 = vrot.lane.b32.xlu0 %v5000, 48
    %v5033 = vpop.permute.xlu0 %5032
    %5034 = vrot.lane.b32.xlu0 %v5002, 48
    %v5035 = vpop.permute.xlu0 %5034
    %5036 = vrot.lane.b32.xlu0 %v5004, 48
    %v5037 = vpop.permute.xlu0 %5036
    %5038 = vrot.lane.b32.xlu0 %v5006, 48
    %v5039 = vpop.permute.xlu0 %5038
    %5040 = vrot.lane.b32.xlu0 %v5009, 48
    %v5041 = vpop.permute.xlu0 %5040
    %5042 = vrot.lane.b32.xlu0 %v5011, 48
    %v5043 = vpop.permute.xlu0 %5042
    %5044 = vrot.lane.b32.xlu0 %v5013, 48
    %v5045 = vpop.permute.xlu0 %5044
    %5046 = vrot.lane.b32.xlu0 %v5015, 48
    %v5047 = vpop.permute.xlu0 %5046
    %5048 = vrot.lane.b32.xlu0 %v5017, 48
    %v5049 = vpop.permute.xlu0 %5048
    %5050 = vrot.lane.b32.xlu0 %v5019, 48
    %v5051 = vpop.permute.xlu0 %5050
    %5052 = vrot.lane.b32.xlu0 %v5021, 48
    %v5053 = vpop.permute.xlu0 %5052
    %5054 = vrot.lane.b32.xlu0 %v5023, 48
    %v5055 = vpop.permute.xlu0 %5054
    %v5072 = vsel %vm799, %v4818, %v4861
    %v5073 = vsel %vm799, %v4772, %v4863
    %v5074 = vsel %vm799, %v4774, %v4865
    %v5075 = vsel %vm799, %v4776, %v4867
    %v5076 = vsel %vm799, %v4778, %v4869
    %v5077 = vsel %vm799, %v4780, %v4871
    %v5078 = vsel %vm799, %v4782, %v4873
    %v5079 = vsel %vm799, %v4784, %v4875
    %v5080 = vsel %vm799, %v4819, %v4877
    %v5081 = vsel %vm799, %v4787, %v4879
    %v5082 = vsel %vm799, %v4789, %v4881
    %v5083 = vsel %vm799, %v4791, %v4883
    %v5084 = vsel %vm799, %v4793, %v4885
    %v5085 = vsel %vm799, %v4795, %v4887
    %v5086 = vsel %vm799, %v4797, %v4889
    %v5087 = vsel %vm799, %v4799, %v4891
    %v5088 = vsel %vm867, %v5072, %v4943
    %v5089 = vsel %vm867, %v5073, %v4945
    %v5090 = vsel %vm867, %v5074, %v4947
    %v5091 = vsel %vm867, %v5075, %v4949
    %v5092 = vsel %vm867, %v5076, %v4951
    %v5093 = vsel %vm867, %v5077, %v4953
    %v5094 = vsel %vm867, %v5078, %v4955
    %v5095 = vsel %vm867, %v5079, %v4957
    %v5096 = vsel %vm867, %v5080, %v4959
    %v5097 = vsel %vm867, %v5081, %v4961
    %v5098 = vsel %vm867, %v5082, %v4963
    %v5099 = vsel %vm867, %v5083, %v4965
    %v5100 = vsel %vm867, %v5084, %v4967
    %v5101 = vsel %vm867, %v5085, %v4969
    %v5102 = vsel %vm867, %v5086, %v4971
    %v5103 = vsel %vm867, %v5087, %v4973
    %v5104 = vsel %vm1439, %v5088, %v5025
    %v5105 = vsel %vm1439, %v5089, %v5027
    %v5106 = vsel %vm1439, %v5090, %v5029
    %v5107 = vsel %vm1439, %v5091, %v5031
    %v5108 = vsel %vm1439, %v5092, %v5033
    %v5109 = vsel %vm1439, %v5093, %v5035
    %v5110 = vsel %vm1439, %v5094, %v5037
    %v5111 = vsel %vm1439, %v5095, %v5039
    %v5112 = vsel %vm1439, %v5096, %v5041
    %v5113 = vsel %vm1439, %v5097, %v5043
    %v5114 = vsel %vm1439, %v5098, %v5045
    %v5115 = vsel %vm1439, %v5099, %v5047
    %v5116 = vsel %vm1439, %v5100, %v5049
    %v5117 = vsel %vm1439, %v5101, %v5051
    %v5118 = vsel %vm1439, %v5102, %v5053
    %v5119 = vsel %vm1439, %v5103, %v5055
    %v5121 = vsel %vm1456, %v5104, 0
    %v5124 = vsel %vm1456, %v5105, 0
    %v5127 = vsel %vm1456, %v5106, 0
    %v5130 = vsel %vm1456, %v5107, 0
    %v5133 = vsel %vm1456, %v5108, 0
    %v5136 = vsel %vm1456, %v5109, 0
    %v5139 = vsel %vm1456, %v5110, 0
    %v5142 = vsel %vm1456, %v5111, 0
    %v5145 = vsel %vm1456, %v5112, 0
    %v5148 = vsel %vm1456, %v5113, 0
    %v5151 = vsel %vm1456, %v5114, 0
    %v5154 = vsel %vm1456, %v5115, 0
    %v5157 = vsel %vm1456, %v5116, 0
    %v5160 = vsel %vm1456, %v5117, 0
    %v5163 = vsel %vm1456, %v5118, 0
    %v5166 = vsel %vm1456, %v5119, 0
    %5168 = vmatprep.subr.mxu0 0.0
    %5169 = vmatpush1.msra.mxu0 0.0
    %5170 = vmatprep.subr.mxu0 0.0
    %5171 = vmatpush1.msra.mxu0 0.0
    %5172 = vmatprep.subr.mxu0 0.0
    %5173 = vmatpush1.msra.mxu0 0.0
    %5174 = vmatprep.subr.mxu0 0.0
    %5175 = vmatpush1.msra.mxu0 0.0
    %5176 = vmatprep.subr.mxu0 0.0
    %5177 = vmatpush1.msra.mxu0 0.0
    %5178 = vmatprep.subr.mxu0 0.0
    %5179 = vmatpush1.msra.mxu0 0.0
    %5180 = vmatprep.subr.mxu0 0.0
    %5181 = vmatpush1.msra.mxu0 0.0
    %5182 = vmatprep.subr.mxu0 0.0
    %5183 = vmatpush1.msra.mxu0 0.0
    %5184 = vmatprep.subr.mxu0 0.0
    %5185 = vmatpush1.msra.mxu0 %v4753
    %5186 = vmatprep.subr.mxu0 0.0
    %5187 = vmatpush1.msra.mxu0 %v4752
    %5188 = vmatprep.subr.mxu0 0.0
    %5189 = vmatpush1.msra.mxu0 %v4751
    %5190 = vmatprep.subr.mxu0 0.0
    %5191 = vmatpush1.msra.mxu0 %v4750
    %5192 = vmatprep.subr.mxu0 0.0
    %5193 = vmatpush1.msra.mxu0 %v4749
    %5194 = vmatprep.subr.mxu0 0.0
    %5195 = vmatpush1.msra.mxu0 %v4748
    %5196 = vmatprep.subr.mxu0 0.0
    %5197 = vmatpush1.msra.mxu0 %v4747
    %5198 = vmatprep.subr.mxu0 0.0
    %5199 = vmatpush1.msra.mxu0 %v4746
    %5200 = vmatprep.subr.mxu0 0.0
    %5201 = vmatpush2.msra.mxu0 0.0
    %5202 = vmatprep.subr.mxu0 0.0
    %5203 = vmatpush2.msra.mxu0 0.0
    %5204 = vmatprep.subr.mxu0 0.0
    %5205 = vmatpush2.msra.mxu0 0.0
    %5206 = vmatprep.subr.mxu0 0.0
    %5207 = vmatpush2.msra.mxu0 0.0
    %5208 = vmatprep.subr.mxu0 0.0
    %5209 = vmatpush2.msra.mxu0 0.0
    %5210 = vmatprep.subr.mxu0 0.0
    %5211 = vmatpush2.msra.mxu0 0.0
    %5212 = vmatprep.subr.mxu0 0.0
    %5213 = vmatpush2.msra.mxu0 0.0
    %5214 = vmatprep.subr.mxu0 0.0
    %5215 = vmatpush2.msra.mxu0 0.0
    %5216 = vmatprep.subr.mxu0 0.0
    %5217 = vmatpush2.msra.mxu0 0.0
    %5218 = vmatprep.subr.mxu0 0.0
    %5219 = vmatpush2.msra.mxu0 0.0
    %5220 = vmatprep.subr.mxu0 0.0
    %5221 = vmatpush2.msra.mxu0 0.0
    %5222 = vmatprep.subr.mxu0 0.0
    %5223 = vmatpush2.msra.mxu0 0.0
    %5224 = vmatprep.subr.mxu0 0.0
    %5225 = vmatpush2.msra.mxu0 0.0
    %5226 = vmatprep.subr.mxu0 0.0
    %5227 = vmatpush2.msra.mxu0 0.0
    %5228 = vmatprep.subr.mxu0 0.0
    %5229 = vmatpush2.msra.mxu0 0.0
    %5230 = vmatprep.subr.mxu0 0.0
    %5231 = vmatpush2.msra.mxu0 0.0
    %5232 = vmatprep.mubr.f32.mxu0 0.0
    %5233 = vmatmul.mubr.f32.gmra.mxu0 %v5121
    %v5234 = vpop.f32.mrf.mxu0
    %v5235 = vadd.f32 0.0, %v5234
    %v5236 = vpop.f32.mrf.mxu0
    %5237 = vmatprep.mubr.f32.mxu0 0.0
    %5238 = vmatmul.mubr.f32.gmra.mxu0 %v5124
    %v5239 = vpop.f32.mrf.mxu0
    %v5240 = vadd.f32 0.0, %v5239
    %v5241 = vpop.f32.mrf.mxu0
    %5242 = vmatprep.mubr.f32.mxu0 0.0
    %5243 = vmatmul.mubr.f32.gmra.mxu0 %v5127
    %v5244 = vpop.f32.mrf.mxu0
    %v5245 = vadd.f32 0.0, %v5244
    %v5246 = vpop.f32.mrf.mxu0
    %5247 = vmatprep.mubr.f32.mxu0 0.0
    %5248 = vmatmul.mubr.f32.gmra.mxu0 %v5130
    %v5249 = vpop.f32.mrf.mxu0
    %v5250 = vadd.f32 0.0, %v5249
    %v5251 = vpop.f32.mrf.mxu0
    %5252 = vmatprep.mubr.f32.mxu0 0.0
    %5253 = vmatmul.mubr.f32.gmra.mxu0 %v5133
    %v5254 = vpop.f32.mrf.mxu0
    %v5255 = vadd.f32 0.0, %v5254
    %v5256 = vpop.f32.mrf.mxu0
    %5257 = vmatprep.mubr.f32.mxu0 0.0
    %5258 = vmatmul.mubr.f32.gmra.mxu0 %v5136
    %v5259 = vpop.f32.mrf.mxu0
    %v5260 = vadd.f32 0.0, %v5259
    %v5261 = vpop.f32.mrf.mxu0
    %5262 = vmatprep.mubr.f32.mxu0 0.0
    %5263 = vmatmul.mubr.f32.gmra.mxu0 %v5139
    %v5264 = vpop.f32.mrf.mxu0
    %v5265 = vadd.f32 0.0, %v5264
    %v5266 = vpop.f32.mrf.mxu0
    %5267 = vmatprep.mubr.f32.mxu0 0.0
    %5268 = vmatmul.mubr.f32.gmra.mxu0 %v5142
    %v5269 = vpop.f32.mrf.mxu0
    %v5270 = vadd.f32 0.0, %v5269
    %v5271 = vpop.f32.mrf.mxu0
    %5272 = vmatprep.mubr.f32.mxu0 0.0
    %5273 = vmatmul.mubr.f32.gmra.mxu0 %v5145
    %v5274 = vpop.f32.mrf.mxu0
    %v5275 = vadd.f32 0.0, %v5274
    %v5276 = vpop.f32.mrf.mxu0
    %5277 = vmatprep.mubr.f32.mxu0 0.0
    %5278 = vmatmul.mubr.f32.gmra.mxu0 %v5148
    %v5279 = vpop.f32.mrf.mxu0
    %v5280 = vadd.f32 0.0, %v5279
    %v5281 = vpop.f32.mrf.mxu0
    %5282 = vmatprep.mubr.f32.mxu0 0.0
    %5283 = vmatmul.mubr.f32.gmra.mxu0 %v5151
    %v5284 = vpop.f32.mrf.mxu0
    %v5285 = vadd.f32 0.0, %v5284
    %v5286 = vpop.f32.mrf.mxu0
    %5287 = vmatprep.mubr.f32.mxu0 0.0
    %5288 = vmatmul.mubr.f32.gmra.mxu0 %v5154
    %v5289 = vpop.f32.mrf.mxu0
    %v5290 = vadd.f32 0.0, %v5289
    %v5291 = vpop.f32.mrf.mxu0
    %5292 = vmatprep.mubr.f32.mxu0 0.0
    %5293 = vmatmul.mubr.f32.gmra.mxu0 %v5157
    %v5294 = vpop.f32.mrf.mxu0
    %v5295 = vadd.f32 0.0, %v5294
    %v5296 = vpop.f32.mrf.mxu0
    %5297 = vmatprep.mubr.f32.mxu0 0.0
    %5298 = vmatmul.mubr.f32.gmra.mxu0 %v5160
    %v5299 = vpop.f32.mrf.mxu0
    %v5300 = vadd.f32 0.0, %v5299
    %v5301 = vpop.f32.mrf.mxu0
    %5302 = vmatprep.mubr.f32.mxu0 0.0
    %5303 = vmatmul.mubr.f32.gmra.mxu0 %v5163
    %v5304 = vpop.f32.mrf.mxu0
    %v5305 = vadd.f32 0.0, %v5304
    %v5306 = vpop.f32.mrf.mxu0
    %5307 = vmatprep.mubr.f32.mxu0 0.0
    %5308 = vmatmul.mubr.f32.gmra.mxu0 %v5166
    %v5309 = vpop.f32.mrf.mxu0
    %v5310 = vadd.f32 0.0, %v5309
    %v5311 = vpop.f32.mrf.mxu0
    %5312 = vdwg.mxu0
    %v5313 = vld [vmem:[#allocation2 + $0x248] sm:$0xff]
    %v5314 = vld [vmem:[#allocation2 + $0x250] sm:$0xff]
    %v5315 = vld [vmem:[#allocation2 + $0x258] sm:$0xff]
    %v5316 = vld [vmem:[#allocation2 + $0x260] sm:$0xff]
    %v5333 = vrot.slane %v5235, 1
    %v5334 = vrot.slane %v5240, 1
    %v5335 = vsel %vm120, %v5333, %v5334
    %v5336 = vrot.slane %v5245, 1
    %v5337 = vsel %vm120, %v5334, %v5336
    %v5338 = vrot.slane %v5250, 1
    %v5339 = vsel %vm120, %v5336, %v5338
    %v5340 = vrot.slane %v5255, 1
    %v5341 = vsel %vm120, %v5338, %v5340
    %v5342 = vrot.slane %v5260, 1
    %v5343 = vsel %vm120, %v5340, %v5342
    %v5344 = vrot.slane %v5265, 1
    %v5345 = vsel %vm120, %v5342, %v5344
    %v5346 = vrot.slane %v5270, 1
    %v5347 = vsel %vm120, %v5344, %v5346
    %v5348 = vsel %vm120, %v5346, %v1686
    %v5349 = vrot.slane %v5275, 1
    %v5350 = vrot.slane %v5280, 1
    %v5351 = vsel %vm120, %v5349, %v5350
    %v5352 = vrot.slane %v5285, 1
    %v5353 = vsel %vm120, %v5350, %v5352
    %v5354 = vrot.slane %v5290, 1
    %v5355 = vsel %vm120, %v5352, %v5354
    %v5356 = vrot.slane %v5295, 1
    %v5357 = vsel %vm120, %v5354, %v5356
    %v5358 = vrot.slane %v5300, 1
    %v5359 = vsel %vm120, %v5356, %v5358
    %v5360 = vrot.slane %v5305, 1
    %v5361 = vsel %vm120, %v5358, %v5360
    %v5362 = vrot.slane %v5310, 1
    %v5363 = vsel %vm120, %v5360, %v5362
    %v5364 = vsel %vm120, %v5362, %v1686
    %5365 = vrot.lane.b32.xlu0 %v5335, 16
    %v5366 = vpop.permute.xlu0 %5365
    %5367 = vrot.lane.b32.xlu0 %v5337, 16
    %v5368 = vpop.permute.xlu0 %5367
    %5369 = vrot.lane.b32.xlu0 %v5339, 16
    %v5370 = vpop.permute.xlu0 %5369
    %5371 = vrot.lane.b32.xlu0 %v5341, 16
    %v5372 = vpop.permute.xlu0 %5371
    %5373 = vrot.lane.b32.xlu0 %v5343, 16
    %v5374 = vpop.permute.xlu0 %5373
    %5375 = vrot.lane.b32.xlu0 %v5345, 16
    %v5376 = vpop.permute.xlu0 %5375
    %5377 = vrot.lane.b32.xlu0 %v5347, 16
    %v5378 = vpop.permute.xlu0 %5377
    %5379 = vrot.lane.b32.xlu0 %v5348, 16
    %v5380 = vpop.permute.xlu0 %5379
    %5381 = vrot.lane.b32.xlu0 %v5351, 16
    %v5382 = vpop.permute.xlu0 %5381
    %5383 = vrot.lane.b32.xlu0 %v5353, 16
    %v5384 = vpop.permute.xlu0 %5383
    %5385 = vrot.lane.b32.xlu0 %v5355, 16
    %v5386 = vpop.permute.xlu0 %5385
    %5387 = vrot.lane.b32.xlu0 %v5357, 16
    %v5388 = vpop.permute.xlu0 %5387
    %5389 = vrot.lane.b32.xlu0 %v5359, 16
    %v5390 = vpop.permute.xlu0 %5389
    %5391 = vrot.lane.b32.xlu0 %v5361, 16
    %v5392 = vpop.permute.xlu0 %5391
    %5393 = vrot.lane.b32.xlu0 %v5363, 16
    %v5394 = vpop.permute.xlu0 %5393
    %5395 = vrot.lane.b32.xlu0 %v5364, 16
    %v5396 = vpop.permute.xlu0 %5395
    %v5413 = vsel %vm799, %v5235, %v5366
    %v5414 = vsel %vm799, %v5240, %v5368
    %v5415 = vsel %vm799, %v5245, %v5370
    %v5416 = vsel %vm799, %v5250, %v5372
    %v5417 = vsel %vm799, %v5255, %v5374
    %v5418 = vsel %vm799, %v5260, %v5376
    %v5419 = vsel %vm799, %v5265, %v5378
    %v5420 = vsel %vm799, %v5270, %v5380
    %v5421 = vsel %vm799, %v5275, %v5382
    %v5422 = vsel %vm799, %v5280, %v5384
    %v5423 = vsel %vm799, %v5285, %v5386
    %v5424 = vsel %vm799, %v5290, %v5388
    %v5425 = vsel %vm799, %v5295, %v5390
    %v5426 = vsel %vm799, %v5300, %v5392
    %v5427 = vsel %vm799, %v5305, %v5394
    %v5428 = vsel %vm799, %v5310, %v5396
    %v5430 = vsel %vm867, %v5413, 0
    %v5433 = vsel %vm867, %v5414, 0
    %v5436 = vsel %vm867, %v5415, 0
    %v5439 = vsel %vm867, %v5416, 0
    %v5442 = vsel %vm867, %v5417, 0
    %v5445 = vsel %vm867, %v5418, 0
    %v5448 = vsel %vm867, %v5419, 0
    %v5451 = vsel %vm867, %v5420, 0
    %v5454 = vsel %vm867, %v5421, 0
    %v5457 = vsel %vm867, %v5422, 0
    %v5460 = vsel %vm867, %v5423, 0
    %v5463 = vsel %vm867, %v5424, 0
    %v5466 = vsel %vm867, %v5425, 0
    %v5469 = vsel %vm867, %v5426, 0
    %v5472 = vsel %vm867, %v5427, 0
    %v5475 = vsel %vm867, %v5428, 0
    %5477 = vmatprep.subr.mxu0 0.0
    %5478 = vmatpush1.msra.mxu0 0.0
    %5479 = vmatprep.subr.mxu0 0.0
    %5480 = vmatpush1.msra.mxu0 0.0
    %5481 = vmatprep.subr.mxu0 0.0
    %5482 = vmatpush1.msra.mxu0 0.0
    %5483 = vmatprep.subr.mxu0 0.0
    %5484 = vmatpush1.msra.mxu0 0.0
    %5485 = vmatprep.subr.mxu0 0.0
    %5486 = vmatpush1.msra.mxu0 0.0
    %5487 = vmatprep.subr.mxu0 0.0
    %5488 = vmatpush1.msra.mxu0 0.0
    %5489 = vmatprep.subr.mxu0 0.0
    %5490 = vmatpush1.msra.mxu0 0.0
    %5491 = vmatprep.subr.mxu0 0.0
    %5492 = vmatpush1.msra.mxu0 0.0
    %5493 = vmatprep.subr.mxu0 0.0
    %5494 = vmatpush1.msra.mxu0 0.0
    %5495 = vmatprep.subr.mxu0 0.0
    %5496 = vmatpush1.msra.mxu0 0.0
    %5497 = vmatprep.subr.mxu0 0.0
    %5498 = vmatpush1.msra.mxu0 0.0
    %5499 = vmatprep.subr.mxu0 0.0
    %5500 = vmatpush1.msra.mxu0 0.0
    %5501 = vmatprep.subr.mxu0 0.0
    %5502 = vmatpush1.msra.mxu0 %v5316
    %5503 = vmatprep.subr.mxu0 0.0
    %5504 = vmatpush1.msra.mxu0 %v5315
    %5505 = vmatprep.subr.mxu0 0.0
    %5506 = vmatpush1.msra.mxu0 %v5314
    %5507 = vmatprep.subr.mxu0 0.0
    %5508 = vmatpush1.msra.mxu0 %v5313
    %5509 = vmatprep.subr.mxu0 0.0
    %5510 = vmatpush2.msra.mxu0 0.0
    %5511 = vmatprep.subr.mxu0 0.0
    %5512 = vmatpush2.msra.mxu0 0.0
    %5513 = vmatprep.subr.mxu0 0.0
    %5514 = vmatpush2.msra.mxu0 0.0
    %5515 = vmatprep.subr.mxu0 0.0
    %5516 = vmatpush2.msra.mxu0 0.0
    %5517 = vmatprep.subr.mxu0 0.0
    %5518 = vmatpush2.msra.mxu0 0.0
    %5519 = vmatprep.subr.mxu0 0.0
    %5520 = vmatpush2.msra.mxu0 0.0
    %5521 = vmatprep.subr.mxu0 0.0
    %5522 = vmatpush2.msra.mxu0 0.0
    %5523 = vmatprep.subr.mxu0 0.0
    %5524 = vmatpush2.msra.mxu0 0.0
    %5525 = vmatprep.subr.mxu0 0.0
    %5526 = vmatpush2.msra.mxu0 0.0
    %5527 = vmatprep.subr.mxu0 0.0
    %5528 = vmatpush2.msra.mxu0 0.0
    %5529 = vmatprep.subr.mxu0 0.0
    %5530 = vmatpush2.msra.mxu0 0.0
    %5531 = vmatprep.subr.mxu0 0.0
    %5532 = vmatpush2.msra.mxu0 0.0
    %5533 = vmatprep.subr.mxu0 0.0
    %5534 = vmatpush2.msra.mxu0 0.0
    %5535 = vmatprep.subr.mxu0 0.0
    %5536 = vmatpush2.msra.mxu0 0.0
    %5537 = vmatprep.subr.mxu0 0.0
    %5538 = vmatpush2.msra.mxu0 0.0
    %5539 = vmatprep.subr.mxu0 0.0
    %5540 = vmatpush2.msra.mxu0 0.0
    %5541 = vmatprep.mubr.f32.mxu0 0.0
    %5542 = vmatmul.mubr.f32.gmra.mxu0 %v5430
    %v5543 = vpop.f32.mrf.mxu0
    %v5544 = vadd.f32 0.0, %v5543
    %v5545 = vpop.f32.mrf.mxu0
    %5546 = vmatprep.mubr.f32.mxu0 0.0
    %5547 = vmatmul.mubr.f32.gmra.mxu0 %v5433
    %v5548 = vpop.f32.mrf.mxu0
    %v5549 = vadd.f32 0.0, %v5548
    %v5550 = vpop.f32.mrf.mxu0
    %5551 = vmatprep.mubr.f32.mxu0 0.0
    %5552 = vmatmul.mubr.f32.gmra.mxu0 %v5436
    %v5553 = vpop.f32.mrf.mxu0
    %v5554 = vadd.f32 0.0, %v5553
    %v5555 = vpop.f32.mrf.mxu0
    %5556 = vmatprep.mubr.f32.mxu0 0.0
    %5557 = vmatmul.mubr.f32.gmra.mxu0 %v5439
    %v5558 = vpop.f32.mrf.mxu0
    %v5559 = vadd.f32 0.0, %v5558
    %v5560 = vpop.f32.mrf.mxu0
    %5561 = vmatprep.mubr.f32.mxu0 0.0
    %5562 = vmatmul.mubr.f32.gmra.mxu0 %v5442
    %v5563 = vpop.f32.mrf.mxu0
    %v5564 = vadd.f32 0.0, %v5563
    %v5565 = vpop.f32.mrf.mxu0
    %5566 = vmatprep.mubr.f32.mxu0 0.0
    %5567 = vmatmul.mubr.f32.gmra.mxu0 %v5445
    %v5568 = vpop.f32.mrf.mxu0
    %v5569 = vadd.f32 0.0, %v5568
    %v5570 = vpop.f32.mrf.mxu0
    %5571 = vmatprep.mubr.f32.mxu0 0.0
    %5572 = vmatmul.mubr.f32.gmra.mxu0 %v5448
    %v5573 = vpop.f32.mrf.mxu0
    %v5574 = vadd.f32 0.0, %v5573
    %v5575 = vpop.f32.mrf.mxu0
    %5576 = vmatprep.mubr.f32.mxu0 0.0
    %5577 = vmatmul.mubr.f32.gmra.mxu0 %v5451
    %v5578 = vpop.f32.mrf.mxu0
    %v5579 = vadd.f32 0.0, %v5578
    %v5580 = vpop.f32.mrf.mxu0
    %5581 = vmatprep.mubr.f32.mxu0 0.0
    %5582 = vmatmul.mubr.f32.gmra.mxu0 %v5454
    %v5583 = vpop.f32.mrf.mxu0
    %v5584 = vadd.f32 0.0, %v5583
    %v5585 = vpop.f32.mrf.mxu0
    %5586 = vmatprep.mubr.f32.mxu0 0.0
    %5587 = vmatmul.mubr.f32.gmra.mxu0 %v5457
    %v5588 = vpop.f32.mrf.mxu0
    %v5589 = vadd.f32 0.0, %v5588
    %v5590 = vpop.f32.mrf.mxu0
    %5591 = vmatprep.mubr.f32.mxu0 0.0
    %5592 = vmatmul.mubr.f32.gmra.mxu0 %v5460
    %v5593 = vpop.f32.mrf.mxu0
    %v5594 = vadd.f32 0.0, %v5593
    %v5595 = vpop.f32.mrf.mxu0
    %5596 = vmatprep.mubr.f32.mxu0 0.0
    %5597 = vmatmul.mubr.f32.gmra.mxu0 %v5463
    %v5598 = vpop.f32.mrf.mxu0
    %v5599 = vadd.f32 0.0, %v5598
    %v5600 = vpop.f32.mrf.mxu0
    %5601 = vmatprep.mubr.f32.mxu0 0.0
    %5602 = vmatmul.mubr.f32.gmra.mxu0 %v5466
    %v5603 = vpop.f32.mrf.mxu0
    %v5604 = vadd.f32 0.0, %v5603
    %v5605 = vpop.f32.mrf.mxu0
    %5606 = vmatprep.mubr.f32.mxu0 0.0
    %5607 = vmatmul.mubr.f32.gmra.mxu0 %v5469
    %v5608 = vpop.f32.mrf.mxu0
    %v5609 = vadd.f32 0.0, %v5608
    %v5610 = vpop.f32.mrf.mxu0
    %5611 = vmatprep.mubr.f32.mxu0 0.0
    %5612 = vmatmul.mubr.f32.gmra.mxu0 %v5472
    %v5613 = vpop.f32.mrf.mxu0
    %v5614 = vadd.f32 0.0, %v5613
    %v5615 = vpop.f32.mrf.mxu0
    %5616 = vmatprep.mubr.f32.mxu0 0.0
    %5617 = vmatmul.mubr.f32.gmra.mxu0 %v5475
    %v5618 = vpop.f32.mrf.mxu0
    %v5619 = vadd.f32 0.0, %v5618
    %v5620 = vpop.f32.mrf.mxu0
    %5621 = vdwg.mxu0
    %v5622 = vld [vmem:[#allocation2 + $0x268] sm:$0xff]
    %v5623 = vld [vmem:[#allocation2 + $0x270] sm:$0xff]
    %v5624 = vld [vmem:[#allocation2 + $0x278] sm:$0x1]
    %v5625 = vlaneseq
    %v5626 = vshrl.u32 %v5625, 7
    %v5627 = vsub.s32 0, %v5626
    %v5628 = vrot.slane %v5624, %v5627
    %v5629 = vsel %vm799, %v3715, 0
    %v5631 = vsel %vm799, %v3720, 0
    %v5633 = vsel %vm799, %v3725, 0
    %v5635 = vsel %vm799, %v3730, 0
    %v5637 = vsel %vm799, %v3735, 0
    %v5639 = vsel %vm799, %v3740, 0
    %v5641 = vsel %vm799, %v3745, 0
    %v5643 = vsel %vm799, %v3750, 0
    %v5645 = vsel %vm799, %v3755, 0
    %v5647 = vsel %vm799, %v3760, 0
    %v5649 = vsel %vm799, %v3765, 0
    %v5651 = vsel %vm799, %v3770, 0
    %v5653 = vsel %vm799, %v3775, 0
    %v5655 = vsel %vm799, %v3780, 0
    %v5657 = vsel %vm799, %v3785, 0
    %v5659 = vsel %vm799, %v3790, 0
    %5661 = vmatprep.subr.mxu0 0.0
    %5662 = vmatpush1.msra.mxu0 0.0
    %5663 = vmatprep.subr.mxu0 0.0
    %5664 = vmatpush1.msra.mxu0 0.0
    %5665 = vmatprep.subr.mxu0 0.0
    %5666 = vmatpush1.msra.mxu0 0.0
    %5667 = vmatprep.subr.mxu0 0.0
    %5668 = vmatpush1.msra.mxu0 0.0
    %5669 = vmatprep.subr.mxu0 0.0
    %5670 = vmatpush1.msra.mxu0 0.0
    %5671 = vmatprep.subr.mxu0 0.0
    %5672 = vmatpush1.msra.mxu0 0.0
    %5673 = vmatprep.subr.mxu0 0.0
    %5674 = vmatpush1.msra.mxu0 0.0
    %5675 = vmatprep.subr.mxu0 0.0
    %5676 = vmatpush1.msra.mxu0 0.0
    %5677 = vmatprep.subr.mxu0 0.0
    %5678 = vmatpush1.msra.mxu0 0.0
    %5679 = vmatprep.subr.mxu0 0.0
    %5680 = vmatpush1.msra.mxu0 0.0
    %5681 = vmatprep.subr.mxu0 0.0
    %5682 = vmatpush1.msra.mxu0 0.0
    %5683 = vmatprep.subr.mxu0 0.0
    %5684 = vmatpush1.msra.mxu0 0.0
    %5685 = vmatprep.subr.mxu0 0.0
    %5686 = vmatpush1.msra.mxu0 0.0
    %5687 = vmatprep.subr.mxu0 0.0
    %5688 = vmatpush1.msra.mxu0 0.0
    %5689 = vmatprep.subr.mxu0 0.0
    %5690 = vmatpush1.msra.mxu0 %v5623
    %5691 = vmatprep.subr.mxu0 0.0
    %5692 = vmatpush1.msra.mxu0 %v5622
    %5693 = vmatprep.subr.mxu0 0.0
    %5694 = vmatpush2.msra.mxu0 0.0
    %5695 = vmatprep.subr.mxu0 0.0
    %5696 = vmatpush2.msra.mxu0 0.0
    %5697 = vmatprep.subr.mxu0 0.0
    %5698 = vmatpush2.msra.mxu0 0.0
    %5699 = vmatprep.subr.mxu0 0.0
    %5700 = vmatpush2.msra.mxu0 0.0
    %5701 = vmatprep.subr.mxu0 0.0
    %5702 = vmatpush2.msra.mxu0 0.0
    %5703 = vmatprep.subr.mxu0 0.0
    %5704 = vmatpush2.msra.mxu0 0.0
    %5705 = vmatprep.subr.mxu0 0.0
    %5706 = vmatpush2.msra.mxu0 0.0
    %5707 = vmatprep.subr.mxu0 0.0
    %5708 = vmatpush2.msra.mxu0 0.0
    %5709 = vmatprep.subr.mxu0 0.0
    %5710 = vmatpush2.msra.mxu0 0.0
    %5711 = vmatprep.subr.mxu0 0.0
    %5712 = vmatpush2.msra.mxu0 0.0
    %5713 = vmatprep.subr.mxu0 0.0
    %5714 = vmatpush2.msra.mxu0 0.0
    %5715 = vmatprep.subr.mxu0 0.0
    %5716 = vmatpush2.msra.mxu0 0.0
    %5717 = vmatprep.subr.mxu0 0.0
    %5718 = vmatpush2.msra.mxu0 0.0
    %5719 = vmatprep.subr.mxu0 0.0
    %5720 = vmatpush2.msra.mxu0 0.0
    %5721 = vmatprep.subr.mxu0 0.0
    %5722 = vmatpush2.msra.mxu0 0.0
    %5723 = vmatprep.subr.mxu0 0.0
    %5724 = vmatpush2.msra.mxu0 0.0
    %5725 = vmatprep.mubr.f32.mxu0 0.0
    %5726 = vmatmul.mubr.f32.gmra.mxu0 %v5629
    %v5727 = vpop.f32.mrf.mxu0
    %v5728 = vadd.f32 %v5628, %v5727
    %v5729 = vpop.f32.mrf.mxu0
    %5730 = vmatprep.mubr.f32.mxu0 0.0
    %5731 = vmatmul.mubr.f32.gmra.mxu0 %v5631
    %v5732 = vpop.f32.mrf.mxu0
    %v5733 = vadd.f32 %v5628, %v5732
    %v5734 = vpop.f32.mrf.mxu0
    %5735 = vmatprep.mubr.f32.mxu0 0.0
    %5736 = vmatmul.mubr.f32.gmra.mxu0 %v5633
    %v5737 = vpop.f32.mrf.mxu0
    %v5738 = vadd.f32 %v5628, %v5737
    %v5739 = vpop.f32.mrf.mxu0
    %5740 = vmatprep.mubr.f32.mxu0 0.0
    %5741 = vmatmul.mubr.f32.gmra.mxu0 %v5635
    %v5742 = vpop.f32.mrf.mxu0
    %v5743 = vadd.f32 %v5628, %v5742
    %v5744 = vpop.f32.mrf.mxu0
    %5745 = vmatprep.mubr.f32.mxu0 0.0
    %5746 = vmatmul.mubr.f32.gmra.mxu0 %v5637
    %v5747 = vpop.f32.mrf.mxu0
    %v5748 = vadd.f32 %v5628, %v5747
    %v5749 = vpop.f32.mrf.mxu0
    %5750 = vmatprep.mubr.f32.mxu0 0.0
    %5751 = vmatmul.mubr.f32.gmra.mxu0 %v5639
    %v5752 = vpop.f32.mrf.mxu0
    %v5753 = vadd.f32 %v5628, %v5752
    %v5754 = vpop.f32.mrf.mxu0
    %5755 = vmatprep.mubr.f32.mxu0 0.0
    %5756 = vmatmul.mubr.f32.gmra.mxu0 %v5641
    %v5757 = vpop.f32.mrf.mxu0
    %v5758 = vadd.f32 %v5628, %v5757
    %v5759 = vpop.f32.mrf.mxu0
    %5760 = vmatprep.mubr.f32.mxu0 0.0
    %5761 = vmatmul.mubr.f32.gmra.mxu0 %v5643
    %v5762 = vpop.f32.mrf.mxu0
    %v5763 = vadd.f32 %v5628, %v5762
    %v5764 = vpop.f32.mrf.mxu0
    %5765 = vmatprep.mubr.f32.mxu0 0.0
    %5766 = vmatmul.mubr.f32.gmra.mxu0 %v5645
    %v5767 = vpop.f32.mrf.mxu0
    %v5768 = vadd.f32 %v5628, %v5767
    %v5769 = vpop.f32.mrf.mxu0
    %5770 = vmatprep.mubr.f32.mxu0 0.0
    %5771 = vmatmul.mubr.f32.gmra.mxu0 %v5647
    %v5772 = vpop.f32.mrf.mxu0
    %v5773 = vadd.f32 %v5628, %v5772
    %v5774 = vpop.f32.mrf.mxu0
    %5775 = vmatprep.mubr.f32.mxu0 0.0
    %5776 = vmatmul.mubr.f32.gmra.mxu0 %v5649
    %v5777 = vpop.f32.mrf.mxu0
    %v5778 = vadd.f32 %v5628, %v5777
    %v5779 = vpop.f32.mrf.mxu0
    %5780 = vmatprep.mubr.f32.mxu0 0.0
    %5781 = vmatmul.mubr.f32.gmra.mxu0 %v5651
    %v5782 = vpop.f32.mrf.mxu0
    %v5783 = vadd.f32 %v5628, %v5782
    %v5784 = vpop.f32.mrf.mxu0
    %5785 = vmatprep.mubr.f32.mxu0 0.0
    %5786 = vmatmul.mubr.f32.gmra.mxu0 %v5653
    %v5787 = vpop.f32.mrf.mxu0
    %v5788 = vadd.f32 %v5628, %v5787
    %v5789 = vpop.f32.mrf.mxu0
    %5790 = vmatprep.mubr.f32.mxu0 0.0
    %5791 = vmatmul.mubr.f32.gmra.mxu0 %v5655
    %v5792 = vpop.f32.mrf.mxu0
    %v5793 = vadd.f32 %v5628, %v5792
    %v5794 = vpop.f32.mrf.mxu0
    %5795 = vmatprep.mubr.f32.mxu0 0.0
    %5796 = vmatmul.mubr.f32.gmra.mxu0 %v5657
    %v5797 = vpop.f32.mrf.mxu0
    %v5798 = vadd.f32 %v5628, %v5797
    %v5799 = vpop.f32.mrf.mxu0
    %5800 = vmatprep.mubr.f32.mxu0 0.0
    %5801 = vmatmul.mubr.f32.gmra.mxu0 %v5659
    %v5802 = vpop.f32.mrf.mxu0
    %v5803 = vadd.f32 %v5628, %v5802
    %v5804 = vpop.f32.mrf.mxu0
    %5805 = vdwg.mxu0
    %v5806 = vmax.f32 %v5728, 0.0
    %v5807 = vmax.f32 %v5733, 0.0
    %v5808 = vmax.f32 %v5738, 0.0
    %v5809 = vmax.f32 %v5743, 0.0
    %v5810 = vmax.f32 %v5748, 0.0
    %v5811 = vmax.f32 %v5753, 0.0
    %v5812 = vmax.f32 %v5758, 0.0
    %v5813 = vmax.f32 %v5763, 0.0
    %v5814 = vmax.f32 %v5768, 0.0
    %v5815 = vmax.f32 %v5773, 0.0
    %v5816 = vmax.f32 %v5778, 0.0
    %v5817 = vmax.f32 %v5783, 0.0
    %v5818 = vmax.f32 %v5788, 0.0
    %v5819 = vmax.f32 %v5793, 0.0
    %v5820 = vmax.f32 %v5798, 0.0
    %v5821 = vmax.f32 %v5803, 0.0
    %v5822 = vadd.f32 %v5544, %v5806
    %v5823 = vadd.f32 %v5549, %v5807
    %v5824 = vadd.f32 %v5554, %v5808
    %v5825 = vadd.f32 %v5559, %v5809
    %v5826 = vadd.f32 %v5564, %v5810
    %v5827 = vadd.f32 %v5569, %v5811
    %v5828 = vadd.f32 %v5574, %v5812
    %v5829 = vadd.f32 %v5579, %v5813
    %v5830 = vadd.f32 %v5584, %v5814
    %v5831 = vadd.f32 %v5589, %v5815
    %v5832 = vadd.f32 %v5594, %v5816
    %v5833 = vadd.f32 %v5599, %v5817
    %v5834 = vadd.f32 %v5604, %v5818
    %v5835 = vadd.f32 %v5609, %v5819
    %v5836 = vadd.f32 %v5614, %v5820
    %v5837 = vadd.f32 %v5619, %v5821
    %v5838 = vld [vmem:[#allocation2 + $0x280] sm:$0xff]
    %v5839 = vld [vmem:[#allocation2 + $0x288] sm:$0xff]
    %v5840 = vld [vmem:[#allocation2 + $0x290] sm:$0x1]
    %v5841 = vsel %vm799, %v5822, 0.0
    %v5842 = vsel %vm799, %v5823, 0.0
    %v5843 = vadd.f32 %v5841, %v5842
    %v5844 = vsel %vm799, %v5824, 0.0
    %v5845 = vadd.f32 %v5843, %v5844
    %v5846 = vsel %vm799, %v5825, 0.0
    %v5847 = vadd.f32 %v5845, %v5846
    %v5848 = vsel %vm799, %v5826, 0.0
    %v5849 = vadd.f32 %v5847, %v5848
    %v5850 = vsel %vm799, %v5827, 0.0
    %v5851 = vadd.f32 %v5849, %v5850
    %v5852 = vsel %vm799, %v5828, 0.0
    %v5853 = vadd.f32 %v5851, %v5852
    %v5854 = vsel %vm799, %v5829, 0.0
    %v5855 = vadd.f32 %v5853, %v5854
    %v5856 = vrot.slane %v5855, 4
    %v5857 = vadd.f32 %v5855, %v5856
    %v5858 = vrot.slane %v5857, 2
    %v5859 = vadd.f32 %v5857, %v5858
    %v5860 = vrot.slane %v5859, 1
    %v5861 = vadd.f32 %v5859, %v5860
    %v5862 = vsel %vm799, %v5830, 0.0
    %v5863 = vsel %vm799, %v5831, 0.0
    %v5864 = vadd.f32 %v5862, %v5863
    %v5865 = vsel %vm799, %v5832, 0.0
    %v5866 = vadd.f32 %v5864, %v5865
    %v5867 = vsel %vm799, %v5833, 0.0
    %v5868 = vadd.f32 %v5866, %v5867
    %v5869 = vsel %vm799, %v5834, 0.0
    %v5870 = vadd.f32 %v5868, %v5869
    %v5871 = vsel %vm799, %v5835, 0.0
    %v5872 = vadd.f32 %v5870, %v5871
    %v5873 = vsel %vm799, %v5836, 0.0
    %v5874 = vadd.f32 %v5872, %v5873
    %v5875 = vsel %vm799, %v5837, 0.0
    %v5876 = vadd.f32 %v5874, %v5875
    %v5877 = vrot.slane %v5876, 4
    %v5878 = vadd.f32 %v5876, %v5877
    %v5879 = vrot.slane %v5878, 2
    %v5880 = vadd.f32 %v5878, %v5879
    %v5881 = vrot.slane %v5880, 1
    %v5882 = vadd.f32 %v5880, %v5881
    %v5883 = vrcp.pop 64.0
    %v5884 = vmul.f32 %v5861, %v5883
    %v5885 = vmul.f32 %v5882, %v5883
    %v5886 = vlaneseq
    %v5887 = vshrl.u32 %v5886, 7
    %v5888 = vsub.s32 0, %v5887
    %v5889 = vrot.slane %v5840, %v5888
    %vm5892 = vcmask 1041409
    %v5893 = vsel %vm5892, %v5885, %v5884
    %v5894 = vsel %vm799, %v5893, 0
    %5896 = vmatprep.subr.mxu0 0.0
    %5897 = vmatpush1.msra.mxu0 0.0
    %5898 = vmatprep.subr.mxu0 0.0
    %5899 = vmatpush1.msra.mxu0 0.0
    %5900 = vmatprep.subr.mxu0 0.0
    %5901 = vmatpush1.msra.mxu0 0.0
    %5902 = vmatprep.subr.mxu0 0.0
    %5903 = vmatpush1.msra.mxu0 0.0
    %5904 = vmatprep.subr.mxu0 0.0
    %5905 = vmatpush1.msra.mxu0 0.0
    %5906 = vmatprep.subr.mxu0 0.0
    %5907 = vmatpush1.msra.mxu0 0.0
    %5908 = vmatprep.subr.mxu0 0.0
    %5909 = vmatpush1.msra.mxu0 0.0
    %5910 = vmatprep.subr.mxu0 0.0
    %5911 = vmatpush1.msra.mxu0 0.0
    %5912 = vmatprep.subr.mxu0 0.0
    %5913 = vmatpush1.msra.mxu0 0.0
    %5914 = vmatprep.subr.mxu0 0.0
    %5915 = vmatpush1.msra.mxu0 0.0
    %5916 = vmatprep.subr.mxu0 0.0
    %5917 = vmatpush1.msra.mxu0 0.0
    %5918 = vmatprep.subr.mxu0 0.0
    %5919 = vmatpush1.msra.mxu0 0.0
    %5920 = vmatprep.subr.mxu0 0.0
    %5921 = vmatpush1.msra.mxu0 0.0
    %5922 = vmatprep.subr.mxu0 0.0
    %5923 = vmatpush1.msra.mxu0 0.0
    %5924 = vmatprep.subr.mxu0 0.0
    %5925 = vmatpush1.msra.mxu0 %v5839
    %5926 = vmatprep.subr.mxu0 0.0
    %5927 = vmatpush1.msra.mxu0 %v5838
    %5928 = vmatprep.subr.mxu0 0.0
    %5929 = vmatpush2.msra.mxu0 0.0
    %5930 = vmatprep.subr.mxu0 0.0
    %5931 = vmatpush2.msra.mxu0 0.0
    %5932 = vmatprep.subr.mxu0 0.0
    %5933 = vmatpush2.msra.mxu0 0.0
    %5934 = vmatprep.subr.mxu0 0.0
    %5935 = vmatpush2.msra.mxu0 0.0
    %5936 = vmatprep.subr.mxu0 0.0
    %5937 = vmatpush2.msra.mxu0 0.0
    %5938 = vmatprep.subr.mxu0 0.0
    %5939 = vmatpush2.msra.mxu0 0.0
    %5940 = vmatprep.subr.mxu0 0.0
    %5941 = vmatpush2.msra.mxu0 0.0
    %5942 = vmatprep.subr.mxu0 0.0
    %5943 = vmatpush2.msra.mxu0 0.0
    %5944 = vmatprep.subr.mxu0 0.0
    %5945 = vmatpush2.msra.mxu0 0.0
    %5946 = vmatprep.subr.mxu0 0.0
    %5947 = vmatpush2.msra.mxu0 0.0
    %5948 = vmatprep.subr.mxu0 0.0
    %5949 = vmatpush2.msra.mxu0 0.0
    %5950 = vmatprep.subr.mxu0 0.0
    %5951 = vmatpush2.msra.mxu0 0.0
    %5952 = vmatprep.subr.mxu0 0.0
    %5953 = vmatpush2.msra.mxu0 0.0
    %5954 = vmatprep.subr.mxu0 0.0
    %5955 = vmatpush2.msra.mxu0 0.0
    %5956 = vmatprep.subr.mxu0 0.0
    %5957 = vmatpush2.msra.mxu0 0.0
    %5958 = vmatprep.subr.mxu0 0.0
    %5959 = vmatpush2.msra.mxu0 0.0
    %5960 = vmatprep.mubr.f32.mxu0 0.0
    %5961 = vmatmul.mubr.f32.gmra.mxu0 %v5894
    %v5962 = vpop.f32.mrf.mxu0
    %v5963 = vadd.f32 %v5889, %v5962
    %v5964 = vpop.f32.mrf.mxu0
    %5965 = vdwg.mxu0
    %5966 = vst [vmem:[#allocation5] sm:$0x3] %v5963
    // Predicated region
    $region14: #{_lambda_.1} parent=1 // pred_check
      _
    $region15: #{_lambda_.1} parent=1 // pred_check_branch
      %5968 = sbr.rel (0) target = $region17
    $region16: #{_lambda_.1} parent=1 // pred_region
      %s5970 = ssub.s32 32, 32
      %5971 = vsyncadd [#allocation4], %s5970
      %s5973 = sshll.u32 [#allocation5], 4
      %s5974 = int_to_ptr.vmem [resolvable:$true] %s5973
      %5976 = dma.vmem_to_hbm [thread:$0]  %s5974, 32, %s2, [#allocation4]
    $region17: #{_lambda_.1} parent=1 // pred_fallthru
      _
    // Predicated region
    $region18: #{_lambda_.1} parent=1 // pred_check
      _
    $region19: #{_lambda_.1} parent=1 // pred_check_branch
      %5978 = sbr.rel (0) target = $region21
    $region20: #{_lambda_.1} parent=1 // pred_region
      %5979 = dma.done [#allocation4], 32
    $region21: #{_lambda_.1} parent=1 // pred_fallthru
      _
    %5980 = vsyncpa [#allocation3], 1
    %5981 = vsyncpa [#allocation4], 1

</llo_original>
